<compile_context>
chip_gen: v5e
topology: v5e:2x2
jax: 0.10.0
libtpu: 0.0.40
codegen_flags: <defaults>
</compile_context>

<pallas_src>
import functools

import jax
import jax.numpy as jnp
from jax import lax
from jax.experimental import pallas as pl
from jax.experimental.pallas import tpu as pltpu


def _round_up(x, m):
    return ((x + m - 1) // m) * m


def _probe_highest_precision_dot():
    """Check whether precision=HIGHEST lowers inside a Pallas TPU kernel."""
    def k(a_ref, b_ref, o_ref):
        o_ref[...] = jnp.dot(a_ref[...], b_ref[...],
                             precision=lax.Precision.HIGHEST,
                             preferred_element_type=jnp.float32)
    try:
        a = jnp.ones((8, 128), jnp.float32)
        b = jnp.ones((128, 128), jnp.float32)
        out = pl.pallas_call(
            k, out_shape=jax.ShapeDtypeStruct((8, 128), jnp.float32))(a, b)
        jax.block_until_ready(out)
        return True
    except Exception:
        return False


# ---------------------------------------------------------------------------
# Kernel
# ---------------------------------------------------------------------------
def tt_kernel(xin_ref, w_ref, out_ref, *, L, D, R, O, C,
              seg0, segm, rows_c, precision):
    # xin_ref : (L*D, nb)        inputs, row = i*D + d, lane-dense over NB
    # w_ref   : (C*rows_c, L*D)  packed block-diagonal TT cores (zero-padded)
    # out_ref : (C*O, nb)        output, row = c*O + o
    #
    # Single hoisted matmul: every per-site contraction for every channel.
    #   t[c*rows_c + row, n] holds, for channel c,
    #     rows [0, R)                          : y0[r]          (first core)
    #     rows [seg0+(i-1)*segm, ...+R*R)      : A_i[r*R + l]   (middle cores)
    #     rows [seg0+(L-2)*segm, ...+R*O)      : B[r*O + o]     (last core)
    t = jnp.dot(w_ref[...], xin_ref[...],
                preferred_element_type=jnp.float32, precision=precision)

    # Serial TT chain: pure f32 VPU multiply-adds, statically unrolled over
    # channels so the C independent chains interleave in the schedule.
    outs = []
    for c in range(C):
        base = c * rows_c
        y = t[base:base + R, :]                            # (R, nb)
        off = base + seg0
        for _ in range(1, L - 1):
            a = t[off:off + R * R, :]                      # (R*R, nb), row r*R+l
            acc = y[0:1, :] * a[0:R, :]
            for r in range(1, R):
                acc = acc + y[r:r + 1, :] * a[r * R:(r + 1) * R, :]
            y = acc                                        # (R, nb)
            off += segm
        b = t[off:off + R * O, :]                          # (R*O, nb), row r*O+o
        oc = y[0:1, :] * b[0:O, :]
        for r in range(1, R):
            oc = oc + y[r:r + 1, :] * b[r * O:(r + 1) * O, :]
        outs.append(oc)                                    # (O, nb)
    out_ref[...] = jnp.concatenate(outs, axis=0)           # one full-lane store


# ---------------------------------------------------------------------------
# Host-side helpers
# ---------------------------------------------------------------------------
def extract_input_bucket(x, lengthX, lengthY, kernel_size, in_bond):
    """Same sliding-window patch extraction as the PyTorch module."""
    N = x.shape[0]
    buckets = []
    for k in range(lengthX - kernel_size + 1):
        for l in range(lengthY - kernel_size + 1):
            patch = x[:, :, k:k + kernel_size, l:l + kernel_size]
            buckets.append(patch.reshape(N, in_bond, kernel_size * kernel_size))
    return jnp.stack(buckets, axis=3)   # (N, in_bond, kernel_size^2, P)


def pack_tt_weights(w0, wmid, wlast, *, L, D, R, O, C):
    """Pack all TT cores into one block-diagonal, contraction-ready matrix.

    Segment starts are padded to multiples of 8 rows so every slab the kernel
    slices out of the matmul result is sublane-aligned; padded rows are zero.
    """
    seg0 = _round_up(R, 8)
    segm = _round_up(R * R, 8)
    segl = _round_up(R * O, 8)
    rows_c = seg0 + (L - 2) * segm + segl
    LD = L * D
    W = jnp.zeros((C, rows_c, LD), jnp.float32)
    # first core: w0 (D, R, C) -> (C, R, D);  y0[r] = sum_d w0[d,r,c] x_0[d]
    W = W.at[:, 0:R, 0:D].set(jnp.transpose(w0, (2, 1, 0)))
    # middle cores: wmid[i-1] (R, D, R, C) -> (C, R, Rl, D) -> (C, R*R, D)
    for i in range(1, L - 1):
        blk = jnp.transpose(wmid[i - 1], (3, 0, 2, 1)).reshape(C, R * R, D)
        base = seg0 + (i - 1) * segm
        W = W.at[:, base:base + R * R, i * D:(i + 1) * D].set(blk)
    # last core: wlast (R, D, O, C) -> (C, R, O, D) -> (C, R*O, D)
    blk = jnp.transpose(wlast, (3, 0, 2, 1)).reshape(C, R * O, D)
    base = seg0 + (L - 2) * segm
    W = W.at[:, base:base + R * O, (L - 1) * D:L * D].set(blk)
    return W.reshape(C * rows_c, LD), seg0, segm, rows_c


def tt_forward(x, w0, wmid, wlast, *, lengthX, lengthY, kernel_size,
               in_bond, hidden_bond, output_dim, channel,
               nb_block=2048, dot_precision=None):
    N = x.shape[0]
    L = lengthX * lengthY
    D, R, O, C = in_bond, hidden_bond, output_dim, channel
    # TODO(synk): special-case L == 2 (chain with no middle cores).
    assert L >= 3, "TT chain needs at least 3 nodes"
    assert kernel_size * kernel_size >= L, "patch does not cover the TT chain"

    ib = extract_input_bucket(x, lengthX, lengthY, kernel_size, in_bond)  # (N,D,K2,P)
    P = ib.shape[3]
    NB = N * P
    LD = L * D

    # Dense lane-major input slab: row = i*D + d, column = n*P + p.
    xin = jnp.transpose(ib, (2, 1, 0, 3))[:L].reshape(LD, NB)

    # Lane tile: >=128, default 2048; keep >=2 grid steps when possible so both
    # v7x TensorCores get work.
    nb_block = _round_up(min(nb_block, _round_up(NB, 128)), 128)
    NB_pad = _round_up(NB, nb_block)
    if NB_pad // nb_block < 2 and nb_block >= 256:
        nb_block //= 2
        NB_pad = _round_up(NB, nb_block)
    num_tiles = NB_pad // nb_block
    if NB_pad != NB:
        xin = jnp.pad(xin, ((0, 0), (0, NB_pad - NB)))

    wp, seg0, segm, rows_c = pack_tt_weights(
        w0, wmid, wlast, L=L, D=D, R=R, O=O, C=C)

    kernel = functools.partial(tt_kernel, L=L, D=D, R=R, O=O, C=C,
                               seg0=seg0, segm=segm, rows_c=rows_c,
                               precision=dot_precision)

    # Rough per-tile VMEM footprint; pass an explicit limit with headroom
    # (v5e's default scoped limit is only 16 MiB).
    est = 4 * (2 * LD * nb_block            # xin double buffer
               + C * rows_c * LD            # resident packed weights
               + C * rows_c * nb_block      # hoisted-matmul result
               + 2 * C * O * nb_block       # output double buffer
               + 8 * R * nb_block)          # chain temporaries
    vmem_limit = int(min(max(32 << 20, 2 * est), 48 << 20))

    out = pl.pallas_call(
        kernel,
        out_shape=jax.ShapeDtypeStruct((C * O, NB_pad), jnp.float32),
        grid=(num_tiles,),
        in_specs=[
            pl.BlockSpec((LD, nb_block), lambda t: (0, t)),
            pl.BlockSpec((C * rows_c, LD), lambda t: (0, 0)),  # grid-resident
        ],
        out_specs=pl.BlockSpec((C * O, nb_block), lambda t: (0, t)),
        compiler_params=pltpu.CompilerParams(
            dimension_semantics=("parallel",),
            vmem_limit_bytes=vmem_limit),
    )(xin, wp)

    # (C*O, NB_pad) -> (N, P, C, O), matching the torch output layout.
    out = out[:, :NB].reshape(C, O, N, P)
    return jnp.transpose(out, (2, 3, 0, 1))


def tt_reference(x, w0, wmid, wlast, *, lengthX, lengthY, kernel_size, in_bond):
    """Pure-JAX transcription of the PyTorch forward, for verification."""
    hp = lax.Precision.HIGHEST
    L = lengthX * lengthY
    ib = extract_input_bucket(x, lengthX, lengthY, kernel_size, in_bond)
    y = jnp.einsum('ndp,drc->npcr', ib[:, :, 0, :], w0, precision=hp)
    for i in range(1, L - 1):
        m = jnp.einsum('ndp,rdlc->npcrl', ib[:, :, i, :], wmid[i - 1], precision=hp)
        y = jnp.einsum('npcr,npcrl->npcl', y, m, precision=hp)
    m = jnp.einsum('ndp,rdoc->npcro', ib[:, :, L - 1, :], wlast, precision=hp)
    return jnp.einsum('npcr,npcro->npco', y, m, precision=hp)


if __name__ == "__main__":
    # kernel_size == lengthX == lengthY (module defaults) -> one patch per
    # image and a TT chain over L = lengthX * lengthY sites.
    lengthX = lengthY = kernel_size = 4
    in_bond, hidden_bond, output_dim, channel = 2, 4, 2, 3
    N = 256                      # NB = 256 -> two 128-lane tiles (both v7x TCs busy)
    std = 0.25
    L = lengthX * lengthY

    key = jax.random.PRNGKey(0)
    kx, k0, km, kl = jax.random.split(key, 4)

    x = jax.random.normal(kx, (N, in_bond, lengthX, lengthY), dtype=jnp.float32)
    w0 = std * jax.random.normal(k0, (in_bond, hidden_bond, channel), dtype=jnp.float32)
    wmid = std * jax.random.normal(
        km, (L - 2, hidden_bond, in_bond, hidden_bond, channel), dtype=jnp.float32)
    wlast = std * jax.random.normal(
        kl, (hidden_bond, in_bond, output_dim, channel), dtype=jnp.float32)

    # HIGHEST is applied only to the single hoisted matmul (the chain itself is
    # exact f32 VPU work).  If the lowering rejects it, fall back to default
    # precision with a looser tolerance (note: this downgrade is explicit here,
    # not hidden from callers).
    use_highest = _probe_highest_precision_dot()
    dot_precision = lax.Precision.HIGHEST if use_highest else None
    rtol, atol = (1e-3, 1e-4) if use_highest else (1e-1, 1e-2)

    out = tt_forward(x, w0, wmid, wlast,
                     lengthX=lengthX, lengthY=lengthY, kernel_size=kernel_size,
                     in_bond=in_bond, hidden_bond=hidden_bond,
                     output_dim=output_dim, channel=channel,
                     nb_block=2048, dot_precision=dot_precision)
    out = jax.block_until_ready(out)

    ref = tt_reference(x, w0, wmid, wlast,
                       lengthX=lengthX, lengthY=lengthY,
                       kernel_size=kernel_size, in_bond=in_bond)
    ref = jax.block_until_ready(ref)

    assert out.shape == ref.shape, (out.shape, ref.shape)
    assert jnp.allclose(out, ref, rtol=rtol, atol=atol), "mismatch vs reference"

    print("KERNEL_OK")
</pallas_src>

<mosaic_0001>
module attributes {stable_mosaic.version = 11 : i64} {
  func.func @k(%arg0: memref<8x128xf32, #tpu.memory_space<vmem>>, %arg1: memref<128x128xf32, #tpu.memory_space<vmem>>, %arg2: memref<8x128xf32, #tpu.memory_space<vmem>>) attributes {dimension_semantics = [], scalar_prefetch = 0 : i64, scratch_operands = 0 : i64, tpu.core_type = #tpu.core_type<tc>} {
    %c0 = arith.constant 0 : index
    %c0_0 = arith.constant 0 : index
    %0 = vector.load %arg0[%c0, %c0_0] : memref<8x128xf32, #tpu.memory_space<vmem>>, vector<8x128xf32>
    %c0_1 = arith.constant 0 : index
    %c0_2 = arith.constant 0 : index
    %1 = vector.load %arg1[%c0_1, %c0_2] : memref<128x128xf32, #tpu.memory_space<vmem>>, vector<128x128xf32>
    %cst = arith.constant dense<0.000000e+00> : vector<8x128xf32>
    %2 = tpu.matmul %0, %1, %cst {dimension_numbers = #tpu.dot_dimension_numbers<[1], [0], [0], [1], [0, 0, 1, 1], [], []>, precision = #tpu.contract_precision<fp32>} : vector<8x128xf32>, vector<128x128xf32>, vector<8x128xf32> -> vector<8x128xf32>
    %c0_3 = arith.constant 0 : index
    %c0_4 = arith.constant 0 : index
    %3 = vector.load %arg2[%c0_3, %c0_4] : memref<8x128xf32, #tpu.memory_space<vmem>>, vector<8x128xf32>
    tpu.vector_store %arg2[%c0_3, %c0_4], %2 {strides = array<i32>} : memref<8x128xf32, #tpu.memory_space<vmem>>, vector<8x128xf32>,
    return
  }
}

module attributes {stable_mosaic.version = 11 : i64} {
  func.func @tt_kernel(%arg0: i32, %arg1: memref<32x128xf32, #tpu.memory_space<vmem>>, %arg2: memref<720x32xf32, #tpu.memory_space<vmem>>, %arg3: memref<6x128xf32, #tpu.memory_space<vmem>>) attributes {dimension_semantics = [#tpu.dimension_semantics<parallel>], iteration_bounds = array<i64: 2>, scalar_prefetch = 0 : i64, scratch_operands = 0 : i64, tpu.core_type = #tpu.core_type<tc>, window_params = [{transform_indices = @transform_0, window_bounds = array<i64: 32, 128>}, {pipeline_mode = #tpu.pipeline_mode<synchronous>, transform_indices = @transform_1, window_bounds = array<i64: 720, 32>}, {transform_indices = @transform_2, window_bounds = array<i64: 6, 128>}]} {
    %c0 = arith.constant 0 : index
    %c0_0 = arith.constant 0 : index
    %0 = vector.load %arg2[%c0, %c0_0] : memref<720x32xf32, #tpu.memory_space<vmem>>, vector<720x32xf32>
    %c0_1 = arith.constant 0 : index
    %c0_2 = arith.constant 0 : index
    %1 = vector.load %arg1[%c0_1, %c0_2] : memref<32x128xf32, #tpu.memory_space<vmem>>, vector<32x128xf32>
    %cst = arith.constant dense<0.000000e+00> : vector<720x128xf32>
    %2 = tpu.matmul %0, %1, %cst {dimension_numbers = #tpu.dot_dimension_numbers<[1], [0], [0], [1], [0, 0, 1, 1], [], []>} : vector<720x32xf32>, vector<32x128xf32>, vector<720x128xf32> -> vector<720x128xf32>
    %3 = vector.extract_strided_slice %2 {offsets = [0, 0], sizes = [4, 128], strides = [1, 1]} : vector<720x128xf32> to vector<4x128xf32>
    %4 = vector.extract_strided_slice %2 {offsets = [8, 0], sizes = [16, 128], strides = [1, 1]} : vector<720x128xf32> to vector<16x128xf32>
    %5 = vector.extract_strided_slice %3 {offsets = [0, 0], sizes = [1, 128], strides = [1, 1]} : vector<4x128xf32> to vector<1x128xf32>
    %6 = vector.extract_strided_slice %4 {offsets = [0, 0], sizes = [4, 128], strides = [1, 1]} : vector<16x128xf32> to vector<4x128xf32>
    %7 = vector.broadcast %5 : vector<1x128xf32> to vector<4x128xf32>
    %8 = arith.mulf %7, %6 : vector<4x128xf32>
    %9 = vector.extract_strided_slice %3 {offsets = [1, 0], sizes = [1, 128], strides = [1, 1]} : vector<4x128xf32> to vector<1x128xf32>
    %10 = vector.extract_strided_slice %4 {offsets = [4, 0], sizes = [4, 128], strides = [1, 1]} : vector<16x128xf32> to vector<4x128xf32>
    %11 = vector.broadcast %9 : vector<1x128xf32> to vector<4x128xf32>
    %12 = arith.mulf %11, %10 : vector<4x128xf32>
    %13 = arith.addf %8, %12 : vector<4x128xf32>
    %14 = vector.extract_strided_slice %3 {offsets = [2, 0], sizes = [1, 128], strides = [1, 1]} : vector<4x128xf32> to vector<1x128xf32>
    %15 = vector.extract_strided_slice %4 {offsets = [8, 0], sizes = [4, 128], strides = [1, 1]} : vector<16x128xf32> to vector<4x128xf32>
    %16 = vector.broadcast %14 : vector<1x128xf32> to vector<4x128xf32>
    %17 = arith.mulf %16, %15 : vector<4x128xf32>
    %18 = arith.addf %13, %17 : vector<4x128xf32>
    %19 = vector.extract_strided_slice %3 {offsets = [3, 0], sizes = [1, 128], strides = [1, 1]} : vector<4x128xf32> to vector<1x128xf32>
    %20 = vector.extract_strided_slice %4 {offsets = [12, 0], sizes = [4, 128], strides = [1, 1]} : vector<16x128xf32> to vector<4x128xf32>
    %21 = vector.broadcast %19 : vector<1x128xf32> to vector<4x128xf32>
    %22 = arith.mulf %21, %20 : vector<4x128xf32>
    %23 = arith.addf %18, %22 : vector<4x128xf32>
    %24 = vector.extract_strided_slice %2 {offsets = [24, 0], sizes = [16, 128], strides = [1, 1]} : vector<720x128xf32> to vector<16x128xf32>
    %25 = vector.extract_strided_slice %23 {offsets = [0, 0], sizes = [1, 128], strides = [1, 1]} : vector<4x128xf32> to vector<1x128xf32>
    %26 = vector.extract_strided_slice %24 {offsets = [0, 0], sizes = [4, 128], strides = [1, 1]} : vector<16x128xf32> to vector<4x128xf32>
    %27 = vector.broadcast %25 : vector<1x128xf32> to vector<4x128xf32>
    %28 = arith.mulf %27, %26 : vector<4x128xf32>
    %29 = vector.extract_strided_slice %23 {offsets = [1, 0], sizes = [1, 128], strides = [1, 1]} : vector<4x128xf32> to vector<1x128xf32>
    %30 = vector.extract_strided_slice %24 {offsets = [4, 0], sizes = [4, 128], strides = [1, 1]} : vector<16x128xf32> to vector<4x128xf32>
    %31 = vector.broadcast %29 : vector<1x128xf32> to vector<4x128xf32>
    %32 = arith.mulf %31, %30 : vector<4x128xf32>
    %33 = arith.addf %28, %32 : vector<4x128xf32>
    %34 = vector.extract_strided_slice %23 {offsets = [2, 0], sizes = [1, 128], strides = [1, 1]} : vector<4x128xf32> to vector<1x128xf32>
    %35 = vector.extract_strided_slice %24 {offsets = [8, 0], sizes = [4, 128], strides = [1, 1]} : vector<16x128xf32> to vector<4x128xf32>
    %36 = vector.broadcast %34 : vector<1x128xf32> to vector<4x128xf32>
    %37 = arith.mulf %36, %35 : vector<4x128xf32>
    %38 = arith.addf %33, %37 : vector<4x128xf32>
    %39 = vector.extract_strided_slice %23 {offsets = [3, 0], sizes = [1, 128], strides = [1, 1]} : vector<4x128xf32> to vector<1x128xf32>
    %40 = vector.extract_strided_slice %24 {offsets = [12, 0], sizes = [4, 128], strides = [1, 1]} : vector<16x128xf32> to vector<4x128xf32>
    %41 = vector.broadcast %39 : vector<1x128xf32> to vector<4x128xf32>
    %42 = arith.mulf %41, %40 : vector<4x128xf32>
    %43 = arith.addf %38, %42 : vector<4x128xf32>
    %44 = vector.extract_strided_slice %2 {offsets = [40, 0], sizes = [16, 128], strides = [1, 1]} : vector<720x128xf32> to vector<16x128xf32>
    %45 = vector.extract_strided_slice %43 {offsets = [0, 0], sizes = [1, 128], strides = [1, 1]} : vector<4x128xf32> to vector<1x128xf32>
    %46 = vector.extract_strided_slice %44 {offsets = [0, 0], sizes = [4, 128], strides = [1, 1]} : vector<16x128xf32> to vector<4x128xf32>
    %47 = vector.broadcast %45 : vector<1x128xf32> to vector<4x128xf32>
    %48 = arith.mulf %47, %46 : vector<4x128xf32>
    %49 = vector.extract_strided_slice %43 {offsets = [1, 0], sizes = [1, 128], strides = [1, 1]} : vector<4x128xf32> to vector<1x128xf32>
    %50 = vector.extract_strided_slice %44 {offsets = [4, 0], sizes = [4, 128], strides = [1, 1]} : vector<16x128xf32> to vector<4x128xf32>
    %51 = vector.broadcast %49 : vector<1x128xf32> to vector<4x128xf32>
    %52 = arith.mulf %51, %50 : vector<4x128xf32>
    %53 = arith.addf %48, %52 : vector<4x128xf32>
    %54 = vector.extract_strided_slice %43 {offsets = [2, 0], sizes = [1, 128], strides = [1, 1]} : vector<4x128xf32> to vector<1x128xf32>
    %55 = vector.extract_strided_slice %44 {offsets = [8, 0], sizes = [4, 128], strides = [1, 1]} : vector<16x128xf32> to vector<4x128xf32>
    %56 = vector.broadcast %54 : vector<1x128xf32> to vector<4x128xf32>
    %57 = arith.mulf %56, %55 : vector<4x128xf32>
    %58 = arith.addf %53, %57 : vector<4x128xf32>
    %59 = vector.extract_strided_slice %43 {offsets = [3, 0], sizes = [1, 128], strides = [1, 1]} : vector<4x128xf32> to vector<1x128xf32>
    %60 = vector.extract_strided_slice %44 {offsets = [12, 0], sizes = [4, 128], strides = [1, 1]} : vector<16x128xf32> to vector<4x128xf32>
    %61 = vector.broadcast %59 : vector<1x128xf32> to vector<4x128xf32>
    %62 = arith.mulf %61, %60 : vector<4x128xf32>
    %63 = arith.addf %58, %62 : vector<4x128xf32>
    %64 = vector.extract_strided_slice %2 {offsets = [56, 0], sizes = [16, 128], strides = [1, 1]} : vector<720x128xf32> to vector<16x128xf32>
    %65 = vector.extract_strided_slice %63 {offsets = [0, 0], sizes = [1, 128], strides = [1, 1]} : vector<4x128xf32> to vector<1x128xf32>
    %66 = vector.extract_strided_slice %64 {offsets = [0, 0], sizes = [4, 128], strides = [1, 1]} : vector<16x128xf32> to vector<4x128xf32>
    %67 = vector.broadcast %65 : vector<1x128xf32> to vector<4x128xf32>
    %68 = arith.mulf %67, %66 : vector<4x128xf32>
    %69 = vector.extract_strided_slice %63 {offsets = [1, 0], sizes = [1, 128], strides = [1, 1]} : vector<4x128xf32> to vector<1x128xf32>
    %70 = vector.extract_strided_slice %64 {offsets = [4, 0], sizes = [4, 128], strides = [1, 1]} : vector<16x128xf32> to vector<4x128xf32>
    %71 = vector.broadcast %69 : vector<1x128xf32> to vector<4x128xf32>
    %72 = arith.mulf %71, %70 : vector<4x128xf32>
    %73 = arith.addf %68, %72 : vector<4x128xf32>
    %74 = vector.extract_strided_slice %63 {offsets = [2, 0], sizes = [1, 128], strides = [1, 1]} : vector<4x128xf32> to vector<1x128xf32>
    %75 = vector.extract_strided_slice %64 {offsets = [8, 0], sizes = [4, 128], strides = [1, 1]} : vector<16x128xf32> to vector<4x128xf32>
    %76 = vector.broadcast %74 : vector<1x128xf32> to vector<4x128xf32>
    %77 = arith.mulf %76, %75 : vector<4x128xf32>
    %78 = arith.addf %73, %77 : vector<4x128xf32>
    %79 = vector.extract_strided_slice %63 {offsets = [3, 0], sizes = [1, 128], strides = [1, 1]} : vector<4x128xf32> to vector<1x128xf32>
    %80 = vector.extract_strided_slice %64 {offsets = [12, 0], sizes = [4, 128], strides = [1, 1]} : vector<16x128xf32> to vector<4x128xf32>
    %81 = vector.broadcast %79 : vector<1x128xf32> to vector<4x128xf32>
    %82 = arith.mulf %81, %80 : vector<4x128xf32>
    %83 = arith.addf %78, %82 : vector<4x128xf32>
    %84 = vector.extract_strided_slice %2 {offsets = [72, 0], sizes = [16, 128], strides = [1, 1]} : vector<720x128xf32> to vector<16x128xf32>
    %85 = vector.extract_strided_slice %83 {offsets = [0, 0], sizes = [1, 128], strides = [1, 1]} : vector<4x128xf32> to vector<1x128xf32>
    %86 = vector.extract_strided_slice %84 {offsets = [0, 0], sizes = [4, 128], strides = [1, 1]} : vector<16x128xf32> to vector<4x128xf32>
    %87 = vector.broadcast %85 : vector<1x128xf32> to vector<4x128xf32>
    %88 = arith.mulf %87, %86 : vector<4x128xf32>
    %89 = vector.extract_strided_slice %83 {offsets = [1, 0], sizes = [1, 128], strides = [1, 1]} : vector<4x128xf32> to vector<1x128xf32>
    %90 = vector.extract_strided_slice %84 {offsets = [4, 0], sizes = [4, 128], strides = [1, 1]} : vector<16x128xf32> to vector<4x128xf32>
    %91 = vector.broadcast %89 : vector<1x128xf32> to vector<4x128xf32>
    %92 = arith.mulf %91, %90 : vector<4x128xf32>
    %93 = arith.addf %88, %92 : vector<4x128xf32>
    %94 = vector.extract_strided_slice %83 {offsets = [2, 0], sizes = [1, 128], strides = [1, 1]} : vector<4x128xf32> to vector<1x128xf32>
    %95 = vector.extract_strided_slice %84 {offsets = [8, 0], sizes = [4, 128], strides = [1, 1]} : vector<16x128xf32> to vector<4x128xf32>
    %96 = vector.broadcast %94 : vector<1x128xf32> to vector<4x128xf32>
    %97 = arith.mulf %96, %95 : vector<4x128xf32>
    %98 = arith.addf %93, %97 : vector<4x128xf32>
    %99 = vector.extract_strided_slice %83 {offsets = [3, 0], sizes = [1, 128], strides = [1, 1]} : vector<4x128xf32> to vector<1x128xf32>
    %100 = vector.extract_strided_slice %84 {offsets = [12, 0], sizes = [4, 128], strides = [1, 1]} : vector<16x128xf32> to vector<4x128xf32>
    %101 = vector.broadcast %99 : vector<1x128xf32> to vector<4x128xf32>
    %102 = arith.mulf %101, %100 : vector<4x128xf32>
    %103 = arith.addf %98, %102 : vector<4x128xf32>
    %104 = vector.extract_strided_slice %2 {offsets = [88, 0], sizes = [16, 128], strides = [1, 1]} : vector<720x128xf32> to vector<16x128xf32>
    %105 = vector.extract_strided_slice %103 {offsets = [0, 0], sizes = [1, 128], strides = [1, 1]} : vector<4x128xf32> to vector<1x128xf32>
    %106 = vector.extract_strided_slice %104 {offsets = [0, 0], sizes = [4, 128], strides = [1, 1]} : vector<16x128xf32> to vector<4x128xf32>
    %107 = vector.broadcast %105 : vector<1x128xf32> to vector<4x128xf32>
    %108 = arith.mulf %107, %106 : vector<4x128xf32>
    %109 = vector.extract_strided_slice %103 {offsets = [1, 0], sizes = [1, 128], strides = [1, 1]} : vector<4x128xf32> to vector<1x128xf32>
    %110 = vector.extract_strided_slice %104 {offsets = [4, 0], sizes = [4, 128], strides = [1, 1]} : vector<16x128xf32> to vector<4x128xf32>
    %111 = vector.broadcast %109 : vector<1x128xf32> to vector<4x128xf32>
    %112 = arith.mulf %111, %110 : vector<4x128xf32>
    %113 = arith.addf %108, %112 : vector<4x128xf32>
    %114 = vector.extract_strided_slice %103 {offsets = [2, 0], sizes = [1, 128], strides = [1, 1]} : vector<4x128xf32> to vector<1x128xf32>
    %115 = vector.extract_strided_slice %104 {offsets = [8, 0], sizes = [4, 128], strides = [1, 1]} : vector<16x128xf32> to vector<4x128xf32>
    %116 = vector.broadcast %114 : vector<1x128xf32> to vector<4x128xf32>
    %117 = arith.mulf %116, %115 : vector<4x128xf32>
    %118 = arith.addf %113, %117 : vector<4x128xf32>
    %119 = vector.extract_strided_slice %103 {offsets = [3, 0], sizes = [1, 128], strides = [1, 1]} : vector<4x128xf32> to vector<1x128xf32>
    %120 = vector.extract_strided_slice %104 {offsets = [12, 0], sizes = [4, 128], strides = [1, 1]} : vector<16x128xf32> to vector<4x128xf32>
    %121 = vector.broadcast %119 : vector<1x128xf32> to vector<4x128xf32>
    %122 = arith.mulf %121, %120 : vector<4x128xf32>
    %123 = arith.addf %118, %122 : vector<4x128xf32>
    %124 = vector.extract_strided_slice %2 {offsets = [104, 0], sizes = [16, 128], strides = [1, 1]} : vector<720x128xf32> to vector<16x128xf32>
    %125 = vector.extract_strided_slice %123 {offsets = [0, 0], sizes = [1, 128], strides = [1, 1]} : vector<4x128xf32> to vector<1x128xf32>
    %126 = vector.extract_strided_slice %124 {offsets = [0, 0], sizes = [4, 128], strides = [1, 1]} : vector<16x128xf32> to vector<4x128xf32>
    %127 = vector.broadcast %125 : vector<1x128xf32> to vector<4x128xf32>
    %128 = arith.mulf %127, %126 : vector<4x128xf32>
    %129 = vector.extract_strided_slice %123 {offsets = [1, 0], sizes = [1, 128], strides = [1, 1]} : vector<4x128xf32> to vector<1x128xf32>
    %130 = vector.extract_strided_slice %124 {offsets = [4, 0], sizes = [4, 128], strides = [1, 1]} : vector<16x128xf32> to vector<4x128xf32>
    %131 = vector.broadcast %129 : vector<1x128xf32> to vector<4x128xf32>
    %132 = arith.mulf %131, %130 : vector<4x128xf32>
    %133 = arith.addf %128, %132 : vector<4x128xf32>
    %134 = vector.extract_strided_slice %123 {offsets = [2, 0], sizes = [1, 128], strides = [1, 1]} : vector<4x128xf32> to vector<1x128xf32>
    %135 = vector.extract_strided_slice %124 {offsets = [8, 0], sizes = [4, 128], strides = [1, 1]} : vector<16x128xf32> to vector<4x128xf32>
    %136 = vector.broadcast %134 : vector<1x128xf32> to vector<4x128xf32>
    %137 = arith.mulf %136, %135 : vector<4x128xf32>
    %138 = arith.addf %133, %137 : vector<4x128xf32>
    %139 = vector.extract_strided_slice %123 {offsets = [3, 0], sizes = [1, 128], strides = [1, 1]} : vector<4x128xf32> to vector<1x128xf32>
    %140 = vector.extract_strided_slice %124 {offsets = [12, 0], sizes = [4, 128], strides = [1, 1]} : vector<16x128xf32> to vector<4x128xf32>
    %141 = vector.broadcast %139 : vector<1x128xf32> to vector<4x128xf32>
    %142 = arith.mulf %141, %140 : vector<4x128xf32>
    %143 = arith.addf %138, %142 : vector<4x128xf32>
    %144 = vector.extract_strided_slice %2 {offsets = [120, 0], sizes = [16, 128], strides = [1, 1]} : vector<720x128xf32> to vector<16x128xf32>
    %145 = vector.extract_strided_slice %143 {offsets = [0, 0], sizes = [1, 128], strides = [1, 1]} : vector<4x128xf32> to vector<1x128xf32>
    %146 = vector.extract_strided_slice %144 {offsets = [0, 0], sizes = [4, 128], strides = [1, 1]} : vector<16x128xf32> to vector<4x128xf32>
    %147 = vector.broadcast %145 : vector<1x128xf32> to vector<4x128xf32>
    %148 = arith.mulf %147, %146 : vector<4x128xf32>
    %149 = vector.extract_strided_slice %143 {offsets = [1, 0], sizes = [1, 128], strides = [1, 1]} : vector<4x128xf32> to vector<1x128xf32>
    %150 = vector.extract_strided_slice %144 {offsets = [4, 0], sizes = [4, 128], strides = [1, 1]} : vector<16x128xf32> to vector<4x128xf32>
    %151 = vector.broadcast %149 : vector<1x128xf32> to vector<4x128xf32>
    %152 = arith.mulf %151, %150 : vector<4x128xf32>
    %153 = arith.addf %148, %152 : vector<4x128xf32>
    %154 = vector.extract_strided_slice %143 {offsets = [2, 0], sizes = [1, 128], strides = [1, 1]} : vector<4x128xf32> to vector<1x128xf32>
    %155 = vector.extract_strided_slice %144 {offsets = [8, 0], sizes = [4, 128], strides = [1, 1]} : vector<16x128xf32> to vector<4x128xf32>
    %156 = vector.broadcast %154 : vector<1x128xf32> to vector<4x128xf32>
    %157 = arith.mulf %156, %155 : vector<4x128xf32>
    %158 = arith.addf %153, %157 : vector<4x128xf32>
    %159 = vector.extract_strided_slice %143 {offsets = [3, 0], sizes = [1, 128], strides = [1, 1]} : vector<4x128xf32> to vector<1x128xf32>
    %160 = vector.extract_strided_slice %144 {offsets = [12, 0], sizes = [4, 128], strides = [1, 1]} : vector<16x128xf32> to vector<4x128xf32>
    %161 = vector.broadcast %159 : vector<1x128xf32> to vector<4x128xf32>
    %162 = arith.mulf %161, %160 : vector<4x128xf32>
    %163 = arith.addf %158, %162 : vector<4x128xf32>
    %164 = vector.extract_strided_slice %2 {offsets = [136, 0], sizes = [16, 128], strides = [1, 1]} : vector<720x128xf32> to vector<16x128xf32>
    %165 = vector.extract_strided_slice %163 {offsets = [0, 0], sizes = [1, 128], strides = [1, 1]} : vector<4x128xf32> to vector<1x128xf32>
    %166 = vector.extract_strided_slice %164 {offsets = [0, 0], sizes = [4, 128], strides = [1, 1]} : vector<16x128xf32> to vector<4x128xf32>
    %167 = vector.broadcast %165 : vector<1x128xf32> to vector<4x128xf32>
    %168 = arith.mulf %167, %166 : vector<4x128xf32>
    %169 = vector.extract_strided_slice %163 {offsets = [1, 0], sizes = [1, 128], strides = [1, 1]} : vector<4x128xf32> to vector<1x128xf32>
    %170 = vector.extract_strided_slice %164 {offsets = [4, 0], sizes = [4, 128], strides = [1, 1]} : vector<16x128xf32> to vector<4x128xf32>
    %171 = vector.broadcast %169 : vector<1x128xf32> to vector<4x128xf32>
    %172 = arith.mulf %171, %170 : vector<4x128xf32>
    %173 = arith.addf %168, %172 : vector<4x128xf32>
    %174 = vector.extract_strided_slice %163 {offsets = [2, 0], sizes = [1, 128], strides = [1, 1]} : vector<4x128xf32> to vector<1x128xf32>
    %175 = vector.extract_strided_slice %164 {offsets = [8, 0], sizes = [4, 128], strides = [1, 1]} : vector<16x128xf32> to vector<4x128xf32>
    %176 = vector.broadcast %174 : vector<1x128xf32> to vector<4x128xf32>
    %177 = arith.mulf %176, %175 : vector<4x128xf32>
    %178 = arith.addf %173, %177 : vector<4x128xf32>
    %179 = vector.extract_strided_slice %163 {offsets = [3, 0], sizes = [1, 128], strides = [1, 1]} : vector<4x128xf32> to vector<1x128xf32>
    %180 = vector.extract_strided_slice %164 {offsets = [12, 0], sizes = [4, 128], strides = [1, 1]} : vector<16x128xf32> to vector<4x128xf32>
    %181 = vector.broadcast %179 : vector<1x128xf32> to vector<4x128xf32>
    %182 = arith.mulf %181, %180 : vector<4x128xf32>
    %183 = arith.addf %178, %182 : vector<4x128xf32>
    %184 = vector.extract_strided_slice %2 {offsets = [152, 0], sizes = [16, 128], strides = [1, 1]} : vector<720x128xf32> to vector<16x128xf32>
    %185 = vector.extract_strided_slice %183 {offsets = [0, 0], sizes = [1, 128], strides = [1, 1]} : vector<4x128xf32> to vector<1x128xf32>
    %186 = vector.extract_strided_slice %184 {offsets = [0, 0], sizes = [4, 128], strides = [1, 1]} : vector<16x128xf32> to vector<4x128xf32>
    %187 = vector.broadcast %185 : vector<1x128xf32> to vector<4x128xf32>
    %188 = arith.mulf %187, %186 : vector<4x128xf32>
    %189 = vector.extract_strided_slice %183 {offsets = [1, 0], sizes = [1, 128], strides = [1, 1]} : vector<4x128xf32> to vector<1x128xf32>
    %190 = vector.extract_strided_slice %184 {offsets = [4, 0], sizes = [4, 128], strides = [1, 1]} : vector<16x128xf32> to vector<4x128xf32>
    %191 = vector.broadcast %189 : vector<1x128xf32> to vector<4x128xf32>
    %192 = arith.mulf %191, %190 : vector<4x128xf32>
    %193 = arith.addf %188, %192 : vector<4x128xf32>
    %194 = vector.extract_strided_slice %183 {offsets = [2, 0], sizes = [1, 128], strides = [1, 1]} : vector<4x128xf32> to vector<1x128xf32>
    %195 = vector.extract_strided_slice %184 {offsets = [8, 0], sizes = [4, 128], strides = [1, 1]} : vector<16x128xf32> to vector<4x128xf32>
    %196 = vector.broadcast %194 : vector<1x128xf32> to vector<4x128xf32>
    %197 = arith.mulf %196, %195 : vector<4x128xf32>
    %198 = arith.addf %193, %197 : vector<4x128xf32>
    %199 = vector.extract_strided_slice %183 {offsets = [3, 0], sizes = [1, 128], strides = [1, 1]} : vector<4x128xf32> to vector<1x128xf32>
    %200 = vector.extract_strided_slice %184 {offsets = [12, 0], sizes = [4, 128], strides = [1, 1]} : vector<16x128xf32> to vector<4x128xf32>
    %201 = vector.broadcast %199 : vector<1x128xf32> to vector<4x128xf32>
    %202 = arith.mulf %201, %200 : vector<4x128xf32>
    %203 = arith.addf %198, %202 : vector<4x128xf32>
    %204 = vector.extract_strided_slice %2 {offsets = [168, 0], sizes = [16, 128], strides = [1, 1]} : vector<720x128xf32> to vector<16x128xf32>
    %205 = vector.extract_strided_slice %203 {offsets = [0, 0], sizes = [1, 128], strides = [1, 1]} : vector<4x128xf32> to vector<1x128xf32>
    %206 = vector.extract_strided_slice %204 {offsets = [0, 0], sizes = [4, 128], strides = [1, 1]} : vector<16x128xf32> to vector<4x128xf32>
    %207 = vector.broadcast %205 : vector<1x128xf32> to vector<4x128xf32>
    %208 = arith.mulf %207, %206 : vector<4x128xf32>
    %209 = vector.extract_strided_slice %203 {offsets = [1, 0], sizes = [1, 128], strides = [1, 1]} : vector<4x128xf32> to vector<1x128xf32>
    %210 = vector.extract_strided_slice %204 {offsets = [4, 0], sizes = [4, 128], strides = [1, 1]} : vector<16x128xf32> to vector<4x128xf32>
    %211 = vector.broadcast %209 : vector<1x128xf32> to vector<4x128xf32>
    %212 = arith.mulf %211, %210 : vector<4x128xf32>
    %213 = arith.addf %208, %212 : vector<4x128xf32>
    %214 = vector.extract_strided_slice %203 {offsets = [2, 0], sizes = [1, 128], strides = [1, 1]} : vector<4x128xf32> to vector<1x128xf32>
    %215 = vector.extract_strided_slice %204 {offsets = [8, 0], sizes = [4, 128], strides = [1, 1]} : vector<16x128xf32> to vector<4x128xf32>
    %216 = vector.broadcast %214 : vector<1x128xf32> to vector<4x128xf32>
    %217 = arith.mulf %216, %215 : vector<4x128xf32>
    %218 = arith.addf %213, %217 : vector<4x128xf32>
    %219 = vector.extract_strided_slice %203 {offsets = [3, 0], sizes = [1, 128], strides = [1, 1]} : vector<4x128xf32> to vector<1x128xf32>
    %220 = vector.extract_strided_slice %204 {offsets = [12, 0], sizes = [4, 128], strides = [1, 1]} : vector<16x128xf32> to vector<4x128xf32>
    %221 = vector.broadcast %219 : vector<1x128xf32> to vector<4x128xf32>
    %222 = arith.mulf %221, %220 : vector<4x128xf32>
    %223 = arith.addf %218, %222 : vector<4x128xf32>
    %224 = vector.extract_strided_slice %2 {offsets = [184, 0], sizes = [16, 128], strides = [1, 1]} : vector<720x128xf32> to vector<16x128xf32>
    %225 = vector.extract_strided_slice %223 {offsets = [0, 0], sizes = [1, 128], strides = [1, 1]} : vector<4x128xf32> to vector<1x128xf32>
    %226 = vector.extract_strided_slice %224 {offsets = [0, 0], sizes = [4, 128], strides = [1, 1]} : vector<16x128xf32> to vector<4x128xf32>
    %227 = vector.broadcast %225 : vector<1x128xf32> to vector<4x128xf32>
    %228 = arith.mulf %227, %226 : vector<4x128xf32>
    %229 = vector.extract_strided_slice %223 {offsets = [1, 0], sizes = [1, 128], strides = [1, 1]} : vector<4x128xf32> to vector<1x128xf32>
    %230 = vector.extract_strided_slice %224 {offsets = [4, 0], sizes = [4, 128], strides = [1, 1]} : vector<16x128xf32> to vector<4x128xf32>
    %231 = vector.broadcast %229 : vector<1x128xf32> to vector<4x128xf32>
    %232 = arith.mulf %231, %230 : vector<4x128xf32>
    %233 = arith.addf %228, %232 : vector<4x128xf32>
    %234 = vector.extract_strided_slice %223 {offsets = [2, 0], sizes = [1, 128], strides = [1, 1]} : vector<4x128xf32> to vector<1x128xf32>
    %235 = vector.extract_strided_slice %224 {offsets = [8, 0], sizes = [4, 128], strides = [1, 1]} : vector<16x128xf32> to vector<4x128xf32>
    %236 = vector.broadcast %234 : vector<1x128xf32> to vector<4x128xf32>
    %237 = arith.mulf %236, %235 : vector<4x128xf32>
    %238 = arith.addf %233, %237 : vector<4x128xf32>
    %239 = vector.extract_strided_slice %223 {offsets = [3, 0], sizes = [1, 128], strides = [1, 1]} : vector<4x128xf32> to vector<1x128xf32>
    %240 = vector.extract_strided_slice %224 {offsets = [12, 0], sizes = [4, 128], strides = [1, 1]} : vector<16x128xf32> to vector<4x128xf32>
    %241 = vector.broadcast %239 : vector<1x128xf32> to vector<4x128xf32>
    %242 = arith.mulf %241, %240 : vector<4x128xf32>
    %243 = arith.addf %238, %242 : vector<4x128xf32>
    %244 = vector.extract_strided_slice %2 {offsets = [200, 0], sizes = [16, 128], strides = [1, 1]} : vector<720x128xf32> to vector<16x128xf32>
    %245 = vector.extract_strided_slice %243 {offsets = [0, 0], sizes = [1, 128], strides = [1, 1]} : vector<4x128xf32> to vector<1x128xf32>
    %246 = vector.extract_strided_slice %244 {offsets = [0, 0], sizes = [4, 128], strides = [1, 1]} : vector<16x128xf32> to vector<4x128xf32>
    %247 = vector.broadcast %245 : vector<1x128xf32> to vector<4x128xf32>
    %248 = arith.mulf %247, %246 : vector<4x128xf32>
    %249 = vector.extract_strided_slice %243 {offsets = [1, 0], sizes = [1, 128], strides = [1, 1]} : vector<4x128xf32> to vector<1x128xf32>
    %250 = vector.extract_strided_slice %244 {offsets = [4, 0], sizes = [4, 128], strides = [1, 1]} : vector<16x128xf32> to vector<4x128xf32>
    %251 = vector.broadcast %249 : vector<1x128xf32> to vector<4x128xf32>
    %252 = arith.mulf %251, %250 : vector<4x128xf32>
    %253 = arith.addf %248, %252 : vector<4x128xf32>
    %254 = vector.extract_strided_slice %243 {offsets = [2, 0], sizes = [1, 128], strides = [1, 1]} : vector<4x128xf32> to vector<1x128xf32>
    %255 = vector.extract_strided_slice %244 {offsets = [8, 0], sizes = [4, 128], strides = [1, 1]} : vector<16x128xf32> to vector<4x128xf32>
    %256 = vector.broadcast %254 : vector<1x128xf32> to vector<4x128xf32>
    %257 = arith.mulf %256, %255 : vector<4x128xf32>
    %258 = arith.addf %253, %257 : vector<4x128xf32>
    %259 = vector.extract_strided_slice %243 {offsets = [3, 0], sizes = [1, 128], strides = [1, 1]} : vector<4x128xf32> to vector<1x128xf32>
    %260 = vector.extract_strided_slice %244 {offsets = [12, 0], sizes = [4, 128], strides = [1, 1]} : vector<16x128xf32> to vector<4x128xf32>
    %261 = vector.broadcast %259 : vector<1x128xf32> to vector<4x128xf32>
    %262 = arith.mulf %261, %260 : vector<4x128xf32>
    %263 = arith.addf %258, %262 : vector<4x128xf32>
    %264 = vector.extract_strided_slice %2 {offsets = [216, 0], sizes = [16, 128], strides = [1, 1]} : vector<720x128xf32> to vector<16x128xf32>
    %265 = vector.extract_strided_slice %263 {offsets = [0, 0], sizes = [1, 128], strides = [1, 1]} : vector<4x128xf32> to vector<1x128xf32>
    %266 = vector.extract_strided_slice %264 {offsets = [0, 0], sizes = [4, 128], strides = [1, 1]} : vector<16x128xf32> to vector<4x128xf32>
    %267 = vector.broadcast %265 : vector<1x128xf32> to vector<4x128xf32>
    %268 = arith.mulf %267, %266 : vector<4x128xf32>
    %269 = vector.extract_strided_slice %263 {offsets = [1, 0], sizes = [1, 128], strides = [1, 1]} : vector<4x128xf32> to vector<1x128xf32>
    %270 = vector.extract_strided_slice %264 {offsets = [4, 0], sizes = [4, 128], strides = [1, 1]} : vector<16x128xf32> to vector<4x128xf32>
    %271 = vector.broadcast %269 : vector<1x128xf32> to vector<4x128xf32>
    %272 = arith.mulf %271, %270 : vector<4x128xf32>
    %273 = arith.addf %268, %272 : vector<4x128xf32>
    %274 = vector.extract_strided_slice %263 {offsets = [2, 0], sizes = [1, 128], strides = [1, 1]} : vector<4x128xf32> to vector<1x128xf32>
    %275 = vector.extract_strided_slice %264 {offsets = [8, 0], sizes = [4, 128], strides = [1, 1]} : vector<16x128xf32> to vector<4x128xf32>
    %276 = vector.broadcast %274 : vector<1x128xf32> to vector<4x128xf32>
    %277 = arith.mulf %276, %275 : vector<4x128xf32>
    %278 = arith.addf %273, %277 : vector<4x128xf32>
    %279 = vector.extract_strided_slice %263 {offsets = [3, 0], sizes = [1, 128], strides = [1, 1]} : vector<4x128xf32> to vector<1x128xf32>
    %280 = vector.extract_strided_slice %264 {offsets = [12, 0], sizes = [4, 128], strides = [1, 1]} : vector<16x128xf32> to vector<4x128xf32>
    %281 = vector.broadcast %279 : vector<1x128xf32> to vector<4x128xf32>
    %282 = arith.mulf %281, %280 : vector<4x128xf32>
    %283 = arith.addf %278, %282 : vector<4x128xf32>
    %284 = vector.extract_strided_slice %2 {offsets = [232, 0], sizes = [8, 128], strides = [1, 1]} : vector<720x128xf32> to vector<8x128xf32>
    %285 = vector.extract_strided_slice %283 {offsets = [0, 0], sizes = [1, 128], strides = [1, 1]} : vector<4x128xf32> to vector<1x128xf32>
    %286 = vector.extract_strided_slice %284 {offsets = [0, 0], sizes = [2, 128], strides = [1, 1]} : vector<8x128xf32> to vector<2x128xf32>
    %287 = vector.broadcast %285 : vector<1x128xf32> to vector<2x128xf32>
    %288 = arith.mulf %287, %286 : vector<2x128xf32>
    %289 = vector.extract_strided_slice %283 {offsets = [1, 0], sizes = [1, 128], strides = [1, 1]} : vector<4x128xf32> to vector<1x128xf32>
    %290 = vector.extract_strided_slice %284 {offsets = [2, 0], sizes = [2, 128], strides = [1, 1]} : vector<8x128xf32> to vector<2x128xf32>
    %291 = vector.broadcast %289 : vector<1x128xf32> to vector<2x128xf32>
    %292 = arith.mulf %291, %290 : vector<2x128xf32>
    %293 = arith.addf %288, %292 : vector<2x128xf32>
    %294 = vector.extract_strided_slice %283 {offsets = [2, 0], sizes = [1, 128], strides = [1, 1]} : vector<4x128xf32> to vector<1x128xf32>
    %295 = vector.extract_strided_slice %284 {offsets = [4, 0], sizes = [2, 128], strides = [1, 1]} : vector<8x128xf32> to vector<2x128xf32>
    %296 = vector.broadcast %294 : vector<1x128xf32> to vector<2x128xf32>
    %297 = arith.mulf %296, %295 : vector<2x128xf32>
    %298 = arith.addf %293, %297 : vector<2x128xf32>
    %299 = vector.extract_strided_slice %283 {offsets = [3, 0], sizes = [1, 128], strides = [1, 1]} : vector<4x128xf32> to vector<1x128xf32>
    %300 = vector.extract_strided_slice %284 {offsets = [6, 0], sizes = [2, 128], strides = [1, 1]} : vector<8x128xf32> to vector<2x128xf32>
    %301 = vector.broadcast %299 : vector<1x128xf32> to vector<2x128xf32>
    %302 = arith.mulf %301, %300 : vector<2x128xf32>
    %303 = arith.addf %298, %302 : vector<2x128xf32>
    %304 = vector.extract_strided_slice %2 {offsets = [240, 0], sizes = [4, 128], strides = [1, 1]} : vector<720x128xf32> to vector<4x128xf32>
    %305 = vector.extract_strided_slice %2 {offsets = [248, 0], sizes = [16, 128], strides = [1, 1]} : vector<720x128xf32> to vector<16x128xf32>
    %306 = vector.extract_strided_slice %304 {offsets = [0, 0], sizes = [1, 128], strides = [1, 1]} : vector<4x128xf32> to vector<1x128xf32>
    %307 = vector.extract_strided_slice %305 {offsets = [0, 0], sizes = [4, 128], strides = [1, 1]} : vector<16x128xf32> to vector<4x128xf32>
    %308 = vector.broadcast %306 : vector<1x128xf32> to vector<4x128xf32>
    %309 = arith.mulf %308, %307 : vector<4x128xf32>
    %310 = vector.extract_strided_slice %304 {offsets = [1, 0], sizes = [1, 128], strides = [1, 1]} : vector<4x128xf32> to vector<1x128xf32>
    %311 = vector.extract_strided_slice %305 {offsets = [4, 0], sizes = [4, 128], strides = [1, 1]} : vector<16x128xf32> to vector<4x128xf32>
    %312 = vector.broadcast %310 : vector<1x128xf32> to vector<4x128xf32>
    %313 = arith.mulf %312, %311 : vector<4x128xf32>
    %314 = arith.addf %309, %313 : vector<4x128xf32>
    %315 = vector.extract_strided_slice %304 {offsets = [2, 0], sizes = [1, 128], strides = [1, 1]} : vector<4x128xf32> to vector<1x128xf32>
    %316 = vector.extract_strided_slice %305 {offsets = [8, 0], sizes = [4, 128], strides = [1, 1]} : vector<16x128xf32> to vector<4x128xf32>
    %317 = vector.broadcast %315 : vector<1x128xf32> to vector<4x128xf32>
    %318 = arith.mulf %317, %316 : vector<4x128xf32>
    %319 = arith.addf %314, %318 : vector<4x128xf32>
    %320 = vector.extract_strided_slice %304 {offsets = [3, 0], sizes = [1, 128], strides = [1, 1]} : vector<4x128xf32> to vector<1x128xf32>
    %321 = vector.extract_strided_slice %305 {offsets = [12, 0], sizes = [4, 128], strides = [1, 1]} : vector<16x128xf32> to vector<4x128xf32>
    %322 = vector.broadcast %320 : vector<1x128xf32> to vector<4x128xf32>
    %323 = arith.mulf %322, %321 : vector<4x128xf32>
    %324 = arith.addf %319, %323 : vector<4x128xf32>
    %325 = vector.extract_strided_slice %2 {offsets = [264, 0], sizes = [16, 128], strides = [1, 1]} : vector<720x128xf32> to vector<16x128xf32>
    %326 = vector.extract_strided_slice %324 {offsets = [0, 0], sizes = [1, 128], strides = [1, 1]} : vector<4x128xf32> to vector<1x128xf32>
    %327 = vector.extract_strided_slice %325 {offsets = [0, 0], sizes = [4, 128], strides = [1, 1]} : vector<16x128xf32> to vector<4x128xf32>
    %328 = vector.broadcast %326 : vector<1x128xf32> to vector<4x128xf32>
    %329 = arith.mulf %328, %327 : vector<4x128xf32>
    %330 = vector.extract_strided_slice %324 {offsets = [1, 0], sizes = [1, 128], strides = [1, 1]} : vector<4x128xf32> to vector<1x128xf32>
    %331 = vector.extract_strided_slice %325 {offsets = [4, 0], sizes = [4, 128], strides = [1, 1]} : vector<16x128xf32> to vector<4x128xf32>
    %332 = vector.broadcast %330 : vector<1x128xf32> to vector<4x128xf32>
    %333 = arith.mulf %332, %331 : vector<4x128xf32>
    %334 = arith.addf %329, %333 : vector<4x128xf32>
    %335 = vector.extract_strided_slice %324 {offsets = [2, 0], sizes = [1, 128], strides = [1, 1]} : vector<4x128xf32> to vector<1x128xf32>
    %336 = vector.extract_strided_slice %325 {offsets = [8, 0], sizes = [4, 128], strides = [1, 1]} : vector<16x128xf32> to vector<4x128xf32>
    %337 = vector.broadcast %335 : vector<1x128xf32> to vector<4x128xf32>
    %338 = arith.mulf %337, %336 : vector<4x128xf32>
    %339 = arith.addf %334, %338 : vector<4x128xf32>
    %340 = vector.extract_strided_slice %324 {offsets = [3, 0], sizes = [1, 128], strides = [1, 1]} : vector<4x128xf32> to vector<1x128xf32>
    %341 = vector.extract_strided_slice %325 {offsets = [12, 0], sizes = [4, 128], strides = [1, 1]} : vector<16x128xf32> to vector<4x128xf32>
    %342 = vector.broadcast %340 : vector<1x128xf32> to vector<4x128xf32>
    %343 = arith.mulf %342, %341 : vector<4x128xf32>
    %344 = arith.addf %339, %343 : vector<4x128xf32>
    %345 = vector.extract_strided_slice %2 {offsets = [280, 0], sizes = [16, 128], strides = [1, 1]} : vector<720x128xf32> to vector<16x128xf32>
    %346 = vector.extract_strided_slice %344 {offsets = [0, 0], sizes = [1, 128], strides = [1, 1]} : vector<4x128xf32> to vector<1x128xf32>
    %347 = vector.extract_strided_slice %345 {offsets = [0, 0], sizes = [4, 128], strides = [1, 1]} : vector<16x128xf32> to vector<4x128xf32>
    %348 = vector.broadcast %346 : vector<1x128xf32> to vector<4x128xf32>
    %349 = arith.mulf %348, %347 : vector<4x128xf32>
    %350 = vector.extract_strided_slice %344 {offsets = [1, 0], sizes = [1, 128], strides = [1, 1]} : vector<4x128xf32> to vector<1x128xf32>
    %351 = vector.extract_strided_slice %345 {offsets = [4, 0], sizes = [4, 128], strides = [1, 1]} : vector<16x128xf32> to vector<4x128xf32>
    %352 = vector.broadcast %350 : vector<1x128xf32> to vector<4x128xf32>
    %353 = arith.mulf %352, %351 : vector<4x128xf32>
    %354 = arith.addf %349, %353 : vector<4x128xf32>
    %355 = vector.extract_strided_slice %344 {offsets = [2, 0], sizes = [1, 128], strides = [1, 1]} : vector<4x128xf32> to vector<1x128xf32>
    %356 = vector.extract_strided_slice %345 {offsets = [8, 0], sizes = [4, 128], strides = [1, 1]} : vector<16x128xf32> to vector<4x128xf32>
    %357 = vector.broadcast %355 : vector<1x128xf32> to vector<4x128xf32>
    %358 = arith.mulf %357, %356 : vector<4x128xf32>
    %359 = arith.addf %354, %358 : vector<4x128xf32>
    %360 = vector.extract_strided_slice %344 {offsets = [3, 0], sizes = [1, 128], strides = [1, 1]} : vector<4x128xf32> to vector<1x128xf32>
    %361 = vector.extract_strided_slice %345 {offsets = [12, 0], sizes = [4, 128], strides = [1, 1]} : vector<16x128xf32> to vector<4x128xf32>
    %362 = vector.broadcast %360 : vector<1x128xf32> to vector<4x128xf32>
    %363 = arith.mulf %362, %361 : vector<4x128xf32>
    %364 = arith.addf %359, %363 : vector<4x128xf32>
    %365 = vector.extract_strided_slice %2 {offsets = [296, 0], sizes = [16, 128], strides = [1, 1]} : vector<720x128xf32> to vector<16x128xf32>
    %366 = vector.extract_strided_slice %364 {offsets = [0, 0], sizes = [1, 128], strides = [1, 1]} : vector<4x128xf32> to vector<1x128xf32>
    %367 = vector.extract_strided_slice %365 {offsets = [0, 0], sizes = [4, 128], strides = [1, 1]} : vector<16x128xf32> to vector<4x128xf32>
    %368 = vector.broadcast %366 : vector<1x128xf32> to vector<4x128xf32>
    %369 = arith.mulf %368, %367 : vector<4x128xf32>
    %370 = vector.extract_strided_slice %364 {offsets = [1, 0], sizes = [1, 128], strides = [1, 1]} : vector<4x128xf32> to vector<1x128xf32>
    %371 = vector.extract_strided_slice %365 {offsets = [4, 0], sizes = [4, 128], strides = [1, 1]} : vector<16x128xf32> to vector<4x128xf32>
    %372 = vector.broadcast %370 : vector<1x128xf32> to vector<4x128xf32>
    %373 = arith.mulf %372, %371 : vector<4x128xf32>
    %374 = arith.addf %369, %373 : vector<4x128xf32>
    %375 = vector.extract_strided_slice %364 {offsets = [2, 0], sizes = [1, 128], strides = [1, 1]} : vector<4x128xf32> to vector<1x128xf32>
    %376 = vector.extract_strided_slice %365 {offsets = [8, 0], sizes = [4, 128], strides = [1, 1]} : vector<16x128xf32> to vector<4x128xf32>
    %377 = vector.broadcast %375 : vector<1x128xf32> to vector<4x128xf32>
    %378 = arith.mulf %377, %376 : vector<4x128xf32>
    %379 = arith.addf %374, %378 : vector<4x128xf32>
    %380 = vector.extract_strided_slice %364 {offsets = [3, 0], sizes = [1, 128], strides = [1, 1]} : vector<4x128xf32> to vector<1x128xf32>
    %381 = vector.extract_strided_slice %365 {offsets = [12, 0], sizes = [4, 128], strides = [1, 1]} : vector<16x128xf32> to vector<4x128xf32>
    %382 = vector.broadcast %380 : vector<1x128xf32> to vector<4x128xf32>
    %383 = arith.mulf %382, %381 : vector<4x128xf32>
    %384 = arith.addf %379, %383 : vector<4x128xf32>
    %385 = vector.extract_strided_slice %2 {offsets = [312, 0], sizes = [16, 128], strides = [1, 1]} : vector<720x128xf32> to vector<16x128xf32>
    %386 = vector.extract_strided_slice %384 {offsets = [0, 0], sizes = [1, 128], strides = [1, 1]} : vector<4x128xf32> to vector<1x128xf32>
    %387 = vector.extract_strided_slice %385 {offsets = [0, 0], sizes = [4, 128], strides = [1, 1]} : vector<16x128xf32> to vector<4x128xf32>
    %388 = vector.broadcast %386 : vector<1x128xf32> to vector<4x128xf32>
    %389 = arith.mulf %388, %387 : vector<4x128xf32>
    %390 = vector.extract_strided_slice %384 {offsets = [1, 0], sizes = [1, 128], strides = [1, 1]} : vector<4x128xf32> to vector<1x128xf32>
    %391 = vector.extract_strided_slice %385 {offsets = [4, 0], sizes = [4, 128], strides = [1, 1]} : vector<16x128xf32> to vector<4x128xf32>
    %392 = vector.broadcast %390 : vector<1x128xf32> to vector<4x128xf32>
    %393 = arith.mulf %392, %391 : vector<4x128xf32>
    %394 = arith.addf %389, %393 : vector<4x128xf32>
    %395 = vector.extract_strided_slice %384 {offsets = [2, 0], sizes = [1, 128], strides = [1, 1]} : vector<4x128xf32> to vector<1x128xf32>
    %396 = vector.extract_strided_slice %385 {offsets = [8, 0], sizes = [4, 128], strides = [1, 1]} : vector<16x128xf32> to vector<4x128xf32>
    %397 = vector.broadcast %395 : vector<1x128xf32> to vector<4x128xf32>
    %398 = arith.mulf %397, %396 : vector<4x128xf32>
    %399 = arith.addf %394, %398 : vector<4x128xf32>
    %400 = vector.extract_strided_slice %384 {offsets = [3, 0], sizes = [1, 128], strides = [1, 1]} : vector<4x128xf32> to vector<1x128xf32>
    %401 = vector.extract_strided_slice %385 {offsets = [12, 0], sizes = [4, 128], strides = [1, 1]} : vector<16x128xf32> to vector<4x128xf32>
    %402 = vector.broadcast %400 : vector<1x128xf32> to vector<4x128xf32>
    %403 = arith.mulf %402, %401 : vector<4x128xf32>
    %404 = arith.addf %399, %403 : vector<4x128xf32>
    %405 = vector.extract_strided_slice %2 {offsets = [328, 0], sizes = [16, 128], strides = [1, 1]} : vector<720x128xf32> to vector<16x128xf32>
    %406 = vector.extract_strided_slice %404 {offsets = [0, 0], sizes = [1, 128], strides = [1, 1]} : vector<4x128xf32> to vector<1x128xf32>
    %407 = vector.extract_strided_slice %405 {offsets = [0, 0], sizes = [4, 128], strides = [1, 1]} : vector<16x128xf32> to vector<4x128xf32>
    %408 = vector.broadcast %406 : vector<1x128xf32> to vector<4x128xf32>
    %409 = arith.mulf %408, %407 : vector<4x128xf32>
    %410 = vector.extract_strided_slice %404 {offsets = [1, 0], sizes = [1, 128], strides = [1, 1]} : vector<4x128xf32> to vector<1x128xf32>
    %411 = vector.extract_strided_slice %405 {offsets = [4, 0], sizes = [4, 128], strides = [1, 1]} : vector<16x128xf32> to vector<4x128xf32>
    %412 = vector.broadcast %410 : vector<1x128xf32> to vector<4x128xf32>
    %413 = arith.mulf %412, %411 : vector<4x128xf32>
    %414 = arith.addf %409, %413 : vector<4x128xf32>
    %415 = vector.extract_strided_slice %404 {offsets = [2, 0], sizes = [1, 128], strides = [1, 1]} : vector<4x128xf32> to vector<1x128xf32>
    %416 = vector.extract_strided_slice %405 {offsets = [8, 0], sizes = [4, 128], strides = [1, 1]} : vector<16x128xf32> to vector<4x128xf32>
    %417 = vector.broadcast %415 : vector<1x128xf32> to vector<4x128xf32>
    %418 = arith.mulf %417, %416 : vector<4x128xf32>
    %419 = arith.addf %414, %418 : vector<4x128xf32>
    %420 = vector.extract_strided_slice %404 {offsets = [3, 0], sizes = [1, 128], strides = [1, 1]} : vector<4x128xf32> to vector<1x128xf32>
    %421 = vector.extract_strided_slice %405 {offsets = [12, 0], sizes = [4, 128], strides = [1, 1]} : vector<16x128xf32> to vector<4x128xf32>
    %422 = vector.broadcast %420 : vector<1x128xf32> to vector<4x128xf32>
    %423 = arith.mulf %422, %421 : vector<4x128xf32>
    %424 = arith.addf %419, %423 : vector<4x128xf32>
    %425 = vector.extract_strided_slice %2 {offsets = [344, 0], sizes = [16, 128], strides = [1, 1]} : vector<720x128xf32> to vector<16x128xf32>
    %426 = vector.extract_strided_slice %424 {offsets = [0, 0], sizes = [1, 128], strides = [1, 1]} : vector<4x128xf32> to vector<1x128xf32>
    %427 = vector.extract_strided_slice %425 {offsets = [0, 0], sizes = [4, 128], strides = [1, 1]} : vector<16x128xf32> to vector<4x128xf32>
    %428 = vector.broadcast %426 : vector<1x128xf32> to vector<4x128xf32>
    %429 = arith.mulf %428, %427 : vector<4x128xf32>
    %430 = vector.extract_strided_slice %424 {offsets = [1, 0], sizes = [1, 128], strides = [1, 1]} : vector<4x128xf32> to vector<1x128xf32>
    %431 = vector.extract_strided_slice %425 {offsets = [4, 0], sizes = [4, 128], strides = [1, 1]} : vector<16x128xf32> to vector<4x128xf32>
    %432 = vector.broadcast %430 : vector<1x128xf32> to vector<4x128xf32>
    %433 = arith.mulf %432, %431 : vector<4x128xf32>
    %434 = arith.addf %429, %433 : vector<4x128xf32>
    %435 = vector.extract_strided_slice %424 {offsets = [2, 0], sizes = [1, 128], strides = [1, 1]} : vector<4x128xf32> to vector<1x128xf32>
    %436 = vector.extract_strided_slice %425 {offsets = [8, 0], sizes = [4, 128], strides = [1, 1]} : vector<16x128xf32> to vector<4x128xf32>
    %437 = vector.broadcast %435 : vector<1x128xf32> to vector<4x128xf32>
    %438 = arith.mulf %437, %436 : vector<4x128xf32>
    %439 = arith.addf %434, %438 : vector<4x128xf32>
    %440 = vector.extract_strided_slice %424 {offsets = [3, 0], sizes = [1, 128], strides = [1, 1]} : vector<4x128xf32> to vector<1x128xf32>
    %441 = vector.extract_strided_slice %425 {offsets = [12, 0], sizes = [4, 128], strides = [1, 1]} : vector<16x128xf32> to vector<4x128xf32>
    %442 = vector.broadcast %440 : vector<1x128xf32> to vector<4x128xf32>
    %443 = arith.mulf %442, %441 : vector<4x128xf32>
    %444 = arith.addf %439, %443 : vector<4x128xf32>
    %445 = vector.extract_strided_slice %2 {offsets = [360, 0], sizes = [16, 128], strides = [1, 1]} : vector<720x128xf32> to vector<16x128xf32>
    %446 = vector.extract_strided_slice %444 {offsets = [0, 0], sizes = [1, 128], strides = [1, 1]} : vector<4x128xf32> to vector<1x128xf32>
    %447 = vector.extract_strided_slice %445 {offsets = [0, 0], sizes = [4, 128], strides = [1, 1]} : vector<16x128xf32> to vector<4x128xf32>
    %448 = vector.broadcast %446 : vector<1x128xf32> to vector<4x128xf32>
    %449 = arith.mulf %448, %447 : vector<4x128xf32>
    %450 = vector.extract_strided_slice %444 {offsets = [1, 0], sizes = [1, 128], strides = [1, 1]} : vector<4x128xf32> to vector<1x128xf32>
    %451 = vector.extract_strided_slice %445 {offsets = [4, 0], sizes = [4, 128], strides = [1, 1]} : vector<16x128xf32> to vector<4x128xf32>
    %452 = vector.broadcast %450 : vector<1x128xf32> to vector<4x128xf32>
    %453 = arith.mulf %452, %451 : vector<4x128xf32>
    %454 = arith.addf %449, %453 : vector<4x128xf32>
    %455 = vector.extract_strided_slice %444 {offsets = [2, 0], sizes = [1, 128], strides = [1, 1]} : vector<4x128xf32> to vector<1x128xf32>
    %456 = vector.extract_strided_slice %445 {offsets = [8, 0], sizes = [4, 128], strides = [1, 1]} : vector<16x128xf32> to vector<4x128xf32>
    %457 = vector.broadcast %455 : vector<1x128xf32> to vector<4x128xf32>
    %458 = arith.mulf %457, %456 : vector<4x128xf32>
    %459 = arith.addf %454, %458 : vector<4x128xf32>
    %460 = vector.extract_strided_slice %444 {offsets = [3, 0], sizes = [1, 128], strides = [1, 1]} : vector<4x128xf32> to vector<1x128xf32>
    %461 = vector.extract_strided_slice %445 {offsets = [12, 0], sizes = [4, 128], strides = [1, 1]} : vector<16x128xf32> to vector<4x128xf32>
    %462 = vector.broadcast %460 : vector<1x128xf32> to vector<4x128xf32>
    %463 = arith.mulf %462, %461 : vector<4x128xf32>
    %464 = arith.addf %459, %463 : vector<4x128xf32>
    %465 = vector.extract_strided_slice %2 {offsets = [376, 0], sizes = [16, 128], strides = [1, 1]} : vector<720x128xf32> to vector<16x128xf32>
    %466 = vector.extract_strided_slice %464 {offsets = [0, 0], sizes = [1, 128], strides = [1, 1]} : vector<4x128xf32> to vector<1x128xf32>
    %467 = vector.extract_strided_slice %465 {offsets = [0, 0], sizes = [4, 128], strides = [1, 1]} : vector<16x128xf32> to vector<4x128xf32>
    %468 = vector.broadcast %466 : vector<1x128xf32> to vector<4x128xf32>
    %469 = arith.mulf %468, %467 : vector<4x128xf32>
    %470 = vector.extract_strided_slice %464 {offsets = [1, 0], sizes = [1, 128], strides = [1, 1]} : vector<4x128xf32> to vector<1x128xf32>
    %471 = vector.extract_strided_slice %465 {offsets = [4, 0], sizes = [4, 128], strides = [1, 1]} : vector<16x128xf32> to vector<4x128xf32>
    %472 = vector.broadcast %470 : vector<1x128xf32> to vector<4x128xf32>
    %473 = arith.mulf %472, %471 : vector<4x128xf32>
    %474 = arith.addf %469, %473 : vector<4x128xf32>
    %475 = vector.extract_strided_slice %464 {offsets = [2, 0], sizes = [1, 128], strides = [1, 1]} : vector<4x128xf32> to vector<1x128xf32>
    %476 = vector.extract_strided_slice %465 {offsets = [8, 0], sizes = [4, 128], strides = [1, 1]} : vector<16x128xf32> to vector<4x128xf32>
    %477 = vector.broadcast %475 : vector<1x128xf32> to vector<4x128xf32>
    %478 = arith.mulf %477, %476 : vector<4x128xf32>
    %479 = arith.addf %474, %478 : vector<4x128xf32>
    %480 = vector.extract_strided_slice %464 {offsets = [3, 0], sizes = [1, 128], strides = [1, 1]} : vector<4x128xf32> to vector<1x128xf32>
    %481 = vector.extract_strided_slice %465 {offsets = [12, 0], sizes = [4, 128], strides = [1, 1]} : vector<16x128xf32> to vector<4x128xf32>
    %482 = vector.broadcast %480 : vector<1x128xf32> to vector<4x128xf32>
    %483 = arith.mulf %482, %481 : vector<4x128xf32>
    %484 = arith.addf %479, %483 : vector<4x128xf32>
    %485 = vector.extract_strided_slice %2 {offsets = [392, 0], sizes = [16, 128], strides = [1, 1]} : vector<720x128xf32> to vector<16x128xf32>
    %486 = vector.extract_strided_slice %484 {offsets = [0, 0], sizes = [1, 128], strides = [1, 1]} : vector<4x128xf32> to vector<1x128xf32>
    %487 = vector.extract_strided_slice %485 {offsets = [0, 0], sizes = [4, 128], strides = [1, 1]} : vector<16x128xf32> to vector<4x128xf32>
    %488 = vector.broadcast %486 : vector<1x128xf32> to vector<4x128xf32>
    %489 = arith.mulf %488, %487 : vector<4x128xf32>
    %490 = vector.extract_strided_slice %484 {offsets = [1, 0], sizes = [1, 128], strides = [1, 1]} : vector<4x128xf32> to vector<1x128xf32>
    %491 = vector.extract_strided_slice %485 {offsets = [4, 0], sizes = [4, 128], strides = [1, 1]} : vector<16x128xf32> to vector<4x128xf32>
    %492 = vector.broadcast %490 : vector<1x128xf32> to vector<4x128xf32>
    %493 = arith.mulf %492, %491 : vector<4x128xf32>
    %494 = arith.addf %489, %493 : vector<4x128xf32>
    %495 = vector.extract_strided_slice %484 {offsets = [2, 0], sizes = [1, 128], strides = [1, 1]} : vector<4x128xf32> to vector<1x128xf32>
    %496 = vector.extract_strided_slice %485 {offsets = [8, 0], sizes = [4, 128], strides = [1, 1]} : vector<16x128xf32> to vector<4x128xf32>
    %497 = vector.broadcast %495 : vector<1x128xf32> to vector<4x128xf32>
    %498 = arith.mulf %497, %496 : vector<4x128xf32>
    %499 = arith.addf %494, %498 : vector<4x128xf32>
    %500 = vector.extract_strided_slice %484 {offsets = [3, 0], sizes = [1, 128], strides = [1, 1]} : vector<4x128xf32> to vector<1x128xf32>
    %501 = vector.extract_strided_slice %485 {offsets = [12, 0], sizes = [4, 128], strides = [1, 1]} : vector<16x128xf32> to vector<4x128xf32>
    %502 = vector.broadcast %500 : vector<1x128xf32> to vector<4x128xf32>
    %503 = arith.mulf %502, %501 : vector<4x128xf32>
    %504 = arith.addf %499, %503 : vector<4x128xf32>
    %505 = vector.extract_strided_slice %2 {offsets = [408, 0], sizes = [16, 128], strides = [1, 1]} : vector<720x128xf32> to vector<16x128xf32>
    %506 = vector.extract_strided_slice %504 {offsets = [0, 0], sizes = [1, 128], strides = [1, 1]} : vector<4x128xf32> to vector<1x128xf32>
    %507 = vector.extract_strided_slice %505 {offsets = [0, 0], sizes = [4, 128], strides = [1, 1]} : vector<16x128xf32> to vector<4x128xf32>
    %508 = vector.broadcast %506 : vector<1x128xf32> to vector<4x128xf32>
    %509 = arith.mulf %508, %507 : vector<4x128xf32>
    %510 = vector.extract_strided_slice %504 {offsets = [1, 0], sizes = [1, 128], strides = [1, 1]} : vector<4x128xf32> to vector<1x128xf32>
    %511 = vector.extract_strided_slice %505 {offsets = [4, 0], sizes = [4, 128], strides = [1, 1]} : vector<16x128xf32> to vector<4x128xf32>
    %512 = vector.broadcast %510 : vector<1x128xf32> to vector<4x128xf32>
    %513 = arith.mulf %512, %511 : vector<4x128xf32>
    %514 = arith.addf %509, %513 : vector<4x128xf32>
    %515 = vector.extract_strided_slice %504 {offsets = [2, 0], sizes = [1, 128], strides = [1, 1]} : vector<4x128xf32> to vector<1x128xf32>
    %516 = vector.extract_strided_slice %505 {offsets = [8, 0], sizes = [4, 128], strides = [1, 1]} : vector<16x128xf32> to vector<4x128xf32>
    %517 = vector.broadcast %515 : vector<1x128xf32> to vector<4x128xf32>
    %518 = arith.mulf %517, %516 : vector<4x128xf32>
    %519 = arith.addf %514, %518 : vector<4x128xf32>
    %520 = vector.extract_strided_slice %504 {offsets = [3, 0], sizes = [1, 128], strides = [1, 1]} : vector<4x128xf32> to vector<1x128xf32>
    %521 = vector.extract_strided_slice %505 {offsets = [12, 0], sizes = [4, 128], strides = [1, 1]} : vector<16x128xf32> to vector<4x128xf32>
    %522 = vector.broadcast %520 : vector<1x128xf32> to vector<4x128xf32>
    %523 = arith.mulf %522, %521 : vector<4x128xf32>
    %524 = arith.addf %519, %523 : vector<4x128xf32>
    %525 = vector.extract_strided_slice %2 {offsets = [424, 0], sizes = [16, 128], strides = [1, 1]} : vector<720x128xf32> to vector<16x128xf32>
    %526 = vector.extract_strided_slice %524 {offsets = [0, 0], sizes = [1, 128], strides = [1, 1]} : vector<4x128xf32> to vector<1x128xf32>
    %527 = vector.extract_strided_slice %525 {offsets = [0, 0], sizes = [4, 128], strides = [1, 1]} : vector<16x128xf32> to vector<4x128xf32>
    %528 = vector.broadcast %526 : vector<1x128xf32> to vector<4x128xf32>
    %529 = arith.mulf %528, %527 : vector<4x128xf32>
    %530 = vector.extract_strided_slice %524 {offsets = [1, 0], sizes = [1, 128], strides = [1, 1]} : vector<4x128xf32> to vector<1x128xf32>
    %531 = vector.extract_strided_slice %525 {offsets = [4, 0], sizes = [4, 128], strides = [1, 1]} : vector<16x128xf32> to vector<4x128xf32>
    %532 = vector.broadcast %530 : vector<1x128xf32> to vector<4x128xf32>
    %533 = arith.mulf %532, %531 : vector<4x128xf32>
    %534 = arith.addf %529, %533 : vector<4x128xf32>
    %535 = vector.extract_strided_slice %524 {offsets = [2, 0], sizes = [1, 128], strides = [1, 1]} : vector<4x128xf32> to vector<1x128xf32>
    %536 = vector.extract_strided_slice %525 {offsets = [8, 0], sizes = [4, 128], strides = [1, 1]} : vector<16x128xf32> to vector<4x128xf32>
    %537 = vector.broadcast %535 : vector<1x128xf32> to vector<4x128xf32>
    %538 = arith.mulf %537, %536 : vector<4x128xf32>
    %539 = arith.addf %534, %538 : vector<4x128xf32>
    %540 = vector.extract_strided_slice %524 {offsets = [3, 0], sizes = [1, 128], strides = [1, 1]} : vector<4x128xf32> to vector<1x128xf32>
    %541 = vector.extract_strided_slice %525 {offsets = [12, 0], sizes = [4, 128], strides = [1, 1]} : vector<16x128xf32> to vector<4x128xf32>
    %542 = vector.broadcast %540 : vector<1x128xf32> to vector<4x128xf32>
    %543 = arith.mulf %542, %541 : vector<4x128xf32>
    %544 = arith.addf %539, %543 : vector<4x128xf32>
    %545 = vector.extract_strided_slice %2 {offsets = [440, 0], sizes = [16, 128], strides = [1, 1]} : vector<720x128xf32> to vector<16x128xf32>
    %546 = vector.extract_strided_slice %544 {offsets = [0, 0], sizes = [1, 128], strides = [1, 1]} : vector<4x128xf32> to vector<1x128xf32>
    %547 = vector.extract_strided_slice %545 {offsets = [0, 0], sizes = [4, 128], strides = [1, 1]} : vector<16x128xf32> to vector<4x128xf32>
    %548 = vector.broadcast %546 : vector<1x128xf32> to vector<4x128xf32>
    %549 = arith.mulf %548, %547 : vector<4x128xf32>
    %550 = vector.extract_strided_slice %544 {offsets = [1, 0], sizes = [1, 128], strides = [1, 1]} : vector<4x128xf32> to vector<1x128xf32>
    %551 = vector.extract_strided_slice %545 {offsets = [4, 0], sizes = [4, 128], strides = [1, 1]} : vector<16x128xf32> to vector<4x128xf32>
    %552 = vector.broadcast %550 : vector<1x128xf32> to vector<4x128xf32>
    %553 = arith.mulf %552, %551 : vector<4x128xf32>
    %554 = arith.addf %549, %553 : vector<4x128xf32>
    %555 = vector.extract_strided_slice %544 {offsets = [2, 0], sizes = [1, 128], strides = [1, 1]} : vector<4x128xf32> to vector<1x128xf32>
    %556 = vector.extract_strided_slice %545 {offsets = [8, 0], sizes = [4, 128], strides = [1, 1]} : vector<16x128xf32> to vector<4x128xf32>
    %557 = vector.broadcast %555 : vector<1x128xf32> to vector<4x128xf32>
    %558 = arith.mulf %557, %556 : vector<4x128xf32>
    %559 = arith.addf %554, %558 : vector<4x128xf32>
    %560 = vector.extract_strided_slice %544 {offsets = [3, 0], sizes = [1, 128], strides = [1, 1]} : vector<4x128xf32> to vector<1x128xf32>
    %561 = vector.extract_strided_slice %545 {offsets = [12, 0], sizes = [4, 128], strides = [1, 1]} : vector<16x128xf32> to vector<4x128xf32>
    %562 = vector.broadcast %560 : vector<1x128xf32> to vector<4x128xf32>
    %563 = arith.mulf %562, %561 : vector<4x128xf32>
    %564 = arith.addf %559, %563 : vector<4x128xf32>
    %565 = vector.extract_strided_slice %2 {offsets = [456, 0], sizes = [16, 128], strides = [1, 1]} : vector<720x128xf32> to vector<16x128xf32>
    %566 = vector.extract_strided_slice %564 {offsets = [0, 0], sizes = [1, 128], strides = [1, 1]} : vector<4x128xf32> to vector<1x128xf32>
    %567 = vector.extract_strided_slice %565 {offsets = [0, 0], sizes = [4, 128], strides = [1, 1]} : vector<16x128xf32> to vector<4x128xf32>
    %568 = vector.broadcast %566 : vector<1x128xf32> to vector<4x128xf32>
    %569 = arith.mulf %568, %567 : vector<4x128xf32>
    %570 = vector.extract_strided_slice %564 {offsets = [1, 0], sizes = [1, 128], strides = [1, 1]} : vector<4x128xf32> to vector<1x128xf32>
    %571 = vector.extract_strided_slice %565 {offsets = [4, 0], sizes = [4, 128], strides = [1, 1]} : vector<16x128xf32> to vector<4x128xf32>
    %572 = vector.broadcast %570 : vector<1x128xf32> to vector<4x128xf32>
    %573 = arith.mulf %572, %571 : vector<4x128xf32>
    %574 = arith.addf %569, %573 : vector<4x128xf32>
    %575 = vector.extract_strided_slice %564 {offsets = [2, 0], sizes = [1, 128], strides = [1, 1]} : vector<4x128xf32> to vector<1x128xf32>
    %576 = vector.extract_strided_slice %565 {offsets = [8, 0], sizes = [4, 128], strides = [1, 1]} : vector<16x128xf32> to vector<4x128xf32>
    %577 = vector.broadcast %575 : vector<1x128xf32> to vector<4x128xf32>
    %578 = arith.mulf %577, %576 : vector<4x128xf32>
    %579 = arith.addf %574, %578 : vector<4x128xf32>
    %580 = vector.extract_strided_slice %564 {offsets = [3, 0], sizes = [1, 128], strides = [1, 1]} : vector<4x128xf32> to vector<1x128xf32>
    %581 = vector.extract_strided_slice %565 {offsets = [12, 0], sizes = [4, 128], strides = [1, 1]} : vector<16x128xf32> to vector<4x128xf32>
    %582 = vector.broadcast %580 : vector<1x128xf32> to vector<4x128xf32>
    %583 = arith.mulf %582, %581 : vector<4x128xf32>
    %584 = arith.addf %579, %583 : vector<4x128xf32>
    %585 = vector.extract_strided_slice %2 {offsets = [472, 0], sizes = [8, 128], strides = [1, 1]} : vector<720x128xf32> to vector<8x128xf32>
    %586 = vector.extract_strided_slice %584 {offsets = [0, 0], sizes = [1, 128], strides = [1, 1]} : vector<4x128xf32> to vector<1x128xf32>
    %587 = vector.extract_strided_slice %585 {offsets = [0, 0], sizes = [2, 128], strides = [1, 1]} : vector<8x128xf32> to vector<2x128xf32>
    %588 = vector.broadcast %586 : vector<1x128xf32> to vector<2x128xf32>
    %589 = arith.mulf %588, %587 : vector<2x128xf32>
    %590 = vector.extract_strided_slice %584 {offsets = [1, 0], sizes = [1, 128], strides = [1, 1]} : vector<4x128xf32> to vector<1x128xf32>
    %591 = vector.extract_strided_slice %585 {offsets = [2, 0], sizes = [2, 128], strides = [1, 1]} : vector<8x128xf32> to vector<2x128xf32>
    %592 = vector.broadcast %590 : vector<1x128xf32> to vector<2x128xf32>
    %593 = arith.mulf %592, %591 : vector<2x128xf32>
    %594 = arith.addf %589, %593 : vector<2x128xf32>
    %595 = vector.extract_strided_slice %584 {offsets = [2, 0], sizes = [1, 128], strides = [1, 1]} : vector<4x128xf32> to vector<1x128xf32>
    %596 = vector.extract_strided_slice %585 {offsets = [4, 0], sizes = [2, 128], strides = [1, 1]} : vector<8x128xf32> to vector<2x128xf32>
    %597 = vector.broadcast %595 : vector<1x128xf32> to vector<2x128xf32>
    %598 = arith.mulf %597, %596 : vector<2x128xf32>
    %599 = arith.addf %594, %598 : vector<2x128xf32>
    %600 = vector.extract_strided_slice %584 {offsets = [3, 0], sizes = [1, 128], strides = [1, 1]} : vector<4x128xf32> to vector<1x128xf32>
    %601 = vector.extract_strided_slice %585 {offsets = [6, 0], sizes = [2, 128], strides = [1, 1]} : vector<8x128xf32> to vector<2x128xf32>
    %602 = vector.broadcast %600 : vector<1x128xf32> to vector<2x128xf32>
    %603 = arith.mulf %602, %601 : vector<2x128xf32>
    %604 = arith.addf %599, %603 : vector<2x128xf32>
    %605 = vector.extract_strided_slice %2 {offsets = [480, 0], sizes = [4, 128], strides = [1, 1]} : vector<720x128xf32> to vector<4x128xf32>
    %606 = vector.extract_strided_slice %2 {offsets = [488, 0], sizes = [16, 128], strides = [1, 1]} : vector<720x128xf32> to vector<16x128xf32>
    %607 = vector.extract_strided_slice %605 {offsets = [0, 0], sizes = [1, 128], strides = [1, 1]} : vector<4x128xf32> to vector<1x128xf32>
    %608 = vector.extract_strided_slice %606 {offsets = [0, 0], sizes = [4, 128], strides = [1, 1]} : vector<16x128xf32> to vector<4x128xf32>
    %609 = vector.broadcast %607 : vector<1x128xf32> to vector<4x128xf32>
    %610 = arith.mulf %609, %608 : vector<4x128xf32>
    %611 = vector.extract_strided_slice %605 {offsets = [1, 0], sizes = [1, 128], strides = [1, 1]} : vector<4x128xf32> to vector<1x128xf32>
    %612 = vector.extract_strided_slice %606 {offsets = [4, 0], sizes = [4, 128], strides = [1, 1]} : vector<16x128xf32> to vector<4x128xf32>
    %613 = vector.broadcast %611 : vector<1x128xf32> to vector<4x128xf32>
    %614 = arith.mulf %613, %612 : vector<4x128xf32>
    %615 = arith.addf %610, %614 : vector<4x128xf32>
    %616 = vector.extract_strided_slice %605 {offsets = [2, 0], sizes = [1, 128], strides = [1, 1]} : vector<4x128xf32> to vector<1x128xf32>
    %617 = vector.extract_strided_slice %606 {offsets = [8, 0], sizes = [4, 128], strides = [1, 1]} : vector<16x128xf32> to vector<4x128xf32>
    %618 = vector.broadcast %616 : vector<1x128xf32> to vector<4x128xf32>
    %619 = arith.mulf %618, %617 : vector<4x128xf32>
    %620 = arith.addf %615, %619 : vector<4x128xf32>
    %621 = vector.extract_strided_slice %605 {offsets = [3, 0], sizes = [1, 128], strides = [1, 1]} : vector<4x128xf32> to vector<1x128xf32>
    %622 = vector.extract_strided_slice %606 {offsets = [12, 0], sizes = [4, 128], strides = [1, 1]} : vector<16x128xf32> to vector<4x128xf32>
    %623 = vector.broadcast %621 : vector<1x128xf32> to vector<4x128xf32>
    %624 = arith.mulf %623, %622 : vector<4x128xf32>
    %625 = arith.addf %620, %624 : vector<4x128xf32>
    %626 = vector.extract_strided_slice %2 {offsets = [504, 0], sizes = [16, 128], strides = [1, 1]} : vector<720x128xf32> to vector<16x128xf32>
    %627 = vector.extract_strided_slice %625 {offsets = [0, 0], sizes = [1, 128], strides = [1, 1]} : vector<4x128xf32> to vector<1x128xf32>
    %628 = vector.extract_strided_slice %626 {offsets = [0, 0], sizes = [4, 128], strides = [1, 1]} : vector<16x128xf32> to vector<4x128xf32>
    %629 = vector.broadcast %627 : vector<1x128xf32> to vector<4x128xf32>
    %630 = arith.mulf %629, %628 : vector<4x128xf32>
    %631 = vector.extract_strided_slice %625 {offsets = [1, 0], sizes = [1, 128], strides = [1, 1]} : vector<4x128xf32> to vector<1x128xf32>
    %632 = vector.extract_strided_slice %626 {offsets = [4, 0], sizes = [4, 128], strides = [1, 1]} : vector<16x128xf32> to vector<4x128xf32>
    %633 = vector.broadcast %631 : vector<1x128xf32> to vector<4x128xf32>
    %634 = arith.mulf %633, %632 : vector<4x128xf32>
    %635 = arith.addf %630, %634 : vector<4x128xf32>
    %636 = vector.extract_strided_slice %625 {offsets = [2, 0], sizes = [1, 128], strides = [1, 1]} : vector<4x128xf32> to vector<1x128xf32>
    %637 = vector.extract_strided_slice %626 {offsets = [8, 0], sizes = [4, 128], strides = [1, 1]} : vector<16x128xf32> to vector<4x128xf32>
    %638 = vector.broadcast %636 : vector<1x128xf32> to vector<4x128xf32>
    %639 = arith.mulf %638, %637 : vector<4x128xf32>
    %640 = arith.addf %635, %639 : vector<4x128xf32>
    %641 = vector.extract_strided_slice %625 {offsets = [3, 0], sizes = [1, 128], strides = [1, 1]} : vector<4x128xf32> to vector<1x128xf32>
    %642 = vector.extract_strided_slice %626 {offsets = [12, 0], sizes = [4, 128], strides = [1, 1]} : vector<16x128xf32> to vector<4x128xf32>
    %643 = vector.broadcast %641 : vector<1x128xf32> to vector<4x128xf32>
    %644 = arith.mulf %643, %642 : vector<4x128xf32>
    %645 = arith.addf %640, %644 : vector<4x128xf32>
    %646 = vector.extract_strided_slice %2 {offsets = [520, 0], sizes = [16, 128], strides = [1, 1]} : vector<720x128xf32> to vector<16x128xf32>
    %647 = vector.extract_strided_slice %645 {offsets = [0, 0], sizes = [1, 128], strides = [1, 1]} : vector<4x128xf32> to vector<1x128xf32>
    %648 = vector.extract_strided_slice %646 {offsets = [0, 0], sizes = [4, 128], strides = [1, 1]} : vector<16x128xf32> to vector<4x128xf32>
    %649 = vector.broadcast %647 : vector<1x128xf32> to vector<4x128xf32>
    %650 = arith.mulf %649, %648 : vector<4x128xf32>
    %651 = vector.extract_strided_slice %645 {offsets = [1, 0], sizes = [1, 128], strides = [1, 1]} : vector<4x128xf32> to vector<1x128xf32>
    %652 = vector.extract_strided_slice %646 {offsets = [4, 0], sizes = [4, 128], strides = [1, 1]} : vector<16x128xf32> to vector<4x128xf32>
    %653 = vector.broadcast %651 : vector<1x128xf32> to vector<4x128xf32>
    %654 = arith.mulf %653, %652 : vector<4x128xf32>
    %655 = arith.addf %650, %654 : vector<4x128xf32>
    %656 = vector.extract_strided_slice %645 {offsets = [2, 0], sizes = [1, 128], strides = [1, 1]} : vector<4x128xf32> to vector<1x128xf32>
    %657 = vector.extract_strided_slice %646 {offsets = [8, 0], sizes = [4, 128], strides = [1, 1]} : vector<16x128xf32> to vector<4x128xf32>
    %658 = vector.broadcast %656 : vector<1x128xf32> to vector<4x128xf32>
    %659 = arith.mulf %658, %657 : vector<4x128xf32>
    %660 = arith.addf %655, %659 : vector<4x128xf32>
    %661 = vector.extract_strided_slice %645 {offsets = [3, 0], sizes = [1, 128], strides = [1, 1]} : vector<4x128xf32> to vector<1x128xf32>
    %662 = vector.extract_strided_slice %646 {offsets = [12, 0], sizes = [4, 128], strides = [1, 1]} : vector<16x128xf32> to vector<4x128xf32>
    %663 = vector.broadcast %661 : vector<1x128xf32> to vector<4x128xf32>
    %664 = arith.mulf %663, %662 : vector<4x128xf32>
    %665 = arith.addf %660, %664 : vector<4x128xf32>
    %666 = vector.extract_strided_slice %2 {offsets = [536, 0], sizes = [16, 128], strides = [1, 1]} : vector<720x128xf32> to vector<16x128xf32>
    %667 = vector.extract_strided_slice %665 {offsets = [0, 0], sizes = [1, 128], strides = [1, 1]} : vector<4x128xf32> to vector<1x128xf32>
    %668 = vector.extract_strided_slice %666 {offsets = [0, 0], sizes = [4, 128], strides = [1, 1]} : vector<16x128xf32> to vector<4x128xf32>
    %669 = vector.broadcast %667 : vector<1x128xf32> to vector<4x128xf32>
    %670 = arith.mulf %669, %668 : vector<4x128xf32>
    %671 = vector.extract_strided_slice %665 {offsets = [1, 0], sizes = [1, 128], strides = [1, 1]} : vector<4x128xf32> to vector<1x128xf32>
    %672 = vector.extract_strided_slice %666 {offsets = [4, 0], sizes = [4, 128], strides = [1, 1]} : vector<16x128xf32> to vector<4x128xf32>
    %673 = vector.broadcast %671 : vector<1x128xf32> to vector<4x128xf32>
    %674 = arith.mulf %673, %672 : vector<4x128xf32>
    %675 = arith.addf %670, %674 : vector<4x128xf32>
    %676 = vector.extract_strided_slice %665 {offsets = [2, 0], sizes = [1, 128], strides = [1, 1]} : vector<4x128xf32> to vector<1x128xf32>
    %677 = vector.extract_strided_slice %666 {offsets = [8, 0], sizes = [4, 128], strides = [1, 1]} : vector<16x128xf32> to vector<4x128xf32>
    %678 = vector.broadcast %676 : vector<1x128xf32> to vector<4x128xf32>
    %679 = arith.mulf %678, %677 : vector<4x128xf32>
    %680 = arith.addf %675, %679 : vector<4x128xf32>
    %681 = vector.extract_strided_slice %665 {offsets = [3, 0], sizes = [1, 128], strides = [1, 1]} : vector<4x128xf32> to vector<1x128xf32>
    %682 = vector.extract_strided_slice %666 {offsets = [12, 0], sizes = [4, 128], strides = [1, 1]} : vector<16x128xf32> to vector<4x128xf32>
    %683 = vector.broadcast %681 : vector<1x128xf32> to vector<4x128xf32>
    %684 = arith.mulf %683, %682 : vector<4x128xf32>
    %685 = arith.addf %680, %684 : vector<4x128xf32>
    %686 = vector.extract_strided_slice %2 {offsets = [552, 0], sizes = [16, 128], strides = [1, 1]} : vector<720x128xf32> to vector<16x128xf32>
    %687 = vector.extract_strided_slice %685 {offsets = [0, 0], sizes = [1, 128], strides = [1, 1]} : vector<4x128xf32> to vector<1x128xf32>
    %688 = vector.extract_strided_slice %686 {offsets = [0, 0], sizes = [4, 128], strides = [1, 1]} : vector<16x128xf32> to vector<4x128xf32>
    %689 = vector.broadcast %687 : vector<1x128xf32> to vector<4x128xf32>
    %690 = arith.mulf %689, %688 : vector<4x128xf32>
    %691 = vector.extract_strided_slice %685 {offsets = [1, 0], sizes = [1, 128], strides = [1, 1]} : vector<4x128xf32> to vector<1x128xf32>
    %692 = vector.extract_strided_slice %686 {offsets = [4, 0], sizes = [4, 128], strides = [1, 1]} : vector<16x128xf32> to vector<4x128xf32>
    %693 = vector.broadcast %691 : vector<1x128xf32> to vector<4x128xf32>
    %694 = arith.mulf %693, %692 : vector<4x128xf32>
    %695 = arith.addf %690, %694 : vector<4x128xf32>
    %696 = vector.extract_strided_slice %685 {offsets = [2, 0], sizes = [1, 128], strides = [1, 1]} : vector<4x128xf32> to vector<1x128xf32>
    %697 = vector.extract_strided_slice %686 {offsets = [8, 0], sizes = [4, 128], strides = [1, 1]} : vector<16x128xf32> to vector<4x128xf32>
    %698 = vector.broadcast %696 : vector<1x128xf32> to vector<4x128xf32>
    %699 = arith.mulf %698, %697 : vector<4x128xf32>
    %700 = arith.addf %695, %699 : vector<4x128xf32>
    %701 = vector.extract_strided_slice %685 {offsets = [3, 0], sizes = [1, 128], strides = [1, 1]} : vector<4x128xf32> to vector<1x128xf32>
    %702 = vector.extract_strided_slice %686 {offsets = [12, 0], sizes = [4, 128], strides = [1, 1]} : vector<16x128xf32> to vector<4x128xf32>
    %703 = vector.broadcast %701 : vector<1x128xf32> to vector<4x128xf32>
    %704 = arith.mulf %703, %702 : vector<4x128xf32>
    %705 = arith.addf %700, %704 : vector<4x128xf32>
    %706 = vector.extract_strided_slice %2 {offsets = [568, 0], sizes = [16, 128], strides = [1, 1]} : vector<720x128xf32> to vector<16x128xf32>
    %707 = vector.extract_strided_slice %705 {offsets = [0, 0], sizes = [1, 128], strides = [1, 1]} : vector<4x128xf32> to vector<1x128xf32>
    %708 = vector.extract_strided_slice %706 {offsets = [0, 0], sizes = [4, 128], strides = [1, 1]} : vector<16x128xf32> to vector<4x128xf32>
    %709 = vector.broadcast %707 : vector<1x128xf32> to vector<4x128xf32>
    %710 = arith.mulf %709, %708 : vector<4x128xf32>
    %711 = vector.extract_strided_slice %705 {offsets = [1, 0], sizes = [1, 128], strides = [1, 1]} : vector<4x128xf32> to vector<1x128xf32>
    %712 = vector.extract_strided_slice %706 {offsets = [4, 0], sizes = [4, 128], strides = [1, 1]} : vector<16x128xf32> to vector<4x128xf32>
    %713 = vector.broadcast %711 : vector<1x128xf32> to vector<4x128xf32>
    %714 = arith.mulf %713, %712 : vector<4x128xf32>
    %715 = arith.addf %710, %714 : vector<4x128xf32>
    %716 = vector.extract_strided_slice %705 {offsets = [2, 0], sizes = [1, 128], strides = [1, 1]} : vector<4x128xf32> to vector<1x128xf32>
    %717 = vector.extract_strided_slice %706 {offsets = [8, 0], sizes = [4, 128], strides = [1, 1]} : vector<16x128xf32> to vector<4x128xf32>
    %718 = vector.broadcast %716 : vector<1x128xf32> to vector<4x128xf32>
    %719 = arith.mulf %718, %717 : vector<4x128xf32>
    %720 = arith.addf %715, %719 : vector<4x128xf32>
    %721 = vector.extract_strided_slice %705 {offsets = [3, 0], sizes = [1, 128], strides = [1, 1]} : vector<4x128xf32> to vector<1x128xf32>
    %722 = vector.extract_strided_slice %706 {offsets = [12, 0], sizes = [4, 128], strides = [1, 1]} : vector<16x128xf32> to vector<4x128xf32>
    %723 = vector.broadcast %721 : vector<1x128xf32> to vector<4x128xf32>
    %724 = arith.mulf %723, %722 : vector<4x128xf32>
    %725 = arith.addf %720, %724 : vector<4x128xf32>
    %726 = vector.extract_strided_slice %2 {offsets = [584, 0], sizes = [16, 128], strides = [1, 1]} : vector<720x128xf32> to vector<16x128xf32>
    %727 = vector.extract_strided_slice %725 {offsets = [0, 0], sizes = [1, 128], strides = [1, 1]} : vector<4x128xf32> to vector<1x128xf32>
    %728 = vector.extract_strided_slice %726 {offsets = [0, 0], sizes = [4, 128], strides = [1, 1]} : vector<16x128xf32> to vector<4x128xf32>
    %729 = vector.broadcast %727 : vector<1x128xf32> to vector<4x128xf32>
    %730 = arith.mulf %729, %728 : vector<4x128xf32>
    %731 = vector.extract_strided_slice %725 {offsets = [1, 0], sizes = [1, 128], strides = [1, 1]} : vector<4x128xf32> to vector<1x128xf32>
    %732 = vector.extract_strided_slice %726 {offsets = [4, 0], sizes = [4, 128], strides = [1, 1]} : vector<16x128xf32> to vector<4x128xf32>
    %733 = vector.broadcast %731 : vector<1x128xf32> to vector<4x128xf32>
    %734 = arith.mulf %733, %732 : vector<4x128xf32>
    %735 = arith.addf %730, %734 : vector<4x128xf32>
    %736 = vector.extract_strided_slice %725 {offsets = [2, 0], sizes = [1, 128], strides = [1, 1]} : vector<4x128xf32> to vector<1x128xf32>
    %737 = vector.extract_strided_slice %726 {offsets = [8, 0], sizes = [4, 128], strides = [1, 1]} : vector<16x128xf32> to vector<4x128xf32>
    %738 = vector.broadcast %736 : vector<1x128xf32> to vector<4x128xf32>
    %739 = arith.mulf %738, %737 : vector<4x128xf32>
    %740 = arith.addf %735, %739 : vector<4x128xf32>
    %741 = vector.extract_strided_slice %725 {offsets = [3, 0], sizes = [1, 128], strides = [1, 1]} : vector<4x128xf32> to vector<1x128xf32>
    %742 = vector.extract_strided_slice %726 {offsets = [12, 0], sizes = [4, 128], strides = [1, 1]} : vector<16x128xf32> to vector<4x128xf32>
    %743 = vector.broadcast %741 : vector<1x128xf32> to vector<4x128xf32>
    %744 = arith.mulf %743, %742 : vector<4x128xf32>
    %745 = arith.addf %740, %744 : vector<4x128xf32>
    %746 = vector.extract_strided_slice %2 {offsets = [600, 0], sizes = [16, 128], strides = [1, 1]} : vector<720x128xf32> to vector<16x128xf32>
    %747 = vector.extract_strided_slice %745 {offsets = [0, 0], sizes = [1, 128], strides = [1, 1]} : vector<4x128xf32> to vector<1x128xf32>
    %748 = vector.extract_strided_slice %746 {offsets = [0, 0], sizes = [4, 128], strides = [1, 1]} : vector<16x128xf32> to vector<4x128xf32>
    %749 = vector.broadcast %747 : vector<1x128xf32> to vector<4x128xf32>
    %750 = arith.mulf %749, %748 : vector<4x128xf32>
    %751 = vector.extract_strided_slice %745 {offsets = [1, 0], sizes = [1, 128], strides = [1, 1]} : vector<4x128xf32> to vector<1x128xf32>
    %752 = vector.extract_strided_slice %746 {offsets = [4, 0], sizes = [4, 128], strides = [1, 1]} : vector<16x128xf32> to vector<4x128xf32>
    %753 = vector.broadcast %751 : vector<1x128xf32> to vector<4x128xf32>
    %754 = arith.mulf %753, %752 : vector<4x128xf32>
    %755 = arith.addf %750, %754 : vector<4x128xf32>
    %756 = vector.extract_strided_slice %745 {offsets = [2, 0], sizes = [1, 128], strides = [1, 1]} : vector<4x128xf32> to vector<1x128xf32>
    %757 = vector.extract_strided_slice %746 {offsets = [8, 0], sizes = [4, 128], strides = [1, 1]} : vector<16x128xf32> to vector<4x128xf32>
    %758 = vector.broadcast %756 : vector<1x128xf32> to vector<4x128xf32>
    %759 = arith.mulf %758, %757 : vector<4x128xf32>
    %760 = arith.addf %755, %759 : vector<4x128xf32>
    %761 = vector.extract_strided_slice %745 {offsets = [3, 0], sizes = [1, 128], strides = [1, 1]} : vector<4x128xf32> to vector<1x128xf32>
    %762 = vector.extract_strided_slice %746 {offsets = [12, 0], sizes = [4, 128], strides = [1, 1]} : vector<16x128xf32> to vector<4x128xf32>
    %763 = vector.broadcast %761 : vector<1x128xf32> to vector<4x128xf32>
    %764 = arith.mulf %763, %762 : vector<4x128xf32>
    %765 = arith.addf %760, %764 : vector<4x128xf32>
    %766 = vector.extract_strided_slice %2 {offsets = [616, 0], sizes = [16, 128], strides = [1, 1]} : vector<720x128xf32> to vector<16x128xf32>
    %767 = vector.extract_strided_slice %765 {offsets = [0, 0], sizes = [1, 128], strides = [1, 1]} : vector<4x128xf32> to vector<1x128xf32>
    %768 = vector.extract_strided_slice %766 {offsets = [0, 0], sizes = [4, 128], strides = [1, 1]} : vector<16x128xf32> to vector<4x128xf32>
    %769 = vector.broadcast %767 : vector<1x128xf32> to vector<4x128xf32>
    %770 = arith.mulf %769, %768 : vector<4x128xf32>
    %771 = vector.extract_strided_slice %765 {offsets = [1, 0], sizes = [1, 128], strides = [1, 1]} : vector<4x128xf32> to vector<1x128xf32>
    %772 = vector.extract_strided_slice %766 {offsets = [4, 0], sizes = [4, 128], strides = [1, 1]} : vector<16x128xf32> to vector<4x128xf32>
    %773 = vector.broadcast %771 : vector<1x128xf32> to vector<4x128xf32>
    %774 = arith.mulf %773, %772 : vector<4x128xf32>
    %775 = arith.addf %770, %774 : vector<4x128xf32>
    %776 = vector.extract_strided_slice %765 {offsets = [2, 0], sizes = [1, 128], strides = [1, 1]} : vector<4x128xf32> to vector<1x128xf32>
    %777 = vector.extract_strided_slice %766 {offsets = [8, 0], sizes = [4, 128], strides = [1, 1]} : vector<16x128xf32> to vector<4x128xf32>
    %778 = vector.broadcast %776 : vector<1x128xf32> to vector<4x128xf32>
    %779 = arith.mulf %778, %777 : vector<4x128xf32>
    %780 = arith.addf %775, %779 : vector<4x128xf32>
    %781 = vector.extract_strided_slice %765 {offsets = [3, 0], sizes = [1, 128], strides = [1, 1]} : vector<4x128xf32> to vector<1x128xf32>
    %782 = vector.extract_strided_slice %766 {offsets = [12, 0], sizes = [4, 128], strides = [1, 1]} : vector<16x128xf32> to vector<4x128xf32>
    %783 = vector.broadcast %781 : vector<1x128xf32> to vector<4x128xf32>
    %784 = arith.mulf %783, %782 : vector<4x128xf32>
    %785 = arith.addf %780, %784 : vector<4x128xf32>
    %786 = vector.extract_strided_slice %2 {offsets = [632, 0], sizes = [16, 128], strides = [1, 1]} : vector<720x128xf32> to vector<16x128xf32>
    %787 = vector.extract_strided_slice %785 {offsets = [0, 0], sizes = [1, 128], strides = [1, 1]} : vector<4x128xf32> to vector<1x128xf32>
    %788 = vector.extract_strided_slice %786 {offsets = [0, 0], sizes = [4, 128], strides = [1, 1]} : vector<16x128xf32> to vector<4x128xf32>
    %789 = vector.broadcast %787 : vector<1x128xf32> to vector<4x128xf32>
    %790 = arith.mulf %789, %788 : vector<4x128xf32>
    %791 = vector.extract_strided_slice %785 {offsets = [1, 0], sizes = [1, 128], strides = [1, 1]} : vector<4x128xf32> to vector<1x128xf32>
    %792 = vector.extract_strided_slice %786 {offsets = [4, 0], sizes = [4, 128], strides = [1, 1]} : vector<16x128xf32> to vector<4x128xf32>
    %793 = vector.broadcast %791 : vector<1x128xf32> to vector<4x128xf32>
    %794 = arith.mulf %793, %792 : vector<4x128xf32>
    %795 = arith.addf %790, %794 : vector<4x128xf32>
    %796 = vector.extract_strided_slice %785 {offsets = [2, 0], sizes = [1, 128], strides = [1, 1]} : vector<4x128xf32> to vector<1x128xf32>
    %797 = vector.extract_strided_slice %786 {offsets = [8, 0], sizes = [4, 128], strides = [1, 1]} : vector<16x128xf32> to vector<4x128xf32>
    %798 = vector.broadcast %796 : vector<1x128xf32> to vector<4x128xf32>
    %799 = arith.mulf %798, %797 : vector<4x128xf32>
    %800 = arith.addf %795, %799 : vector<4x128xf32>
    %801 = vector.extract_strided_slice %785 {offsets = [3, 0], sizes = [1, 128], strides = [1, 1]} : vector<4x128xf32> to vector<1x128xf32>
    %802 = vector.extract_strided_slice %786 {offsets = [12, 0], sizes = [4, 128], strides = [1, 1]} : vector<16x128xf32> to vector<4x128xf32>
    %803 = vector.broadcast %801 : vector<1x128xf32> to vector<4x128xf32>
    %804 = arith.mulf %803, %802 : vector<4x128xf32>
    %805 = arith.addf %800, %804 : vector<4x128xf32>
    %806 = vector.extract_strided_slice %2 {offsets = [648, 0], sizes = [16, 128], strides = [1, 1]} : vector<720x128xf32> to vector<16x128xf32>
    %807 = vector.extract_strided_slice %805 {offsets = [0, 0], sizes = [1, 128], strides = [1, 1]} : vector<4x128xf32> to vector<1x128xf32>
    %808 = vector.extract_strided_slice %806 {offsets = [0, 0], sizes = [4, 128], strides = [1, 1]} : vector<16x128xf32> to vector<4x128xf32>
    %809 = vector.broadcast %807 : vector<1x128xf32> to vector<4x128xf32>
    %810 = arith.mulf %809, %808 : vector<4x128xf32>
    %811 = vector.extract_strided_slice %805 {offsets = [1, 0], sizes = [1, 128], strides = [1, 1]} : vector<4x128xf32> to vector<1x128xf32>
    %812 = vector.extract_strided_slice %806 {offsets = [4, 0], sizes = [4, 128], strides = [1, 1]} : vector<16x128xf32> to vector<4x128xf32>
    %813 = vector.broadcast %811 : vector<1x128xf32> to vector<4x128xf32>
    %814 = arith.mulf %813, %812 : vector<4x128xf32>
    %815 = arith.addf %810, %814 : vector<4x128xf32>
    %816 = vector.extract_strided_slice %805 {offsets = [2, 0], sizes = [1, 128], strides = [1, 1]} : vector<4x128xf32> to vector<1x128xf32>
    %817 = vector.extract_strided_slice %806 {offsets = [8, 0], sizes = [4, 128], strides = [1, 1]} : vector<16x128xf32> to vector<4x128xf32>
    %818 = vector.broadcast %816 : vector<1x128xf32> to vector<4x128xf32>
    %819 = arith.mulf %818, %817 : vector<4x128xf32>
    %820 = arith.addf %815, %819 : vector<4x128xf32>
    %821 = vector.extract_strided_slice %805 {offsets = [3, 0], sizes = [1, 128], strides = [1, 1]} : vector<4x128xf32> to vector<1x128xf32>
    %822 = vector.extract_strided_slice %806 {offsets = [12, 0], sizes = [4, 128], strides = [1, 1]} : vector<16x128xf32> to vector<4x128xf32>
    %823 = vector.broadcast %821 : vector<1x128xf32> to vector<4x128xf32>
    %824 = arith.mulf %823, %822 : vector<4x128xf32>
    %825 = arith.addf %820, %824 : vector<4x128xf32>
    %826 = vector.extract_strided_slice %2 {offsets = [664, 0], sizes = [16, 128], strides = [1, 1]} : vector<720x128xf32> to vector<16x128xf32>
    %827 = vector.extract_strided_slice %825 {offsets = [0, 0], sizes = [1, 128], strides = [1, 1]} : vector<4x128xf32> to vector<1x128xf32>
    %828 = vector.extract_strided_slice %826 {offsets = [0, 0], sizes = [4, 128], strides = [1, 1]} : vector<16x128xf32> to vector<4x128xf32>
    %829 = vector.broadcast %827 : vector<1x128xf32> to vector<4x128xf32>
    %830 = arith.mulf %829, %828 : vector<4x128xf32>
    %831 = vector.extract_strided_slice %825 {offsets = [1, 0], sizes = [1, 128], strides = [1, 1]} : vector<4x128xf32> to vector<1x128xf32>
    %832 = vector.extract_strided_slice %826 {offsets = [4, 0], sizes = [4, 128], strides = [1, 1]} : vector<16x128xf32> to vector<4x128xf32>
    %833 = vector.broadcast %831 : vector<1x128xf32> to vector<4x128xf32>
    %834 = arith.mulf %833, %832 : vector<4x128xf32>
    %835 = arith.addf %830, %834 : vector<4x128xf32>
    %836 = vector.extract_strided_slice %825 {offsets = [2, 0], sizes = [1, 128], strides = [1, 1]} : vector<4x128xf32> to vector<1x128xf32>
    %837 = vector.extract_strided_slice %826 {offsets = [8, 0], sizes = [4, 128], strides = [1, 1]} : vector<16x128xf32> to vector<4x128xf32>
    %838 = vector.broadcast %836 : vector<1x128xf32> to vector<4x128xf32>
    %839 = arith.mulf %838, %837 : vector<4x128xf32>
    %840 = arith.addf %835, %839 : vector<4x128xf32>
    %841 = vector.extract_strided_slice %825 {offsets = [3, 0], sizes = [1, 128], strides = [1, 1]} : vector<4x128xf32> to vector<1x128xf32>
    %842 = vector.extract_strided_slice %826 {offsets = [12, 0], sizes = [4, 128], strides = [1, 1]} : vector<16x128xf32> to vector<4x128xf32>
    %843 = vector.broadcast %841 : vector<1x128xf32> to vector<4x128xf32>
    %844 = arith.mulf %843, %842 : vector<4x128xf32>
    %845 = arith.addf %840, %844 : vector<4x128xf32>
    %846 = vector.extract_strided_slice %2 {offsets = [680, 0], sizes = [16, 128], strides = [1, 1]} : vector<720x128xf32> to vector<16x128xf32>
    %847 = vector.extract_strided_slice %845 {offsets = [0, 0], sizes = [1, 128], strides = [1, 1]} : vector<4x128xf32> to vector<1x128xf32>
    %848 = vector.extract_strided_slice %846 {offsets = [0, 0], sizes = [4, 128], strides = [1, 1]} : vector<16x128xf32> to vector<4x128xf32>
    %849 = vector.broadcast %847 : vector<1x128xf32> to vector<4x128xf32>
    %850 = arith.mulf %849, %848 : vector<4x128xf32>
    %851 = vector.extract_strided_slice %845 {offsets = [1, 0], sizes = [1, 128], strides = [1, 1]} : vector<4x128xf32> to vector<1x128xf32>
    %852 = vector.extract_strided_slice %846 {offsets = [4, 0], sizes = [4, 128], strides = [1, 1]} : vector<16x128xf32> to vector<4x128xf32>
    %853 = vector.broadcast %851 : vector<1x128xf32> to vector<4x128xf32>
    %854 = arith.mulf %853, %852 : vector<4x128xf32>
    %855 = arith.addf %850, %854 : vector<4x128xf32>
    %856 = vector.extract_strided_slice %845 {offsets = [2, 0], sizes = [1, 128], strides = [1, 1]} : vector<4x128xf32> to vector<1x128xf32>
    %857 = vector.extract_strided_slice %846 {offsets = [8, 0], sizes = [4, 128], strides = [1, 1]} : vector<16x128xf32> to vector<4x128xf32>
    %858 = vector.broadcast %856 : vector<1x128xf32> to vector<4x128xf32>
    %859 = arith.mulf %858, %857 : vector<4x128xf32>
    %860 = arith.addf %855, %859 : vector<4x128xf32>
    %861 = vector.extract_strided_slice %845 {offsets = [3, 0], sizes = [1, 128], strides = [1, 1]} : vector<4x128xf32> to vector<1x128xf32>
    %862 = vector.extract_strided_slice %846 {offsets = [12, 0], sizes = [4, 128], strides = [1, 1]} : vector<16x128xf32> to vector<4x128xf32>
    %863 = vector.broadcast %861 : vector<1x128xf32> to vector<4x128xf32>
    %864 = arith.mulf %863, %862 : vector<4x128xf32>
    %865 = arith.addf %860, %864 : vector<4x128xf32>
    %866 = vector.extract_strided_slice %2 {offsets = [696, 0], sizes = [16, 128], strides = [1, 1]} : vector<720x128xf32> to vector<16x128xf32>
    %867 = vector.extract_strided_slice %865 {offsets = [0, 0], sizes = [1, 128], strides = [1, 1]} : vector<4x128xf32> to vector<1x128xf32>
    %868 = vector.extract_strided_slice %866 {offsets = [0, 0], sizes = [4, 128], strides = [1, 1]} : vector<16x128xf32> to vector<4x128xf32>
    %869 = vector.broadcast %867 : vector<1x128xf32> to vector<4x128xf32>
    %870 = arith.mulf %869, %868 : vector<4x128xf32>
    %871 = vector.extract_strided_slice %865 {offsets = [1, 0], sizes = [1, 128], strides = [1, 1]} : vector<4x128xf32> to vector<1x128xf32>
    %872 = vector.extract_strided_slice %866 {offsets = [4, 0], sizes = [4, 128], strides = [1, 1]} : vector<16x128xf32> to vector<4x128xf32>
    %873 = vector.broadcast %871 : vector<1x128xf32> to vector<4x128xf32>
    %874 = arith.mulf %873, %872 : vector<4x128xf32>
    %875 = arith.addf %870, %874 : vector<4x128xf32>
    %876 = vector.extract_strided_slice %865 {offsets = [2, 0], sizes = [1, 128], strides = [1, 1]} : vector<4x128xf32> to vector<1x128xf32>
    %877 = vector.extract_strided_slice %866 {offsets = [8, 0], sizes = [4, 128], strides = [1, 1]} : vector<16x128xf32> to vector<4x128xf32>
    %878 = vector.broadcast %876 : vector<1x128xf32> to vector<4x128xf32>
    %879 = arith.mulf %878, %877 : vector<4x128xf32>
    %880 = arith.addf %875, %879 : vector<4x128xf32>
    %881 = vector.extract_strided_slice %865 {offsets = [3, 0], sizes = [1, 128], strides = [1, 1]} : vector<4x128xf32> to vector<1x128xf32>
    %882 = vector.extract_strided_slice %866 {offsets = [12, 0], sizes = [4, 128], strides = [1, 1]} : vector<16x128xf32> to vector<4x128xf32>
    %883 = vector.broadcast %881 : vector<1x128xf32> to vector<4x128xf32>
    %884 = arith.mulf %883, %882 : vector<4x128xf32>
    %885 = arith.addf %880, %884 : vector<4x128xf32>
    %886 = vector.extract_strided_slice %2 {offsets = [712, 0], sizes = [8, 128], strides = [1, 1]} : vector<720x128xf32> to vector<8x128xf32>
    %887 = vector.extract_strided_slice %885 {offsets = [0, 0], sizes = [1, 128], strides = [1, 1]} : vector<4x128xf32> to vector<1x128xf32>
    %888 = vector.extract_strided_slice %886 {offsets = [0, 0], sizes = [2, 128], strides = [1, 1]} : vector<8x128xf32> to vector<2x128xf32>
    %889 = vector.broadcast %887 : vector<1x128xf32> to vector<2x128xf32>
    %890 = arith.mulf %889, %888 : vector<2x128xf32>
    %891 = vector.extract_strided_slice %885 {offsets = [1, 0], sizes = [1, 128], strides = [1, 1]} : vector<4x128xf32> to vector<1x128xf32>
    %892 = vector.extract_strided_slice %886 {offsets = [2, 0], sizes = [2, 128], strides = [1, 1]} : vector<8x128xf32> to vector<2x128xf32>
    %893 = vector.broadcast %891 : vector<1x128xf32> to vector<2x128xf32>
    %894 = arith.mulf %893, %892 : vector<2x128xf32>
    %895 = arith.addf %890, %894 : vector<2x128xf32>
    %896 = vector.extract_strided_slice %885 {offsets = [2, 0], sizes = [1, 128], strides = [1, 1]} : vector<4x128xf32> to vector<1x128xf32>
    %897 = vector.extract_strided_slice %886 {offsets = [4, 0], sizes = [2, 128], strides = [1, 1]} : vector<8x128xf32> to vector<2x128xf32>
    %898 = vector.broadcast %896 : vector<1x128xf32> to vector<2x128xf32>
    %899 = arith.mulf %898, %897 : vector<2x128xf32>
    %900 = arith.addf %895, %899 : vector<2x128xf32>
    %901 = vector.extract_strided_slice %885 {offsets = [3, 0], sizes = [1, 128], strides = [1, 1]} : vector<4x128xf32> to vector<1x128xf32>
    %902 = vector.extract_strided_slice %886 {offsets = [6, 0], sizes = [2, 128], strides = [1, 1]} : vector<8x128xf32> to vector<2x128xf32>
    %903 = vector.broadcast %901 : vector<1x128xf32> to vector<2x128xf32>
    %904 = arith.mulf %903, %902 : vector<2x128xf32>
    %905 = arith.addf %900, %904 : vector<2x128xf32>
    %906 = tpu.concatenate %303, %604, %905 in 0 : vector<2x128xf32>, vector<2x128xf32>, vector<2x128xf32> -> vector<6x128xf32>
    %c0_3 = arith.constant 0 : index
    %c0_4 = arith.constant 0 : index
    %907 = vector.load %arg3[%c0_3, %c0_4] : memref<6x128xf32, #tpu.memory_space<vmem>>, vector<6x128xf32>
    tpu.vector_store %arg3[%c0_3, %c0_4], %906 {strides = array<i32>} : memref<6x128xf32, #tpu.memory_space<vmem>>, vector<6x128xf32>,
    return
  }
  func.func @transform_0(%arg0: i32) -> (i32, i32) {
    %c0_i32 = arith.constant 0 : i32
    %c0_i32_0 = arith.constant 0 : i32
    return %c0_i32, %arg0 : i32, i32
  }
  func.func @transform_1(%arg0: i32) -> (i32, i32) {
    %c0_i32 = arith.constant 0 : i32
    %c0_i32_0 = arith.constant 0 : i32
    %c0_i32_1 = arith.constant 0 : i32
    return %c0_i32, %c0_i32_0 : i32, i32
  }
  func.func @transform_2(%arg0: i32) -> (i32, i32) {
    %c0_i32 = arith.constant 0 : i32
    %c0_i32_0 = arith.constant 0 : i32
    return %c0_i32, %arg0 : i32, i32
  }
}

</mosaic_0001>

<llo_original>
// kernel: tpu_custom_call.1
$region0: #{tpu_custom_call.1}
  #allocation0 [shape = 'u32[]', space=smem, size = 0x4, offset = 0x4, fixed_abs, tag = 'smem constant byte address 0x4 - core index']
  #allocation1 [shape = 'u32[72,128]{1,0:T(1,128)}', space=vmem, size = 0x9000, scoped, tag = 'internal scratch']
  %s0 = inlined_call_operand.hbm [shape: f32[8,128], index: 0, kind: input, shape index: {}]
  %s1 = inlined_call_operand.hbm [shape: f32[128,128], index: 1, kind: input, shape index: {}]
  %s2 = inlined_call_operand.hbm [shape: f32[8,128], index: 2, kind: output, shape index: {}]
  %s3 = sld [smem:[#allocation0]]
  $region26: #{tpu_custom_call.1} parent=0
    _
  %s5 = ssub.s32 1, %s3
  %s6 = scalar_select 0, %s5, %s3
  $region1: #{tpu_custom_call.1} parent=0
    #allocation2 [shape = 'u8[4096]{0}', space=vmem, size = 0x1000, scoped, tag = 'input window, operand 0, single buffered']
    #allocation3 [shape = 's32[1]{0}', space=sflag, size = 0x4, scoped, tag = 'scoped memory for tpu_custom_call.1']
    #allocation4 [shape = 's32[1]{0}', space=sflag, size = 0x4, scoped, tag = 'scoped memory for tpu_custom_call.1']
    #allocation5 [shape = 'u8[65536]{0}', space=vmem, size = 0x10000, scoped, tag = 'input window, operand 1, single buffered']
    #allocation6 [shape = 's32[1]{0}', space=sflag, size = 0x4, scoped, tag = 'scoped memory for tpu_custom_call.1']
    #allocation7 [shape = 'u8[4096]{0}', space=vmem, size = 0x1000, scoped, tag = 'output window, operand 0, single buffered']
    %7 = vsyncpa [#allocation3], 0
    %8 = vsyncpa [#allocation6], 0
    %9 = vsyncpa [#allocation4], 0
    // Predicated region
    $region2: #{tpu_custom_call.1} parent=1 // pred_check
      _
    $region3: #{tpu_custom_call.1} parent=1 // pred_check_branch
      %11 = sbr.rel (0) target = $region5
    $region4: #{tpu_custom_call.1} parent=1 // pred_region
      %13 = vsyncadd [#allocation3], 0
      %s15 = sshll.u32 %s0, 4
      %s16 = int_to_ptr.hbm [resolvable:$true] %s15
      %s17 = sshll.u32 [#allocation2], 4
      %s18 = int_to_ptr.vmem [resolvable:$true] %s17
      %20 = dma.hbm_to_vmem [thread:$0]  %s16, 128, %s18, [#allocation3]
    $region5: #{tpu_custom_call.1} parent=1 // pred_fallthru
      _
    // Predicated region
    $region6: #{tpu_custom_call.1} parent=1 // pred_check
      _
    $region7: #{tpu_custom_call.1} parent=1 // pred_check_branch
      %22 = sbr.rel (0) target = $region9
    $region8: #{tpu_custom_call.1} parent=1 // pred_region
      %24 = vsyncadd [#allocation6], 0
      %s25 = sshll.u32 %s1, 4
      %s26 = int_to_ptr.hbm [resolvable:$true] %s25
      %s27 = sshll.u32 [#allocation5], 4
      %s28 = int_to_ptr.vmem [resolvable:$true] %s27
      %33 = dma.hbm_to_vmem [thread:$0]  %s26, 2048, %s28, [#allocation6], 128, 128, 8
    $region9: #{tpu_custom_call.1} parent=1 // pred_fallthru
      _
    // Predicated region
    $region10: #{tpu_custom_call.1} parent=1 // pred_check
      _
    $region11: #{tpu_custom_call.1} parent=1 // pred_check_branch
      %35 = sbr.rel (0) target = $region13
    $region12: #{tpu_custom_call.1} parent=1 // pred_region
      %37 = dma.done [#allocation3], 128
    $region13: #{tpu_custom_call.1} parent=1 // pred_fallthru
      _
    // Predicated region
    $region14: #{tpu_custom_call.1} parent=1 // pred_check
      _
    $region15: #{tpu_custom_call.1} parent=1 // pred_check_branch
      %39 = sbr.rel (0) target = $region17
    $region16: #{tpu_custom_call.1} parent=1 // pred_region
      %41 = dma.done [#allocation6], 2048
    $region17: #{tpu_custom_call.1} parent=1 // pred_fallthru
      _
    %v42 = vld [vmem:[#allocation2] sm:$0xff]
    %v43 = vld [vmem:[#allocation5] sm:$0xff]
    %v44 = vld [vmem:[#allocation5 + $0x8] sm:$0xff]
    %v45 = vld [vmem:[#allocation5 + $0x10] sm:$0xff]
    %v46 = vld [vmem:[#allocation5 + $0x18] sm:$0xff]
    %v47 = vld [vmem:[#allocation5 + $0x20] sm:$0xff]
    %v48 = vld [vmem:[#allocation5 + $0x28] sm:$0xff]
    %v49 = vld [vmem:[#allocation5 + $0x30] sm:$0xff]
    %v50 = vld [vmem:[#allocation5 + $0x38] sm:$0xff]
    %v51 = vld [vmem:[#allocation5 + $0x40] sm:$0xff]
    %v52 = vld [vmem:[#allocation5 + $0x48] sm:$0xff]
    %v53 = vld [vmem:[#allocation5 + $0x50] sm:$0xff]
    %v54 = vld [vmem:[#allocation5 + $0x58] sm:$0xff]
    %v55 = vld [vmem:[#allocation5 + $0x60] sm:$0xff]
    %v56 = vld [vmem:[#allocation5 + $0x68] sm:$0xff]
    %v57 = vld [vmem:[#allocation5 + $0x70] sm:$0xff]
    %v58 = vld [vmem:[#allocation5 + $0x78] sm:$0xff]
    %v59 = vand.u32 %v58, 4294901760
    %60 = vmatpush.msra.mxu0 %v59
    %v61 = vand.u32 %v57, 4294901760
    %62 = vmatpush.msra.mxu0 %v61
    %v63 = vand.u32 %v56, 4294901760
    %64 = vmatpush.msra.mxu0 %v63
    %v65 = vand.u32 %v55, 4294901760
    %66 = vmatpush.msra.mxu0 %v65
    %v67 = vand.u32 %v54, 4294901760
    %68 = vmatpush.msra.mxu0 %v67
    %v69 = vand.u32 %v53, 4294901760
    %70 = vmatpush.msra.mxu0 %v69
    %v71 = vand.u32 %v52, 4294901760
    %72 = vmatpush.msra.mxu0 %v71
    %v73 = vand.u32 %v51, 4294901760
    %74 = vmatpush.msra.mxu0 %v73
    %v75 = vand.u32 %v50, 4294901760
    %76 = vmatpush.msra.mxu0 %v75
    %v77 = vand.u32 %v49, 4294901760
    %78 = vmatpush.msra.mxu0 %v77
    %v79 = vand.u32 %v48, 4294901760
    %80 = vmatpush.msra.mxu0 %v79
    %v81 = vand.u32 %v47, 4294901760
    %82 = vmatpush.msra.mxu0 %v81
    %v83 = vand.u32 %v46, 4294901760
    %84 = vmatpush.msra.mxu0 %v83
    %v85 = vand.u32 %v45, 4294901760
    %86 = vmatpush.msra.mxu0 %v85
    %v87 = vand.u32 %v44, 4294901760
    %88 = vmatpush.msra.mxu0 %v87
    %v89 = vand.u32 %v43, 4294901760
    %90 = vmatpush.msra.mxu0 %v89
    %v91 = vand.u32 %v42, 4294901760
    %v92 = vsub.f32 %v42, %v91
    %v93 = vand.u32 %v92, 4294901760
    %v94 = vsub.f32 %v92, %v93
    %v95 = vand.u32 %v94, 4294901760
    %96 = vmatmul.f32.gmra.mxu0 %v95
    %v97 = vpop.f32.mrf.mxu0
    %v98 = vadd.f32 0.0, %v97
    %99 = vdwg.mxu0
    %v100 = vand.u32 %v58, 4294901760
    %v101 = vsub.f32 %v58, %v100
    %v102 = vand.u32 %v101, 4294901760
    %v103 = vsub.f32 %v101, %v102
    %v104 = vand.u32 %v103, 4294901760
    %105 = vmatpush.msra.mxu0 %v104
    %v106 = vand.u32 %v57, 4294901760
    %v107 = vsub.f32 %v57, %v106
    %v108 = vand.u32 %v107, 4294901760
    %v109 = vsub.f32 %v107, %v108
    %v110 = vand.u32 %v109, 4294901760
    %111 = vmatpush.msra.mxu0 %v110
    %v112 = vand.u32 %v56, 4294901760
    %v113 = vsub.f32 %v56, %v112
    %v114 = vand.u32 %v113, 4294901760
    %v115 = vsub.f32 %v113, %v114
    %v116 = vand.u32 %v115, 4294901760
    %117 = vmatpush.msra.mxu0 %v116
    %v118 = vand.u32 %v55, 4294901760
    %v119 = vsub.f32 %v55, %v118
    %v120 = vand.u32 %v119, 4294901760
    %v121 = vsub.f32 %v119, %v120
    %v122 = vand.u32 %v121, 4294901760
    %123 = vmatpush.msra.mxu0 %v122
    %v124 = vand.u32 %v54, 4294901760
    %v125 = vsub.f32 %v54, %v124
    %v126 = vand.u32 %v125, 4294901760
    %v127 = vsub.f32 %v125, %v126
    %v128 = vand.u32 %v127, 4294901760
    %129 = vmatpush.msra.mxu0 %v128
    %v130 = vand.u32 %v53, 4294901760
    %v131 = vsub.f32 %v53, %v130
    %v132 = vand.u32 %v131, 4294901760
    %v133 = vsub.f32 %v131, %v132
    %v134 = vand.u32 %v133, 4294901760
    %135 = vmatpush.msra.mxu0 %v134
    %v136 = vand.u32 %v52, 4294901760
    %v137 = vsub.f32 %v52, %v136
    %v138 = vand.u32 %v137, 4294901760
    %v139 = vsub.f32 %v137, %v138
    %v140 = vand.u32 %v139, 4294901760
    %141 = vmatpush.msra.mxu0 %v140
    %v142 = vand.u32 %v51, 4294901760
    %v143 = vsub.f32 %v51, %v142
    %v144 = vand.u32 %v143, 4294901760
    %v145 = vsub.f32 %v143, %v144
    %v146 = vand.u32 %v145, 4294901760
    %147 = vmatpush.msra.mxu0 %v146
    %v148 = vand.u32 %v50, 4294901760
    %v149 = vsub.f32 %v50, %v148
    %v150 = vand.u32 %v149, 4294901760
    %v151 = vsub.f32 %v149, %v150
    %v152 = vand.u32 %v151, 4294901760
    %153 = vmatpush.msra.mxu0 %v152
    %v154 = vand.u32 %v49, 4294901760
    %v155 = vsub.f32 %v49, %v154
    %v156 = vand.u32 %v155, 4294901760
    %v157 = vsub.f32 %v155, %v156
    %v158 = vand.u32 %v157, 4294901760
    %159 = vmatpush.msra.mxu0 %v158
    %v160 = vand.u32 %v48, 4294901760
    %v161 = vsub.f32 %v48, %v160
    %v162 = vand.u32 %v161, 4294901760
    %v163 = vsub.f32 %v161, %v162
    %v164 = vand.u32 %v163, 4294901760
    %165 = vmatpush.msra.mxu0 %v164
    %v166 = vand.u32 %v47, 4294901760
    %v167 = vsub.f32 %v47, %v166
    %v168 = vand.u32 %v167, 4294901760
    %v169 = vsub.f32 %v167, %v168
    %v170 = vand.u32 %v169, 4294901760
    %171 = vmatpush.msra.mxu0 %v170
    %v172 = vand.u32 %v46, 4294901760
    %v173 = vsub.f32 %v46, %v172
    %v174 = vand.u32 %v173, 4294901760
    %v175 = vsub.f32 %v173, %v174
    %v176 = vand.u32 %v175, 4294901760
    %177 = vmatpush.msra.mxu0 %v176
    %v178 = vand.u32 %v45, 4294901760
    %v179 = vsub.f32 %v45, %v178
    %v180 = vand.u32 %v179, 4294901760
    %v181 = vsub.f32 %v179, %v180
    %v182 = vand.u32 %v181, 4294901760
    %183 = vmatpush.msra.mxu0 %v182
    %v184 = vand.u32 %v44, 4294901760
    %v185 = vsub.f32 %v44, %v184
    %v186 = vand.u32 %v185, 4294901760
    %v187 = vsub.f32 %v185, %v186
    %v188 = vand.u32 %v187, 4294901760
    %189 = vmatpush.msra.mxu0 %v188
    %v190 = vand.u32 %v43, 4294901760
    %v191 = vsub.f32 %v43, %v190
    %v192 = vand.u32 %v191, 4294901760
    %v193 = vsub.f32 %v191, %v192
    %v194 = vand.u32 %v193, 4294901760
    %195 = vmatpush.msra.mxu0 %v194
    %v196 = vand.u32 %v42, 4294901760
    %197 = vmatmul.f32.gmra.mxu0 %v196
    %v198 = vpop.f32.mrf.mxu0
    %v199 = vadd.f32 %v98, %v198
    %200 = vdwg.mxu0
    %v201 = vand.u32 %v58, 4294901760
    %v202 = vsub.f32 %v58, %v201
    %203 = vmatpush.msra.mxu0 %v202
    %v204 = vand.u32 %v57, 4294901760
    %v205 = vsub.f32 %v57, %v204
    %206 = vmatpush.msra.mxu0 %v205
    %v207 = vand.u32 %v56, 4294901760
    %v208 = vsub.f32 %v56, %v207
    %209 = vmatpush.msra.mxu0 %v208
    %v210 = vand.u32 %v55, 4294901760
    %v211 = vsub.f32 %v55, %v210
    %212 = vmatpush.msra.mxu0 %v211
    %v213 = vand.u32 %v54, 4294901760
    %v214 = vsub.f32 %v54, %v213
    %215 = vmatpush.msra.mxu0 %v214
    %v216 = vand.u32 %v53, 4294901760
    %v217 = vsub.f32 %v53, %v216
    %218 = vmatpush.msra.mxu0 %v217
    %v219 = vand.u32 %v52, 4294901760
    %v220 = vsub.f32 %v52, %v219
    %221 = vmatpush.msra.mxu0 %v220
    %v222 = vand.u32 %v51, 4294901760
    %v223 = vsub.f32 %v51, %v222
    %224 = vmatpush.msra.mxu0 %v223
    %v225 = vand.u32 %v50, 4294901760
    %v226 = vsub.f32 %v50, %v225
    %227 = vmatpush.msra.mxu0 %v226
    %v228 = vand.u32 %v49, 4294901760
    %v229 = vsub.f32 %v49, %v228
    %230 = vmatpush.msra.mxu0 %v229
    %v231 = vand.u32 %v48, 4294901760
    %v232 = vsub.f32 %v48, %v231
    %233 = vmatpush.msra.mxu0 %v232
    %v234 = vand.u32 %v47, 4294901760
    %v235 = vsub.f32 %v47, %v234
    %236 = vmatpush.msra.mxu0 %v235
    %v237 = vand.u32 %v46, 4294901760
    %v238 = vsub.f32 %v46, %v237
    %239 = vmatpush.msra.mxu0 %v238
    %v240 = vand.u32 %v45, 4294901760
    %v241 = vsub.f32 %v45, %v240
    %242 = vmatpush.msra.mxu0 %v241
    %v243 = vand.u32 %v44, 4294901760
    %v244 = vsub.f32 %v44, %v243
    %245 = vmatpush.msra.mxu0 %v244
    %v246 = vand.u32 %v43, 4294901760
    %v247 = vsub.f32 %v43, %v246
    %248 = vmatpush.msra.mxu0 %v247
    %v249 = vand.u32 %v42, 4294901760
    %v250 = vsub.f32 %v42, %v249
    %251 = vmatmul.f32.gmra.mxu0 %v250
    %v252 = vpop.f32.mrf.mxu0
    %v253 = vadd.f32 %v199, %v252
    %254 = vdwg.mxu0
    %v255 = vand.u32 %v58, 4294901760
    %256 = vmatpush.msra.mxu0 %v255
    %v257 = vand.u32 %v57, 4294901760
    %258 = vmatpush.msra.mxu0 %v257
    %v259 = vand.u32 %v56, 4294901760
    %260 = vmatpush.msra.mxu0 %v259
    %v261 = vand.u32 %v55, 4294901760
    %262 = vmatpush.msra.mxu0 %v261
    %v263 = vand.u32 %v54, 4294901760
    %264 = vmatpush.msra.mxu0 %v263
    %v265 = vand.u32 %v53, 4294901760
    %266 = vmatpush.msra.mxu0 %v265
    %v267 = vand.u32 %v52, 4294901760
    %268 = vmatpush.msra.mxu0 %v267
    %v269 = vand.u32 %v51, 4294901760
    %270 = vmatpush.msra.mxu0 %v269
    %v271 = vand.u32 %v50, 4294901760
    %272 = vmatpush.msra.mxu0 %v271
    %v273 = vand.u32 %v49, 4294901760
    %274 = vmatpush.msra.mxu0 %v273
    %v275 = vand.u32 %v48, 4294901760
    %276 = vmatpush.msra.mxu0 %v275
    %v277 = vand.u32 %v47, 4294901760
    %278 = vmatpush.msra.mxu0 %v277
    %v279 = vand.u32 %v46, 4294901760
    %280 = vmatpush.msra.mxu0 %v279
    %v281 = vand.u32 %v45, 4294901760
    %282 = vmatpush.msra.mxu0 %v281
    %v283 = vand.u32 %v44, 4294901760
    %284 = vmatpush.msra.mxu0 %v283
    %v285 = vand.u32 %v43, 4294901760
    %286 = vmatpush.msra.mxu0 %v285
    %v287 = vand.u32 %v42, 4294901760
    %v288 = vsub.f32 %v42, %v287
    %v289 = vand.u32 %v288, 4294901760
    %290 = vmatmul.f32.gmra.mxu0 %v289
    %v291 = vpop.f32.mrf.mxu0
    %v292 = vadd.f32 %v253, %v291
    %293 = vdwg.mxu0
    %v294 = vand.u32 %v58, 4294901760
    %v295 = vsub.f32 %v58, %v294
    %v296 = vand.u32 %v295, 4294901760
    %297 = vmatpush.msra.mxu0 %v296
    %v298 = vand.u32 %v57, 4294901760
    %v299 = vsub.f32 %v57, %v298
    %v300 = vand.u32 %v299, 4294901760
    %301 = vmatpush.msra.mxu0 %v300
    %v302 = vand.u32 %v56, 4294901760
    %v303 = vsub.f32 %v56, %v302
    %v304 = vand.u32 %v303, 4294901760
    %305 = vmatpush.msra.mxu0 %v304
    %v306 = vand.u32 %v55, 4294901760
    %v307 = vsub.f32 %v55, %v306
    %v308 = vand.u32 %v307, 4294901760
    %309 = vmatpush.msra.mxu0 %v308
    %v310 = vand.u32 %v54, 4294901760
    %v311 = vsub.f32 %v54, %v310
    %v312 = vand.u32 %v311, 4294901760
    %313 = vmatpush.msra.mxu0 %v312
    %v314 = vand.u32 %v53, 4294901760
    %v315 = vsub.f32 %v53, %v314
    %v316 = vand.u32 %v315, 4294901760
    %317 = vmatpush.msra.mxu0 %v316
    %v318 = vand.u32 %v52, 4294901760
    %v319 = vsub.f32 %v52, %v318
    %v320 = vand.u32 %v319, 4294901760
    %321 = vmatpush.msra.mxu0 %v320
    %v322 = vand.u32 %v51, 4294901760
    %v323 = vsub.f32 %v51, %v322
    %v324 = vand.u32 %v323, 4294901760
    %325 = vmatpush.msra.mxu0 %v324
    %v326 = vand.u32 %v50, 4294901760
    %v327 = vsub.f32 %v50, %v326
    %v328 = vand.u32 %v327, 4294901760
    %329 = vmatpush.msra.mxu0 %v328
    %v330 = vand.u32 %v49, 4294901760
    %v331 = vsub.f32 %v49, %v330
    %v332 = vand.u32 %v331, 4294901760
    %333 = vmatpush.msra.mxu0 %v332
    %v334 = vand.u32 %v48, 4294901760
    %v335 = vsub.f32 %v48, %v334
    %v336 = vand.u32 %v335, 4294901760
    %337 = vmatpush.msra.mxu0 %v336
    %v338 = vand.u32 %v47, 4294901760
    %v339 = vsub.f32 %v47, %v338
    %v340 = vand.u32 %v339, 4294901760
    %341 = vmatpush.msra.mxu0 %v340
    %v342 = vand.u32 %v46, 4294901760
    %v343 = vsub.f32 %v46, %v342
    %v344 = vand.u32 %v343, 4294901760
    %345 = vmatpush.msra.mxu0 %v344
    %v346 = vand.u32 %v45, 4294901760
    %v347 = vsub.f32 %v45, %v346
    %v348 = vand.u32 %v347, 4294901760
    %349 = vmatpush.msra.mxu0 %v348
    %v350 = vand.u32 %v44, 4294901760
    %v351 = vsub.f32 %v44, %v350
    %v352 = vand.u32 %v351, 4294901760
    %353 = vmatpush.msra.mxu0 %v352
    %v354 = vand.u32 %v43, 4294901760
    %v355 = vsub.f32 %v43, %v354
    %v356 = vand.u32 %v355, 4294901760
    %357 = vmatpush.msra.mxu0 %v356
    %v358 = vand.u32 %v42, 4294901760
    %359 = vmatmul.f32.gmra.mxu0 %v358
    %v360 = vpop.f32.mrf.mxu0
    %v361 = vadd.f32 %v292, %v360
    %362 = vdwg.mxu0
    %v363 = vand.u32 %v58, 4294901760
    %364 = vmatpush.msra.mxu0 %v363
    %v365 = vand.u32 %v57, 4294901760
    %366 = vmatpush.msra.mxu0 %v365
    %v367 = vand.u32 %v56, 4294901760
    %368 = vmatpush.msra.mxu0 %v367
    %v369 = vand.u32 %v55, 4294901760
    %370 = vmatpush.msra.mxu0 %v369
    %v371 = vand.u32 %v54, 4294901760
    %372 = vmatpush.msra.mxu0 %v371
    %v373 = vand.u32 %v53, 4294901760
    %374 = vmatpush.msra.mxu0 %v373
    %v375 = vand.u32 %v52, 4294901760
    %376 = vmatpush.msra.mxu0 %v375
    %v377 = vand.u32 %v51, 4294901760
    %378 = vmatpush.msra.mxu0 %v377
    %v379 = vand.u32 %v50, 4294901760
    %380 = vmatpush.msra.mxu0 %v379
    %v381 = vand.u32 %v49, 4294901760
    %382 = vmatpush.msra.mxu0 %v381
    %v383 = vand.u32 %v48, 4294901760
    %384 = vmatpush.msra.mxu0 %v383
    %v385 = vand.u32 %v47, 4294901760
    %386 = vmatpush.msra.mxu0 %v385
    %v387 = vand.u32 %v46, 4294901760
    %388 = vmatpush.msra.mxu0 %v387
    %v389 = vand.u32 %v45, 4294901760
    %390 = vmatpush.msra.mxu0 %v389
    %v391 = vand.u32 %v44, 4294901760
    %392 = vmatpush.msra.mxu0 %v391
    %v393 = vand.u32 %v43, 4294901760
    %394 = vmatpush.msra.mxu0 %v393
    %v395 = vand.u32 %v42, 4294901760
    %396 = vmatmul.f32.gmra.mxu0 %v395
    %v397 = vpop.f32.mrf.mxu0
    %v398 = vadd.f32 %v361, %v397
    %399 = vdwg.mxu0
    %400 = vst [vmem:[#allocation7] sm:$0xff] %v398
    // Predicated region
    $region18: #{tpu_custom_call.1} parent=1 // pred_check
      _
    $region19: #{tpu_custom_call.1} parent=1 // pred_check_branch
      %402 = sbr.rel (0) target = $region21
    $region20: #{tpu_custom_call.1} parent=1 // pred_region
      %404 = vsyncadd [#allocation4], 0
      %s406 = sshll.u32 [#allocation7], 4
      %s407 = int_to_ptr.vmem [resolvable:$true] %s406
      %s408 = sshll.u32 %s2, 4
      %s409 = int_to_ptr.hbm [resolvable:$true] %s408
      %411 = dma.vmem_to_hbm [thread:$0]  %s407, 128, %s409, [#allocation4]
    $region21: #{tpu_custom_call.1} parent=1 // pred_fallthru
      _
    // Predicated region
    $region22: #{tpu_custom_call.1} parent=1 // pred_check
      _
    $region23: #{tpu_custom_call.1} parent=1 // pred_check_branch
      %413 = sbr.rel (0) target = $region25
    $region24: #{tpu_custom_call.1} parent=1 // pred_region
      %415 = dma.done [#allocation4], 128
    $region25: #{tpu_custom_call.1} parent=1 // pred_fallthru
      _
    %416 = vsyncpa [#allocation3], 1
    %417 = vsyncpa [#allocation6], 1
    %418 = vsyncpa [#allocation4], 1

// kernel: tpu_custom_call.1
$region0: #{tpu_custom_call.1}
  #allocation0 [shape = 'u32[]', space=smem, size = 0x4, offset = 0x4, fixed_abs, tag = 'smem constant byte address 0x4 - core index']
  #allocation1 [shape = 'u32[72,128]{1,0:T(1,128)}', space=vmem, size = 0x9000, scoped, tag = 'internal scratch']
  %s0 = inlined_call_operand.vmem [shape: f32[32,256], index: 0, kind: input, shape index: {}]
  %s1 = inlined_call_operand.vmem [shape: f32[720,32], index: 1, kind: input, shape index: {}]
  %s2 = inlined_call_operand.hbm [shape: f32[6,256], index: 2, kind: output, shape index: {}]
  %s3 = sld [smem:[#allocation0]]
  $region79: #{tpu_custom_call.1} parent=0
    _
  %s5 = ssub.s32 1, %s3
  %s6 = scalar_select 0, %s5, %s3
  $region1: #{tpu_custom_call.1} parent=0
    #allocation2 [shape = 'u8[32768]{0}', space=vmem, size = 0x8000, scoped, tag = 'input window, operand 0']
    #allocation3 [shape = 'u8[8192]{0}', space=vmem, size = 0x2000, scoped, tag = 'output window, operand 0']
    #allocation4 [shape = 's32[2]{0}', space=sflag, size = 0x8, scoped, tag = 'scoped memory for tpu_custom_call.1']
    %7 = vsyncpa [#allocation4], 0
    %s8 = scalar_lea.sflag [#allocation4], 1
    %9 = vsyncpa %s8, 0
    loop: start=0, step=1, limit=4
    $region2: #{tpu_custom_call.1} parent=1 // loop_pre_header
      _
    $region3: #{tpu_custom_call.1} parent=1 // loop_header
      %s11 = sphi 0, %s15
      %p12 = scmp.ge.s32.totalorder %s11, 4
      %s21 = sphi 0, %s23
      %s24 = sphi 0, %s21
      %s25 = sphi 0, %s24
      %s41 = sphi 0, %s25
      %s45 = sphi 0, %s45
      %s47 = sphi 0, %s45
      %s48 = sphi 0, %s47
      %s62 = sphi 0, %s48
      %s68 = sphi 0, %s70
      %s71 = sphi 0, %s68
      %s72 = sphi 0, %s71
      %s88 = sphi 0, %s72
    $region4: #{tpu_custom_call.1} parent=1 // loop_header_branch
      %14 = sbr.rel (%p12) target = $region8
    $region5: #{tpu_custom_call.1} parent=1 // loop_body
      %s16 = ssub.s32 %s11, 1
      %s17 = ssub.s32 %s11, 2
      %s18 = sadd.s32 %s11, 1
      %s19 = ssub.s32 %s11, %s18
      %p20 = scmp.eq.s32.totalorder %s19, 0
      %s22 = sadd.s32 %s21, 1
      %s23 = scalar_select %p20, %s21, %s22
      %p26 = pneg %p20
      %p27 = scmp.eq.s32.totalorder %s11, 1
      %p28 = por %p26, %p27
      %p29 = scmp.ne.s32.totalorder %s21, %s24
      %p30 = scmp.eq.s32.totalorder %s11, 0
      %p31 = por %p29, %p30
      %p32 = scmp.ne.s32.totalorder %s21, %s24
      %p33 = scmp.eq.s32.totalorder %s16, 1
      %p34 = por %p32, %p33
      %p35 = scmp.ne.s32.totalorder %s24, %s25
      %p36 = scmp.eq.s32.totalorder %s16, 0
      %p37 = por %p35, %p36
      %p38 = scmp.ne.s32.totalorder %s24, %s25
      %p39 = scmp.eq.s32.totalorder %s17, 1
      %p40 = por %p38, %p39
      %p42 = scmp.ne.s32.totalorder %s25, %s41
      %p43 = scmp.eq.s32.totalorder %s17, 0
      %p44 = por %p42, %p43
      %s46 = sadd.s32 %s45, 1
      %p49 = scmp.eq.s32.totalorder %s11, 1
      %p50 = scmp.ne.s32.totalorder %s45, %s47
      %p51 = scmp.eq.s32.totalorder %s11, 0
      %p52 = por %p50, %p51
      %p53 = scmp.ne.s32.totalorder %s45, %s47
      %p54 = scmp.eq.s32.totalorder %s16, 1
      %p55 = por %p53, %p54
      %p56 = scmp.ne.s32.totalorder %s47, %s48
      %p57 = scmp.eq.s32.totalorder %s16, 0
      %p58 = por %p56, %p57
      %p59 = scmp.ne.s32.totalorder %s47, %s48
      %p60 = scmp.eq.s32.totalorder %s17, 1
      %p61 = por %p59, %p60
      %p63 = scmp.ne.s32.totalorder %s48, %s62
      %p64 = scmp.eq.s32.totalorder %s17, 0
      %p65 = por %p63, %p64
      %s66 = ssub.s32 %s11, %s18
      %p67 = scmp.eq.s32.totalorder %s66, 0
      %s69 = sadd.s32 %s68, 1
      %s70 = scalar_select %p67, %s68, %s69
      %p73 = pneg %p67
      %p74 = scmp.eq.s32.totalorder %s11, 1
      %p75 = por %p73, %p74
      %p76 = scmp.ne.s32.totalorder %s68, %s71
      %p77 = scmp.eq.s32.totalorder %s11, 0
      %p78 = por %p76, %p77
      %p79 = scmp.ne.s32.totalorder %s68, %s71
      %p80 = scmp.eq.s32.totalorder %s16, 1
      %p81 = por %p79, %p80
      %p82 = scmp.ne.s32.totalorder %s71, %s72
      %p83 = scmp.eq.s32.totalorder %s16, 0
      %p84 = por %p82, %p83
      %p85 = scmp.ne.s32.totalorder %s71, %s72
      %p86 = scmp.eq.s32.totalorder %s17, 1
      %p87 = por %p85, %p86
      %p89 = scmp.ne.s32.totalorder %s72, %s88
      %p90 = scmp.eq.s32.totalorder %s17, 0
      %p91 = por %p89, %p90
      %p92 = scmp.le.s32.totalorder 1, %s11
      %p93 = scmp.lt.s32.totalorder %s11, 3
      %p94 = pnand %p92, %p93
      %p95 = pneg %p94
      // Predicated region
      $region9: #{tpu_custom_call.1} parent=5 // pred_check
        _
      $region10: #{tpu_custom_call.1} parent=5 // pred_check_branch
        %97 = sbr.rel (%p94) target = $region12
      $region11: #{tpu_custom_call.1} parent=5 // pred_region
        %s98 = ssub.s32 %s11, 1
        // Predicated region
        $region13: #{tpu_custom_call.1} parent=11 // pred_check
          %p99 = pneg %p58
        $region14: #{tpu_custom_call.1} parent=11 // pred_check_branch
          %101 = sbr.rel (%p99) target = $region16
        $region15: #{tpu_custom_call.1} parent=11 // pred_region
          _
        $region16: #{tpu_custom_call.1} parent=11 // pred_fallthru
          _
      $region12: #{tpu_custom_call.1} parent=5 // pred_fallthru
        _
      %p102 = scmp.lt.s32.totalorder %s11, 2
      // Predicated region
      $region17: #{tpu_custom_call.1} parent=5 // pred_check
        %p103 = pneg %p102
      $region18: #{tpu_custom_call.1} parent=5 // pred_check_branch
        %105 = sbr.rel (%p103) target = $region20
      $region19: #{tpu_custom_call.1} parent=5 // pred_region
        // Predicated region
        $region21: #{tpu_custom_call.1} parent=19 // pred_check
          %p106 = pneg %p31
        $region22: #{tpu_custom_call.1} parent=19 // pred_check_branch
          %108 = sbr.rel (%p106) target = $region24
        $region23: #{tpu_custom_call.1} parent=19 // pred_region
          %s109 = sand.u32 %s21, 1
          %s110 = sand.u32 %s21, 1
          %s111 = smul.addr %s110, 32
          %s112 = scalar_lea.vmem [#allocation2], %s111
          %s113 = smul.addr %s11, 8
          %s114 = scalar_lea.vmem %s0, %s113
          // Predicated region
          $region25: #{tpu_custom_call.1} parent=23 // pred_check
            _
          $region26: #{tpu_custom_call.1} parent=23 // pred_check_branch
            %116 = sbr.rel (0) target = $region28
          $region27: #{tpu_custom_call.1} parent=23 // pred_region
            // Predicated region
            $region29: #{tpu_custom_call.1} parent=27 // pred_check
              _
            $region30: #{tpu_custom_call.1} parent=27 // pred_check_branch
              %118 = sbr.rel (0) target = $region32
            $region31: #{tpu_custom_call.1} parent=27 // pred_region
              // Predicated region
              $region44: #{tpu_custom_call.1} parent=31 // pred_check
                _
              $region45: #{tpu_custom_call.1} parent=31 // pred_check_branch
                %140 = sbr.rel (0) target = $region47
              $region46: #{tpu_custom_call.1} parent=31 // pred_region
                loop: start=0, step=1, limit=1
                $region48: #{tpu_custom_call.1} parent=46 // loop_pre_header
                  _
                $region49: #{tpu_custom_call.1} parent=46 // loop_header
                  %s142 = sphi 0, %s146
                  %p143 = scmp.ge.s32.totalorder %s142, 1
                  %s147 = sphi %s114, %s114
                  %s148 = sphi %s112, %s112
                $region50: #{tpu_custom_call.1} parent=46 // loop_header_branch
                  %145 = sbr.rel (%p143) target = $region54
                $region51: #{tpu_custom_call.1} parent=46 // loop_body
                  %v149 = vld [vmem:[%s147] sm:$0xff]
                  %150 = vst [vmem:[%s148] sm:$0xff] %v149
                  %v151 = vld [vmem:[%s147 + $0x10] sm:$0xff]
                  %152 = vst [vmem:[%s148 + $0x8] sm:$0xff] %v151
                  %v153 = vld [vmem:[%s147 + $0x20] sm:$0xff]
                  %154 = vst [vmem:[%s148 + $0x10] sm:$0xff] %v153
                  %v155 = vld [vmem:[%s147 + $0x30] sm:$0xff]
                  %156 = vst [vmem:[%s148 + $0x18] sm:$0xff] %v155
                $region52: #{tpu_custom_call.1} parent=46 // loop_footer
                  %s146 = sadd.s32 1, %s142
                $region53: #{tpu_custom_call.1} parent=46 // loop_footer_branch
                  %141 = sbr.rel target = $region49
                $region54: #{tpu_custom_call.1} parent=46 // loop_exit
                  _
              $region47: #{tpu_custom_call.1} parent=31 // pred_fallthru
                _
              // Predicated region
              $region55: #{tpu_custom_call.1} parent=31 // pred_check
                _
              $region56: #{tpu_custom_call.1} parent=31 // pred_check_branch
                %158 = sbr.rel target = $region58
              $region57: #{tpu_custom_call.1} parent=31 // pred_region
                _
              $region58: #{tpu_custom_call.1} parent=31 // pred_fallthru
                _
            $region32: #{tpu_custom_call.1} parent=27 // pred_fallthru
              _
            // Predicated region
            $region33: #{tpu_custom_call.1} parent=27 // pred_check
              _
            $region34: #{tpu_custom_call.1} parent=27 // pred_check_branch
              %120 = sbr.rel target = $region36
            $region35: #{tpu_custom_call.1} parent=27 // pred_region
              %s122 = ssub.s32 256, 1
              loop: start=0, step=1, limit=1
              $region37: #{tpu_custom_call.1} parent=35 // loop_pre_header
                _
              $region38: #{tpu_custom_call.1} parent=35 // loop_header
                %s124 = sphi 0, %s128
                %p125 = scmp.ge.s32.totalorder %s124, 1
                %s129 = sphi %s114, %s114
                %s130 = sphi %s112, %s112
              $region39: #{tpu_custom_call.1} parent=35 // loop_header_branch
                %127 = sbr.rel (%p125) target = $region43
              $region40: #{tpu_custom_call.1} parent=35 // loop_body
                %v131 = vld [vmem:[%s129] sm:%s122]
                %132 = vst [vmem:[%s130] sm:%s122] %v131
                %v133 = vld [vmem:[%s129 + $0x10] sm:%s122]
                %134 = vst [vmem:[%s130 + $0x8] sm:%s122] %v133
                %v135 = vld [vmem:[%s129 + $0x20] sm:%s122]
                %136 = vst [vmem:[%s130 + $0x10] sm:%s122] %v135
                %v137 = vld [vmem:[%s129 + $0x30] sm:%s122]
                %138 = vst [vmem:[%s130 + $0x18] sm:%s122] %v137
              $region41: #{tpu_custom_call.1} parent=35 // loop_footer
                %s128 = sadd.s32 1, %s124
              $region42: #{tpu_custom_call.1} parent=35 // loop_footer_branch
                %123 = sbr.rel target = $region38
              $region43: #{tpu_custom_call.1} parent=35 // loop_exit
                _
            $region36: #{tpu_custom_call.1} parent=27 // pred_fallthru
              _
          $region28: #{tpu_custom_call.1} parent=23 // pred_fallthru
            _
          %159 = vnop
        $region24: #{tpu_custom_call.1} parent=19 // pred_fallthru
          _
      $region20: #{tpu_custom_call.1} parent=5 // pred_fallthru
        _
      %p160 = scmp.le.s32.totalorder 1, %s11
      %p161 = scmp.lt.s32.totalorder %s11, 3
      %p162 = pnand %p160, %p161
      %p163 = pneg %p162
      // Predicated region
      $region59: #{tpu_custom_call.1} parent=5 // pred_check
        _
      $region60: #{tpu_custom_call.1} parent=5 // pred_check_branch
        %165 = sbr.rel (%p162) target = $region62
      $region61: #{tpu_custom_call.1} parent=5 // pred_region
        %s166 = ssub.s32 %s11, 1
        %s167 = sand.u32 %s24, 1
        %s168 = sand.u32 %s24, 1
        %s169 = smul.addr %s168, 32
        %s170 = scalar_lea.vmem [#allocation2], %s169
        // Predicated region
        $region63: #{tpu_custom_call.1} parent=61 // pred_check
          %p171 = pneg %p37
        $region64: #{tpu_custom_call.1} parent=61 // pred_check_branch
          %173 = sbr.rel (%p171) target = $region66
        $region65: #{tpu_custom_call.1} parent=61 // pred_region
          _
        $region66: #{tpu_custom_call.1} parent=61 // pred_fallthru
          _
        %s174 = sand.u32 %s24, 1
        %s175 = sand.u32 %s24, 1
        %s176 = smul.addr %s175, 32
        %s177 = scalar_lea.vmem [#allocation2], %s176
        %p178 = pneg %p37
        %p179 = pneg %p34
        %p180 = pneg %p58
        %p181 = pneg %p55
        %p182 = pneg %p84
        %p183 = pneg %p81
        %s184 = sand.u32 %s71, 1
        %s185 = scalar_lea.sflag [#allocation4], %s184
        %s186 = sand.u32 %s71, 1
        %s187 = smul.addr %s186, 8
        %s188 = scalar_lea.vmem [#allocation3], %s187
        %v189 = vld [vmem:[%s1] sm:$0xff]
        %v190 = vld [vmem:[%s1 + $0x8] sm:$0xff]
        %v191 = vld [vmem:[%s1 + $0x10] sm:$0xff]
        %v192 = vld [vmem:[%s1 + $0x18] sm:$0xff]
        %v193 = vld [vmem:[%s1 + $0x20] sm:$0xff]
        %v194 = vld [vmem:[%s1 + $0x28] sm:$0xff]
        %v195 = vld [vmem:[%s1 + $0x30] sm:$0xff]
        %v196 = vld [vmem:[%s1 + $0x38] sm:$0xff]
        %v197 = vld [vmem:[%s1 + $0x40] sm:$0xff]
        %v198 = vld [vmem:[%s1 + $0x48] sm:$0xff]
        %v199 = vld [vmem:[%s1 + $0x50] sm:$0xff]
        %v200 = vld [vmem:[%s1 + $0x58] sm:$0xff]
        %v201 = vld [vmem:[%s1 + $0x60] sm:$0xff]
        %v202 = vld [vmem:[%s1 + $0x68] sm:$0xff]
        %v203 = vld [vmem:[%s1 + $0x70] sm:$0xff]
        %v204 = vld [vmem:[%s1 + $0x78] sm:$0xff]
        %v205 = vld [vmem:[%s1 + $0x80] sm:$0xff]
        %v206 = vld [vmem:[%s1 + $0x88] sm:$0xff]
        %v207 = vld [vmem:[%s1 + $0x90] sm:$0xff]
        %v208 = vld [vmem:[%s1 + $0x98] sm:$0xff]
        %v209 = vld [vmem:[%s1 + $0xa0] sm:$0xff]
        %v210 = vld [vmem:[%s1 + $0xa8] sm:$0xff]
        %v211 = vld [vmem:[%s1 + $0xb0] sm:$0xff]
        %v212 = vld [vmem:[%s1 + $0xb8] sm:$0xff]
        %v213 = vld [vmem:[%s1 + $0xc0] sm:$0xff]
        %v214 = vld [vmem:[%s1 + $0xc8] sm:$0xff]
        %v215 = vld [vmem:[%s1 + $0xd0] sm:$0xff]
        %v216 = vld [vmem:[%s1 + $0xd8] sm:$0xff]
        %v217 = vld [vmem:[%s1 + $0xe0] sm:$0xff]
        %v218 = vld [vmem:[%s1 + $0xe8] sm:$0xff]
        %v219 = vld [vmem:[%s1 + $0xf0] sm:$0xff]
        %v220 = vld [vmem:[%s1 + $0xf8] sm:$0xff]
        %v221 = vld [vmem:[%s1 + $0x100] sm:$0xff]
        %v222 = vld [vmem:[%s1 + $0x108] sm:$0xff]
        %v223 = vld [vmem:[%s1 + $0x110] sm:$0xff]
        %v224 = vld [vmem:[%s1 + $0x118] sm:$0xff]
        %v225 = vld [vmem:[%s1 + $0x120] sm:$0xff]
        %v226 = vld [vmem:[%s1 + $0x128] sm:$0xff]
        %v227 = vld [vmem:[%s1 + $0x130] sm:$0xff]
        %v228 = vld [vmem:[%s1 + $0x138] sm:$0xff]
        %v229 = vld [vmem:[%s1 + $0x140] sm:$0xff]
        %v230 = vld [vmem:[%s1 + $0x148] sm:$0xff]
        %v231 = vld [vmem:[%s1 + $0x150] sm:$0xff]
        %v232 = vld [vmem:[%s1 + $0x158] sm:$0xff]
        %v233 = vld [vmem:[%s1 + $0x160] sm:$0xff]
        %v234 = vld [vmem:[%s1 + $0x168] sm:$0xff]
        %v235 = vld [vmem:[%s1 + $0x170] sm:$0xff]
        %v236 = vld [vmem:[%s1 + $0x178] sm:$0xff]
        %v237 = vld [vmem:[%s1 + $0x180] sm:$0xff]
        %v238 = vld [vmem:[%s1 + $0x188] sm:$0xff]
        %v239 = vld [vmem:[%s1 + $0x190] sm:$0xff]
        %v240 = vld [vmem:[%s1 + $0x198] sm:$0xff]
        %v241 = vld [vmem:[%s1 + $0x1a0] sm:$0xff]
        %v242 = vld [vmem:[%s1 + $0x1a8] sm:$0xff]
        %v243 = vld [vmem:[%s1 + $0x1b0] sm:$0xff]
        %v244 = vld [vmem:[%s1 + $0x1b8] sm:$0xff]
        %v245 = vld [vmem:[%s1 + $0x1c0] sm:$0xff]
        %v246 = vld [vmem:[%s1 + $0x1c8] sm:$0xff]
        %v247 = vld [vmem:[%s1 + $0x1d0] sm:$0xff]
        %v248 = vld [vmem:[%s1 + $0x1d8] sm:$0xff]
        %v249 = vld [vmem:[%s1 + $0x1e0] sm:$0xff]
        %v250 = vld [vmem:[%s1 + $0x1e8] sm:$0xff]
        %v251 = vld [vmem:[%s1 + $0x1f0] sm:$0xff]
        %v252 = vld [vmem:[%s1 + $0x1f8] sm:$0xff]
        %v253 = vld [vmem:[%s1 + $0x200] sm:$0xff]
        %v254 = vld [vmem:[%s1 + $0x208] sm:$0xff]
        %v255 = vld [vmem:[%s1 + $0x210] sm:$0xff]
        %v256 = vld [vmem:[%s1 + $0x218] sm:$0xff]
        %v257 = vld [vmem:[%s1 + $0x220] sm:$0xff]
        %v258 = vld [vmem:[%s1 + $0x228] sm:$0xff]
        %v259 = vld [vmem:[%s1 + $0x230] sm:$0xff]
        %v260 = vld [vmem:[%s1 + $0x238] sm:$0xff]
        %v261 = vld [vmem:[%s1 + $0x240] sm:$0xff]
        %v262 = vld [vmem:[%s1 + $0x248] sm:$0xff]
        %v263 = vld [vmem:[%s1 + $0x250] sm:$0xff]
        %v264 = vld [vmem:[%s1 + $0x258] sm:$0xff]
        %v265 = vld [vmem:[%s1 + $0x260] sm:$0xff]
        %v266 = vld [vmem:[%s1 + $0x268] sm:$0xff]
        %v267 = vld [vmem:[%s1 + $0x270] sm:$0xff]
        %v268 = vld [vmem:[%s1 + $0x278] sm:$0xff]
        %v269 = vld [vmem:[%s1 + $0x280] sm:$0xff]
        %v270 = vld [vmem:[%s1 + $0x288] sm:$0xff]
        %v271 = vld [vmem:[%s1 + $0x290] sm:$0xff]
        %v272 = vld [vmem:[%s1 + $0x298] sm:$0xff]
        %v273 = vld [vmem:[%s1 + $0x2a0] sm:$0xff]
        %v274 = vld [vmem:[%s1 + $0x2a8] sm:$0xff]
        %v275 = vld [vmem:[%s1 + $0x2b0] sm:$0xff]
        %v276 = vld [vmem:[%s1 + $0x2b8] sm:$0xff]
        %v277 = vld [vmem:[%s1 + $0x2c0] sm:$0xff]
        %v278 = vld [vmem:[%s1 + $0x2c8] sm:$0xff]
        %v279 = vld [vmem:[%s170] sm:$0xff]
        %v280 = vld [vmem:[%s170 + $0x8] sm:$0xff]
        %v281 = vld [vmem:[%s170 + $0x10] sm:$0xff]
        %v282 = vld [vmem:[%s170 + $0x18] sm:$0xff]
        %vm283 = vcmask 261120
        %v285 = vsel %vm283, %v189, 0
        %v288 = vsel %vm283, %v190, 0
        %v291 = vsel %vm283, %v191, 0
        %v294 = vsel %vm283, %v192, 0
        %v297 = vsel %vm283, %v193, 0
        %v300 = vsel %vm283, %v194, 0
        %v303 = vsel %vm283, %v195, 0
        %v306 = vsel %vm283, %v196, 0
        %v309 = vsel %vm283, %v197, 0
        %v312 = vsel %vm283, %v198, 0
        %v315 = vsel %vm283, %v199, 0
        %v318 = vsel %vm283, %v200, 0
        %v321 = vsel %vm283, %v201, 0
        %v324 = vsel %vm283, %v202, 0
        %v327 = vsel %vm283, %v203, 0
        %v330 = vsel %vm283, %v204, 0
        %v333 = vsel %vm283, %v205, 0
        %v336 = vsel %vm283, %v206, 0
        %v339 = vsel %vm283, %v207, 0
        %v342 = vsel %vm283, %v208, 0
        %v345 = vsel %vm283, %v209, 0
        %v348 = vsel %vm283, %v210, 0
        %v351 = vsel %vm283, %v211, 0
        %v354 = vsel %vm283, %v212, 0
        %v357 = vsel %vm283, %v213, 0
        %v360 = vsel %vm283, %v214, 0
        %v363 = vsel %vm283, %v215, 0
        %v366 = vsel %vm283, %v216, 0
        %v369 = vsel %vm283, %v217, 0
        %v372 = vsel %vm283, %v218, 0
        %v375 = vsel %vm283, %v219, 0
        %v378 = vsel %vm283, %v220, 0
        %v381 = vsel %vm283, %v221, 0
        %v384 = vsel %vm283, %v222, 0
        %v387 = vsel %vm283, %v223, 0
        %v390 = vsel %vm283, %v224, 0
        %v393 = vsel %vm283, %v225, 0
        %v396 = vsel %vm283, %v226, 0
        %v399 = vsel %vm283, %v227, 0
        %v402 = vsel %vm283, %v228, 0
        %v405 = vsel %vm283, %v229, 0
        %v408 = vsel %vm283, %v230, 0
        %v411 = vsel %vm283, %v231, 0
        %v414 = vsel %vm283, %v232, 0
        %v417 = vsel %vm283, %v233, 0
        %v420 = vsel %vm283, %v234, 0
        %v423 = vsel %vm283, %v235, 0
        %v426 = vsel %vm283, %v236, 0
        %v429 = vsel %vm283, %v237, 0
        %v432 = vsel %vm283, %v238, 0
        %v435 = vsel %vm283, %v239, 0
        %v438 = vsel %vm283, %v240, 0
        %v441 = vsel %vm283, %v241, 0
        %v444 = vsel %vm283, %v242, 0
        %v447 = vsel %vm283, %v243, 0
        %v450 = vsel %vm283, %v244, 0
        %v453 = vsel %vm283, %v245, 0
        %v456 = vsel %vm283, %v246, 0
        %v459 = vsel %vm283, %v247, 0
        %v462 = vsel %vm283, %v248, 0
        %v465 = vsel %vm283, %v249, 0
        %v468 = vsel %vm283, %v250, 0
        %v471 = vsel %vm283, %v251, 0
        %v474 = vsel %vm283, %v252, 0
        %v477 = vsel %vm283, %v253, 0
        %v480 = vsel %vm283, %v254, 0
        %v483 = vsel %vm283, %v255, 0
        %v486 = vsel %vm283, %v256, 0
        %v489 = vsel %vm283, %v257, 0
        %v492 = vsel %vm283, %v258, 0
        %v495 = vsel %vm283, %v259, 0
        %v498 = vsel %vm283, %v260, 0
        %v501 = vsel %vm283, %v261, 0
        %v504 = vsel %vm283, %v262, 0
        %v507 = vsel %vm283, %v263, 0
        %v510 = vsel %vm283, %v264, 0
        %v513 = vsel %vm283, %v265, 0
        %v516 = vsel %vm283, %v266, 0
        %v519 = vsel %vm283, %v267, 0
        %v522 = vsel %vm283, %v268, 0
        %v525 = vsel %vm283, %v269, 0
        %v528 = vsel %vm283, %v270, 0
        %v531 = vsel %vm283, %v271, 0
        %v534 = vsel %vm283, %v272, 0
        %v537 = vsel %vm283, %v273, 0
        %v540 = vsel %vm283, %v274, 0
        %v543 = vsel %vm283, %v275, 0
        %v546 = vsel %vm283, %v276, 0
        %v549 = vsel %vm283, %v277, 0
        %v552 = vsel %vm283, %v278, 0
        %554 = vmatpush.msra.mxu0 0.0
        %555 = vmatpush.msra.mxu0 0.0
        %556 = vmatpush.msra.mxu0 0.0
        %557 = vmatpush.msra.mxu0 0.0
        %558 = vmatpush.msra.mxu0 0.0
        %559 = vmatpush.msra.mxu0 0.0
        %560 = vmatpush.msra.mxu0 0.0
        %561 = vmatpush.msra.mxu0 0.0
        %562 = vmatpush.msra.mxu0 0.0
        %563 = vmatpush.msra.mxu0 0.0
        %564 = vmatpush.msra.mxu0 0.0
        %565 = vmatpush.msra.mxu0 0.0
        %566 = vmatpush.msra.mxu0 %v282
        %567 = vmatpush.msra.mxu0 %v281
        %568 = vmatpush.msra.mxu0 %v280
        %569 = vmatpush.msra.mxu0 %v279
        %570 = vmatmul.f32.gmra.mxu0 %v285
        %v571 = vpop.f32.mrf.mxu0
        %v572 = vadd.f32 0.0, %v571
        %573 = vmatmul.f32.gmra.mxu0 %v288
        %v574 = vpop.f32.mrf.mxu0
        %v575 = vadd.f32 0.0, %v574
        %576 = vmatmul.f32.gmra.mxu0 %v291
        %v577 = vpop.f32.mrf.mxu0
        %v578 = vadd.f32 0.0, %v577
        %579 = vmatmul.f32.gmra.mxu0 %v294
        %v580 = vpop.f32.mrf.mxu0
        %v581 = vadd.f32 0.0, %v580
        %582 = vmatmul.f32.gmra.mxu0 %v297
        %v583 = vpop.f32.mrf.mxu0
        %v584 = vadd.f32 0.0, %v583
        %585 = vmatmul.f32.gmra.mxu0 %v300
        %v586 = vpop.f32.mrf.mxu0
        %v587 = vadd.f32 0.0, %v586
        %588 = vmatmul.f32.gmra.mxu0 %v303
        %v589 = vpop.f32.mrf.mxu0
        %v590 = vadd.f32 0.0, %v589
        %591 = vmatmul.f32.gmra.mxu0 %v306
        %v592 = vpop.f32.mrf.mxu0
        %v593 = vadd.f32 0.0, %v592
        %594 = vmatmul.f32.gmra.mxu0 %v309
        %v595 = vpop.f32.mrf.mxu0
        %v596 = vadd.f32 0.0, %v595
        %597 = vmatmul.f32.gmra.mxu0 %v312
        %v598 = vpop.f32.mrf.mxu0
        %v599 = vadd.f32 0.0, %v598
        %600 = vmatmul.f32.gmra.mxu0 %v315
        %v601 = vpop.f32.mrf.mxu0
        %v602 = vadd.f32 0.0, %v601
        %603 = vmatmul.f32.gmra.mxu0 %v318
        %v604 = vpop.f32.mrf.mxu0
        %v605 = vadd.f32 0.0, %v604
        %606 = vmatmul.f32.gmra.mxu0 %v321
        %v607 = vpop.f32.mrf.mxu0
        %v608 = vadd.f32 0.0, %v607
        %609 = vmatmul.f32.gmra.mxu0 %v324
        %v610 = vpop.f32.mrf.mxu0
        %v611 = vadd.f32 0.0, %v610
        %612 = vmatmul.f32.gmra.mxu0 %v327
        %v613 = vpop.f32.mrf.mxu0
        %v614 = vadd.f32 0.0, %v613
        %615 = vmatmul.f32.gmra.mxu0 %v330
        %v616 = vpop.f32.mrf.mxu0
        %v617 = vadd.f32 0.0, %v616
        %618 = vmatmul.f32.gmra.mxu0 %v333
        %v619 = vpop.f32.mrf.mxu0
        %v620 = vadd.f32 0.0, %v619
        %621 = vmatmul.f32.gmra.mxu0 %v336
        %v622 = vpop.f32.mrf.mxu0
        %v623 = vadd.f32 0.0, %v622
        %624 = vmatmul.f32.gmra.mxu0 %v339
        %v625 = vpop.f32.mrf.mxu0
        %v626 = vadd.f32 0.0, %v625
        %627 = vmatmul.f32.gmra.mxu0 %v342
        %v628 = vpop.f32.mrf.mxu0
        %v629 = vadd.f32 0.0, %v628
        %630 = vmatmul.f32.gmra.mxu0 %v345
        %v631 = vpop.f32.mrf.mxu0
        %v632 = vadd.f32 0.0, %v631
        %633 = vmatmul.f32.gmra.mxu0 %v348
        %v634 = vpop.f32.mrf.mxu0
        %v635 = vadd.f32 0.0, %v634
        %636 = vmatmul.f32.gmra.mxu0 %v351
        %v637 = vpop.f32.mrf.mxu0
        %v638 = vadd.f32 0.0, %v637
        %639 = vmatmul.f32.gmra.mxu0 %v354
        %v640 = vpop.f32.mrf.mxu0
        %v641 = vadd.f32 0.0, %v640
        %642 = vmatmul.f32.gmra.mxu0 %v357
        %v643 = vpop.f32.mrf.mxu0
        %v644 = vadd.f32 0.0, %v643
        %645 = vmatmul.f32.gmra.mxu0 %v360
        %v646 = vpop.f32.mrf.mxu0
        %v647 = vadd.f32 0.0, %v646
        %648 = vmatmul.f32.gmra.mxu0 %v363
        %v649 = vpop.f32.mrf.mxu0
        %v650 = vadd.f32 0.0, %v649
        %651 = vmatmul.f32.gmra.mxu0 %v366
        %v652 = vpop.f32.mrf.mxu0
        %v653 = vadd.f32 0.0, %v652
        %654 = vmatmul.f32.gmra.mxu0 %v369
        %v655 = vpop.f32.mrf.mxu0
        %v656 = vadd.f32 0.0, %v655
        %657 = vmatmul.f32.gmra.mxu0 %v372
        %v658 = vpop.f32.mrf.mxu0
        %v659 = vadd.f32 0.0, %v658
        %660 = vmatmul.f32.gmra.mxu0 %v375
        %v661 = vpop.f32.mrf.mxu0
        %v662 = vadd.f32 0.0, %v661
        %663 = vmatmul.f32.gmra.mxu0 %v378
        %v664 = vpop.f32.mrf.mxu0
        %v665 = vadd.f32 0.0, %v664
        %666 = vmatmul.f32.gmra.mxu0 %v381
        %v667 = vpop.f32.mrf.mxu0
        %v668 = vadd.f32 0.0, %v667
        %669 = vmatmul.f32.gmra.mxu0 %v384
        %v670 = vpop.f32.mrf.mxu0
        %v671 = vadd.f32 0.0, %v670
        %672 = vmatmul.f32.gmra.mxu0 %v387
        %v673 = vpop.f32.mrf.mxu0
        %v674 = vadd.f32 0.0, %v673
        %675 = vmatmul.f32.gmra.mxu0 %v390
        %v676 = vpop.f32.mrf.mxu0
        %v677 = vadd.f32 0.0, %v676
        %678 = vmatmul.f32.gmra.mxu0 %v393
        %v679 = vpop.f32.mrf.mxu0
        %v680 = vadd.f32 0.0, %v679
        %681 = vmatmul.f32.gmra.mxu0 %v396
        %v682 = vpop.f32.mrf.mxu0
        %v683 = vadd.f32 0.0, %v682
        %684 = vmatmul.f32.gmra.mxu0 %v399
        %v685 = vpop.f32.mrf.mxu0
        %v686 = vadd.f32 0.0, %v685
        %687 = vmatmul.f32.gmra.mxu0 %v402
        %v688 = vpop.f32.mrf.mxu0
        %v689 = vadd.f32 0.0, %v688
        %690 = vmatmul.f32.gmra.mxu0 %v405
        %v691 = vpop.f32.mrf.mxu0
        %v692 = vadd.f32 0.0, %v691
        %693 = vmatmul.f32.gmra.mxu0 %v408
        %v694 = vpop.f32.mrf.mxu0
        %v695 = vadd.f32 0.0, %v694
        %696 = vmatmul.f32.gmra.mxu0 %v411
        %v697 = vpop.f32.mrf.mxu0
        %v698 = vadd.f32 0.0, %v697
        %699 = vmatmul.f32.gmra.mxu0 %v414
        %v700 = vpop.f32.mrf.mxu0
        %v701 = vadd.f32 0.0, %v700
        %702 = vmatmul.f32.gmra.mxu0 %v417
        %v703 = vpop.f32.mrf.mxu0
        %v704 = vadd.f32 0.0, %v703
        %705 = vmatmul.f32.gmra.mxu0 %v420
        %v706 = vpop.f32.mrf.mxu0
        %v707 = vadd.f32 0.0, %v706
        %708 = vmatmul.f32.gmra.mxu0 %v423
        %v709 = vpop.f32.mrf.mxu0
        %v710 = vadd.f32 0.0, %v709
        %711 = vmatmul.f32.gmra.mxu0 %v426
        %v712 = vpop.f32.mrf.mxu0
        %v713 = vadd.f32 0.0, %v712
        %714 = vmatmul.f32.gmra.mxu0 %v429
        %v715 = vpop.f32.mrf.mxu0
        %v716 = vadd.f32 0.0, %v715
        %717 = vmatmul.f32.gmra.mxu0 %v432
        %v718 = vpop.f32.mrf.mxu0
        %v719 = vadd.f32 0.0, %v718
        %720 = vmatmul.f32.gmra.mxu0 %v435
        %v721 = vpop.f32.mrf.mxu0
        %v722 = vadd.f32 0.0, %v721
        %723 = vmatmul.f32.gmra.mxu0 %v438
        %v724 = vpop.f32.mrf.mxu0
        %v725 = vadd.f32 0.0, %v724
        %726 = vmatmul.f32.gmra.mxu0 %v441
        %v727 = vpop.f32.mrf.mxu0
        %v728 = vadd.f32 0.0, %v727
        %729 = vmatmul.f32.gmra.mxu0 %v444
        %v730 = vpop.f32.mrf.mxu0
        %v731 = vadd.f32 0.0, %v730
        %732 = vmatmul.f32.gmra.mxu0 %v447
        %v733 = vpop.f32.mrf.mxu0
        %v734 = vadd.f32 0.0, %v733
        %735 = vmatmul.f32.gmra.mxu0 %v450
        %v736 = vpop.f32.mrf.mxu0
        %v737 = vadd.f32 0.0, %v736
        %738 = vmatmul.f32.gmra.mxu0 %v453
        %v739 = vpop.f32.mrf.mxu0
        %v740 = vadd.f32 0.0, %v739
        %741 = vmatmul.f32.gmra.mxu0 %v456
        %v742 = vpop.f32.mrf.mxu0
        %v743 = vadd.f32 0.0, %v742
        %744 = vmatmul.f32.gmra.mxu0 %v459
        %v745 = vpop.f32.mrf.mxu0
        %v746 = vadd.f32 0.0, %v745
        %747 = vmatmul.f32.gmra.mxu0 %v462
        %v748 = vpop.f32.mrf.mxu0
        %v749 = vadd.f32 0.0, %v748
        %750 = vmatmul.f32.gmra.mxu0 %v465
        %v751 = vpop.f32.mrf.mxu0
        %v752 = vadd.f32 0.0, %v751
        %753 = vmatmul.f32.gmra.mxu0 %v468
        %v754 = vpop.f32.mrf.mxu0
        %v755 = vadd.f32 0.0, %v754
        %756 = vmatmul.f32.gmra.mxu0 %v471
        %v757 = vpop.f32.mrf.mxu0
        %v758 = vadd.f32 0.0, %v757
        %759 = vmatmul.f32.gmra.mxu0 %v474
        %v760 = vpop.f32.mrf.mxu0
        %v761 = vadd.f32 0.0, %v760
        %762 = vmatmul.f32.gmra.mxu0 %v477
        %v763 = vpop.f32.mrf.mxu0
        %v764 = vadd.f32 0.0, %v763
        %765 = vmatmul.f32.gmra.mxu0 %v480
        %v766 = vpop.f32.mrf.mxu0
        %v767 = vadd.f32 0.0, %v766
        %768 = vmatmul.f32.gmra.mxu0 %v483
        %v769 = vpop.f32.mrf.mxu0
        %v770 = vadd.f32 0.0, %v769
        %771 = vmatmul.f32.gmra.mxu0 %v486
        %v772 = vpop.f32.mrf.mxu0
        %v773 = vadd.f32 0.0, %v772
        %774 = vmatmul.f32.gmra.mxu0 %v489
        %v775 = vpop.f32.mrf.mxu0
        %v776 = vadd.f32 0.0, %v775
        %777 = vmatmul.f32.gmra.mxu0 %v492
        %v778 = vpop.f32.mrf.mxu0
        %v779 = vadd.f32 0.0, %v778
        %780 = vmatmul.f32.gmra.mxu0 %v495
        %v781 = vpop.f32.mrf.mxu0
        %v782 = vadd.f32 0.0, %v781
        %783 = vmatmul.f32.gmra.mxu0 %v498
        %v784 = vpop.f32.mrf.mxu0
        %v785 = vadd.f32 0.0, %v784
        %786 = vmatmul.f32.gmra.mxu0 %v501
        %v787 = vpop.f32.mrf.mxu0
        %v788 = vadd.f32 0.0, %v787
        %789 = vmatmul.f32.gmra.mxu0 %v504
        %v790 = vpop.f32.mrf.mxu0
        %v791 = vadd.f32 0.0, %v790
        %792 = vmatmul.f32.gmra.mxu0 %v507
        %v793 = vpop.f32.mrf.mxu0
        %v794 = vadd.f32 0.0, %v793
        %795 = vmatmul.f32.gmra.mxu0 %v510
        %v796 = vpop.f32.mrf.mxu0
        %v797 = vadd.f32 0.0, %v796
        %798 = vmatmul.f32.gmra.mxu0 %v513
        %v799 = vpop.f32.mrf.mxu0
        %v800 = vadd.f32 0.0, %v799
        %801 = vmatmul.f32.gmra.mxu0 %v516
        %v802 = vpop.f32.mrf.mxu0
        %v803 = vadd.f32 0.0, %v802
        %804 = vmatmul.f32.gmra.mxu0 %v519
        %v805 = vpop.f32.mrf.mxu0
        %v806 = vadd.f32 0.0, %v805
        %807 = vmatmul.f32.gmra.mxu0 %v522
        %v808 = vpop.f32.mrf.mxu0
        %v809 = vadd.f32 0.0, %v808
        %810 = vmatmul.f32.gmra.mxu0 %v525
        %v811 = vpop.f32.mrf.mxu0
        %v812 = vadd.f32 0.0, %v811
        %813 = vmatmul.f32.gmra.mxu0 %v528
        %v814 = vpop.f32.mrf.mxu0
        %v815 = vadd.f32 0.0, %v814
        %816 = vmatmul.f32.gmra.mxu0 %v531
        %v817 = vpop.f32.mrf.mxu0
        %v818 = vadd.f32 0.0, %v817
        %819 = vmatmul.f32.gmra.mxu0 %v534
        %v820 = vpop.f32.mrf.mxu0
        %v821 = vadd.f32 0.0, %v820
        %822 = vmatmul.f32.gmra.mxu0 %v537
        %v823 = vpop.f32.mrf.mxu0
        %v824 = vadd.f32 0.0, %v823
        %825 = vmatmul.f32.gmra.mxu0 %v540
        %v826 = vpop.f32.mrf.mxu0
        %v827 = vadd.f32 0.0, %v826
        %828 = vmatmul.f32.gmra.mxu0 %v543
        %v829 = vpop.f32.mrf.mxu0
        %v830 = vadd.f32 0.0, %v829
        %831 = vmatmul.f32.gmra.mxu0 %v546
        %v832 = vpop.f32.mrf.mxu0
        %v833 = vadd.f32 0.0, %v832
        %834 = vmatmul.f32.gmra.mxu0 %v549
        %v835 = vpop.f32.mrf.mxu0
        %v836 = vadd.f32 0.0, %v835
        %837 = vmatmul.f32.gmra.mxu0 %v552
        %v838 = vpop.f32.mrf.mxu0
        %v839 = vadd.f32 0.0, %v838
        %840 = vdwg.mxu0
        %v841 = vperm.slane %v572, 0
        %v842 = vmul.f32 %v841, %v575
        %v843 = vperm.slane %v572, 1
        %v844 = vmul.f32 %v843, %v575
        %v846 = vrot.slane %v844, 4
        %v848 = vadd.f32 %v842, %v846
        %v849 = vperm.slane %v572, 2
        %v850 = vmul.f32 %v849, %v578
        %v851 = vadd.f32 %v848, %v850
        %v852 = vperm.slane %v572, 3
        %v853 = vmul.f32 %v852, %v578
        %v855 = vrot.slane %v853, 4
        %v857 = vadd.f32 %v851, %v855
        %v858 = vperm.slane %v857, 0
        %v859 = vmul.f32 %v858, %v581
        %v860 = vperm.slane %v857, 1
        %v861 = vmul.f32 %v860, %v581
        %v863 = vrot.slane %v861, 4
        %v865 = vadd.f32 %v859, %v863
        %v866 = vperm.slane %v857, 2
        %v867 = vmul.f32 %v866, %v584
        %v868 = vadd.f32 %v865, %v867
        %v869 = vperm.slane %v857, 3
        %v870 = vmul.f32 %v869, %v584
        %v872 = vrot.slane %v870, 4
        %v874 = vadd.f32 %v868, %v872
        %v875 = vperm.slane %v874, 0
        %v876 = vmul.f32 %v875, %v587
        %v877 = vperm.slane %v874, 1
        %v878 = vmul.f32 %v877, %v587
        %v880 = vrot.slane %v878, 4
        %v882 = vadd.f32 %v876, %v880
        %v883 = vperm.slane %v874, 2
        %v884 = vmul.f32 %v883, %v590
        %v885 = vadd.f32 %v882, %v884
        %v886 = vperm.slane %v874, 3
        %v887 = vmul.f32 %v886, %v590
        %v889 = vrot.slane %v887, 4
        %v891 = vadd.f32 %v885, %v889
        %v892 = vperm.slane %v891, 0
        %v893 = vmul.f32 %v892, %v593
        %v894 = vperm.slane %v891, 1
        %v895 = vmul.f32 %v894, %v593
        %v897 = vrot.slane %v895, 4
        %v899 = vadd.f32 %v893, %v897
        %v900 = vperm.slane %v891, 2
        %v901 = vmul.f32 %v900, %v596
        %v902 = vadd.f32 %v899, %v901
        %v903 = vperm.slane %v891, 3
        %v904 = vmul.f32 %v903, %v596
        %v906 = vrot.slane %v904, 4
        %v908 = vadd.f32 %v902, %v906
        %v909 = vperm.slane %v908, 0
        %v910 = vmul.f32 %v909, %v599
        %v911 = vperm.slane %v908, 1
        %v912 = vmul.f32 %v911, %v599
        %v914 = vrot.slane %v912, 4
        %v916 = vadd.f32 %v910, %v914
        %v917 = vperm.slane %v908, 2
        %v918 = vmul.f32 %v917, %v602
        %v919 = vadd.f32 %v916, %v918
        %v920 = vperm.slane %v908, 3
        %v921 = vmul.f32 %v920, %v602
        %v923 = vrot.slane %v921, 4
        %v925 = vadd.f32 %v919, %v923
        %v926 = vperm.slane %v925, 0
        %v927 = vmul.f32 %v926, %v605
        %v928 = vperm.slane %v925, 1
        %v929 = vmul.f32 %v928, %v605
        %v931 = vrot.slane %v929, 4
        %v933 = vadd.f32 %v927, %v931
        %v934 = vperm.slane %v925, 2
        %v935 = vmul.f32 %v934, %v608
        %v936 = vadd.f32 %v933, %v935
        %v937 = vperm.slane %v925, 3
        %v938 = vmul.f32 %v937, %v608
        %v940 = vrot.slane %v938, 4
        %v942 = vadd.f32 %v936, %v940
        %v943 = vperm.slane %v942, 0
        %v944 = vmul.f32 %v943, %v611
        %v945 = vperm.slane %v942, 1
        %v946 = vmul.f32 %v945, %v611
        %v948 = vrot.slane %v946, 4
        %v950 = vadd.f32 %v944, %v948
        %v951 = vperm.slane %v942, 2
        %v952 = vmul.f32 %v951, %v614
        %v953 = vadd.f32 %v950, %v952
        %v954 = vperm.slane %v942, 3
        %v955 = vmul.f32 %v954, %v614
        %v957 = vrot.slane %v955, 4
        %v959 = vadd.f32 %v953, %v957
        %v960 = vperm.slane %v959, 0
        %v961 = vmul.f32 %v960, %v617
        %v962 = vperm.slane %v959, 1
        %v963 = vmul.f32 %v962, %v617
        %v965 = vrot.slane %v963, 4
        %v967 = vadd.f32 %v961, %v965
        %v968 = vperm.slane %v959, 2
        %v969 = vmul.f32 %v968, %v620
        %v970 = vadd.f32 %v967, %v969
        %v971 = vperm.slane %v959, 3
        %v972 = vmul.f32 %v971, %v620
        %v974 = vrot.slane %v972, 4
        %v976 = vadd.f32 %v970, %v974
        %v977 = vperm.slane %v976, 0
        %v978 = vmul.f32 %v977, %v623
        %v979 = vperm.slane %v976, 1
        %v980 = vmul.f32 %v979, %v623
        %v982 = vrot.slane %v980, 4
        %v984 = vadd.f32 %v978, %v982
        %v985 = vperm.slane %v976, 2
        %v986 = vmul.f32 %v985, %v626
        %v987 = vadd.f32 %v984, %v986
        %v988 = vperm.slane %v976, 3
        %v989 = vmul.f32 %v988, %v626
        %v991 = vrot.slane %v989, 4
        %v993 = vadd.f32 %v987, %v991
        %v994 = vperm.slane %v993, 0
        %v995 = vmul.f32 %v994, %v629
        %v996 = vperm.slane %v993, 1
        %v997 = vmul.f32 %v996, %v629
        %v999 = vrot.slane %v997, 4
        %v1001 = vadd.f32 %v995, %v999
        %v1002 = vperm.slane %v993, 2
        %v1003 = vmul.f32 %v1002, %v632
        %v1004 = vadd.f32 %v1001, %v1003
        %v1005 = vperm.slane %v993, 3
        %v1006 = vmul.f32 %v1005, %v632
        %v1008 = vrot.slane %v1006, 4
        %v1010 = vadd.f32 %v1004, %v1008
        %v1011 = vperm.slane %v1010, 0
        %v1012 = vmul.f32 %v1011, %v635
        %v1013 = vperm.slane %v1010, 1
        %v1014 = vmul.f32 %v1013, %v635
        %v1016 = vrot.slane %v1014, 4
        %v1018 = vadd.f32 %v1012, %v1016
        %v1019 = vperm.slane %v1010, 2
        %v1020 = vmul.f32 %v1019, %v638
        %v1021 = vadd.f32 %v1018, %v1020
        %v1022 = vperm.slane %v1010, 3
        %v1023 = vmul.f32 %v1022, %v638
        %v1025 = vrot.slane %v1023, 4
        %v1027 = vadd.f32 %v1021, %v1025
        %v1028 = vperm.slane %v1027, 0
        %v1029 = vmul.f32 %v1028, %v641
        %v1030 = vperm.slane %v1027, 1
        %v1031 = vmul.f32 %v1030, %v641
        %v1033 = vrot.slane %v1031, 4
        %v1035 = vadd.f32 %v1029, %v1033
        %v1036 = vperm.slane %v1027, 2
        %v1037 = vmul.f32 %v1036, %v644
        %v1038 = vadd.f32 %v1035, %v1037
        %v1039 = vperm.slane %v1027, 3
        %v1040 = vmul.f32 %v1039, %v644
        %v1042 = vrot.slane %v1040, 4
        %v1044 = vadd.f32 %v1038, %v1042
        %v1045 = vperm.slane %v1044, 0
        %v1046 = vmul.f32 %v1045, %v647
        %v1047 = vperm.slane %v1044, 1
        %v1048 = vmul.f32 %v1047, %v647
        %v1050 = vrot.slane %v1048, 4
        %v1052 = vadd.f32 %v1046, %v1050
        %v1053 = vperm.slane %v1044, 2
        %v1054 = vmul.f32 %v1053, %v650
        %v1055 = vadd.f32 %v1052, %v1054
        %v1056 = vperm.slane %v1044, 3
        %v1057 = vmul.f32 %v1056, %v650
        %v1059 = vrot.slane %v1057, 4
        %v1061 = vadd.f32 %v1055, %v1059
        %v1062 = vperm.slane %v1061, 0
        %v1063 = vmul.f32 %v1062, %v653
        %v1064 = vperm.slane %v1061, 1
        %v1065 = vmul.f32 %v1064, %v653
        %v1067 = vrot.slane %v1065, 4
        %v1069 = vadd.f32 %v1063, %v1067
        %v1070 = vperm.slane %v1061, 2
        %v1071 = vmul.f32 %v1070, %v656
        %v1072 = vadd.f32 %v1069, %v1071
        %v1073 = vperm.slane %v1061, 3
        %v1074 = vmul.f32 %v1073, %v656
        %v1076 = vrot.slane %v1074, 4
        %v1078 = vadd.f32 %v1072, %v1076
        %v1079 = vperm.slane %v1078, 0
        %v1080 = vmul.f32 %v1079, %v659
        %v1081 = vperm.slane %v1078, 1
        %v1082 = vmul.f32 %v1081, %v659
        %v1084 = vrot.slane %v1082, 2
        %v1086 = vadd.f32 %v1080, %v1084
        %v1087 = vperm.slane %v1078, 2
        %v1088 = vmul.f32 %v1087, %v659
        %v1090 = vrot.slane %v1088, 4
        %v1092 = vadd.f32 %v1086, %v1090
        %v1093 = vperm.slane %v1078, 3
        %v1094 = vmul.f32 %v1093, %v659
        %v1096 = vrot.slane %v1094, 6
        %v1098 = vadd.f32 %v1092, %v1096
        %v1099 = vperm.slane %v662, 0
        %v1100 = vmul.f32 %v1099, %v665
        %v1101 = vperm.slane %v662, 1
        %v1102 = vmul.f32 %v1101, %v665
        %v1104 = vrot.slane %v1102, 4
        %v1106 = vadd.f32 %v1100, %v1104
        %v1107 = vperm.slane %v662, 2
        %v1108 = vmul.f32 %v1107, %v668
        %v1109 = vadd.f32 %v1106, %v1108
        %v1110 = vperm.slane %v662, 3
        %v1111 = vmul.f32 %v1110, %v668
        %v1113 = vrot.slane %v1111, 4
        %v1115 = vadd.f32 %v1109, %v1113
        %v1116 = vperm.slane %v1115, 0
        %v1117 = vmul.f32 %v1116, %v671
        %v1118 = vperm.slane %v1115, 1
        %v1119 = vmul.f32 %v1118, %v671
        %v1121 = vrot.slane %v1119, 4
        %v1123 = vadd.f32 %v1117, %v1121
        %v1124 = vperm.slane %v1115, 2
        %v1125 = vmul.f32 %v1124, %v674
        %v1126 = vadd.f32 %v1123, %v1125
        %v1127 = vperm.slane %v1115, 3
        %v1128 = vmul.f32 %v1127, %v674
        %v1130 = vrot.slane %v1128, 4
        %v1132 = vadd.f32 %v1126, %v1130
        %v1133 = vperm.slane %v1132, 0
        %v1134 = vmul.f32 %v1133, %v677
        %v1135 = vperm.slane %v1132, 1
        %v1136 = vmul.f32 %v1135, %v677
        %v1138 = vrot.slane %v1136, 4
        %v1140 = vadd.f32 %v1134, %v1138
        %v1141 = vperm.slane %v1132, 2
        %v1142 = vmul.f32 %v1141, %v680
        %v1143 = vadd.f32 %v1140, %v1142
        %v1144 = vperm.slane %v1132, 3
        %v1145 = vmul.f32 %v1144, %v680
        %v1147 = vrot.slane %v1145, 4
        %v1149 = vadd.f32 %v1143, %v1147
        %v1150 = vperm.slane %v1149, 0
        %v1151 = vmul.f32 %v1150, %v683
        %v1152 = vperm.slane %v1149, 1
        %v1153 = vmul.f32 %v1152, %v683
        %v1155 = vrot.slane %v1153, 4
        %v1157 = vadd.f32 %v1151, %v1155
        %v1158 = vperm.slane %v1149, 2
        %v1159 = vmul.f32 %v1158, %v686
        %v1160 = vadd.f32 %v1157, %v1159
        %v1161 = vperm.slane %v1149, 3
        %v1162 = vmul.f32 %v1161, %v686
        %v1164 = vrot.slane %v1162, 4
        %v1166 = vadd.f32 %v1160, %v1164
        %v1167 = vperm.slane %v1166, 0
        %v1168 = vmul.f32 %v1167, %v689
        %v1169 = vperm.slane %v1166, 1
        %v1170 = vmul.f32 %v1169, %v689
        %v1172 = vrot.slane %v1170, 4
        %v1174 = vadd.f32 %v1168, %v1172
        %v1175 = vperm.slane %v1166, 2
        %v1176 = vmul.f32 %v1175, %v692
        %v1177 = vadd.f32 %v1174, %v1176
        %v1178 = vperm.slane %v1166, 3
        %v1179 = vmul.f32 %v1178, %v692
        %v1181 = vrot.slane %v1179, 4
        %v1183 = vadd.f32 %v1177, %v1181
        %v1184 = vperm.slane %v1183, 0
        %v1185 = vmul.f32 %v1184, %v695
        %v1186 = vperm.slane %v1183, 1
        %v1187 = vmul.f32 %v1186, %v695
        %v1189 = vrot.slane %v1187, 4
        %v1191 = vadd.f32 %v1185, %v1189
        %v1192 = vperm.slane %v1183, 2
        %v1193 = vmul.f32 %v1192, %v698
        %v1194 = vadd.f32 %v1191, %v1193
        %v1195 = vperm.slane %v1183, 3
        %v1196 = vmul.f32 %v1195, %v698
        %v1198 = vrot.slane %v1196, 4
        %v1200 = vadd.f32 %v1194, %v1198
        %v1201 = vperm.slane %v1200, 0
        %v1202 = vmul.f32 %v1201, %v701
        %v1203 = vperm.slane %v1200, 1
        %v1204 = vmul.f32 %v1203, %v701
        %v1206 = vrot.slane %v1204, 4
        %v1208 = vadd.f32 %v1202, %v1206
        %v1209 = vperm.slane %v1200, 2
        %v1210 = vmul.f32 %v1209, %v704
        %v1211 = vadd.f32 %v1208, %v1210
        %v1212 = vperm.slane %v1200, 3
        %v1213 = vmul.f32 %v1212, %v704
        %v1215 = vrot.slane %v1213, 4
        %v1217 = vadd.f32 %v1211, %v1215
        %v1218 = vperm.slane %v1217, 0
        %v1219 = vmul.f32 %v1218, %v707
        %v1220 = vperm.slane %v1217, 1
        %v1221 = vmul.f32 %v1220, %v707
        %v1223 = vrot.slane %v1221, 4
        %v1225 = vadd.f32 %v1219, %v1223
        %v1226 = vperm.slane %v1217, 2
        %v1227 = vmul.f32 %v1226, %v710
        %v1228 = vadd.f32 %v1225, %v1227
        %v1229 = vperm.slane %v1217, 3
        %v1230 = vmul.f32 %v1229, %v710
        %v1232 = vrot.slane %v1230, 4
        %v1234 = vadd.f32 %v1228, %v1232
        %v1235 = vperm.slane %v1234, 0
        %v1236 = vmul.f32 %v1235, %v713
        %v1237 = vperm.slane %v1234, 1
        %v1238 = vmul.f32 %v1237, %v713
        %v1240 = vrot.slane %v1238, 4
        %v1242 = vadd.f32 %v1236, %v1240
        %v1243 = vperm.slane %v1234, 2
        %v1244 = vmul.f32 %v1243, %v716
        %v1245 = vadd.f32 %v1242, %v1244
        %v1246 = vperm.slane %v1234, 3
        %v1247 = vmul.f32 %v1246, %v716
        %v1249 = vrot.slane %v1247, 4
        %v1251 = vadd.f32 %v1245, %v1249
        %v1252 = vperm.slane %v1251, 0
        %v1253 = vmul.f32 %v1252, %v719
        %v1254 = vperm.slane %v1251, 1
        %v1255 = vmul.f32 %v1254, %v719
        %v1257 = vrot.slane %v1255, 4
        %v1259 = vadd.f32 %v1253, %v1257
        %v1260 = vperm.slane %v1251, 2
        %v1261 = vmul.f32 %v1260, %v722
        %v1262 = vadd.f32 %v1259, %v1261
        %v1263 = vperm.slane %v1251, 3
        %v1264 = vmul.f32 %v1263, %v722
        %v1266 = vrot.slane %v1264, 4
        %v1268 = vadd.f32 %v1262, %v1266
        %v1269 = vperm.slane %v1268, 0
        %v1270 = vmul.f32 %v1269, %v725
        %v1271 = vperm.slane %v1268, 1
        %v1272 = vmul.f32 %v1271, %v725
        %v1274 = vrot.slane %v1272, 4
        %v1276 = vadd.f32 %v1270, %v1274
        %v1277 = vperm.slane %v1268, 2
        %v1278 = vmul.f32 %v1277, %v728
        %v1279 = vadd.f32 %v1276, %v1278
        %v1280 = vperm.slane %v1268, 3
        %v1281 = vmul.f32 %v1280, %v728
        %v1283 = vrot.slane %v1281, 4
        %v1285 = vadd.f32 %v1279, %v1283
        %v1286 = vperm.slane %v1285, 0
        %v1287 = vmul.f32 %v1286, %v731
        %v1288 = vperm.slane %v1285, 1
        %v1289 = vmul.f32 %v1288, %v731
        %v1291 = vrot.slane %v1289, 4
        %v1293 = vadd.f32 %v1287, %v1291
        %v1294 = vperm.slane %v1285, 2
        %v1295 = vmul.f32 %v1294, %v734
        %v1296 = vadd.f32 %v1293, %v1295
        %v1297 = vperm.slane %v1285, 3
        %v1298 = vmul.f32 %v1297, %v734
        %v1300 = vrot.slane %v1298, 4
        %v1302 = vadd.f32 %v1296, %v1300
        %v1303 = vperm.slane %v1302, 0
        %v1304 = vmul.f32 %v1303, %v737
        %v1305 = vperm.slane %v1302, 1
        %v1306 = vmul.f32 %v1305, %v737
        %v1308 = vrot.slane %v1306, 4
        %v1310 = vadd.f32 %v1304, %v1308
        %v1311 = vperm.slane %v1302, 2
        %v1312 = vmul.f32 %v1311, %v740
        %v1313 = vadd.f32 %v1310, %v1312
        %v1314 = vperm.slane %v1302, 3
        %v1315 = vmul.f32 %v1314, %v740
        %v1317 = vrot.slane %v1315, 4
        %v1319 = vadd.f32 %v1313, %v1317
        %v1320 = vperm.slane %v1319, 0
        %v1321 = vmul.f32 %v1320, %v743
        %v1322 = vperm.slane %v1319, 1
        %v1323 = vmul.f32 %v1322, %v743
        %v1325 = vrot.slane %v1323, 4
        %v1327 = vadd.f32 %v1321, %v1325
        %v1328 = vperm.slane %v1319, 2
        %v1329 = vmul.f32 %v1328, %v746
        %v1330 = vadd.f32 %v1327, %v1329
        %v1331 = vperm.slane %v1319, 3
        %v1332 = vmul.f32 %v1331, %v746
        %v1334 = vrot.slane %v1332, 4
        %v1336 = vadd.f32 %v1330, %v1334
        %v1337 = vperm.slane %v1336, 0
        %v1338 = vmul.f32 %v1337, %v749
        %v1339 = vperm.slane %v1336, 1
        %v1340 = vmul.f32 %v1339, %v749
        %v1342 = vrot.slane %v1340, 2
        %v1344 = vadd.f32 %v1338, %v1342
        %v1345 = vperm.slane %v1336, 2
        %v1346 = vmul.f32 %v1345, %v749
        %v1348 = vrot.slane %v1346, 4
        %v1350 = vadd.f32 %v1344, %v1348
        %v1351 = vperm.slane %v1336, 3
        %v1352 = vmul.f32 %v1351, %v749
        %v1354 = vrot.slane %v1352, 6
        %v1356 = vadd.f32 %v1350, %v1354
        %v1357 = vperm.slane %v752, 0
        %v1358 = vmul.f32 %v1357, %v755
        %v1359 = vperm.slane %v752, 1
        %v1360 = vmul.f32 %v1359, %v755
        %v1362 = vrot.slane %v1360, 4
        %v1364 = vadd.f32 %v1358, %v1362
        %v1365 = vperm.slane %v752, 2
        %v1366 = vmul.f32 %v1365, %v758
        %v1367 = vadd.f32 %v1364, %v1366
        %v1368 = vperm.slane %v752, 3
        %v1369 = vmul.f32 %v1368, %v758
        %v1371 = vrot.slane %v1369, 4
        %v1373 = vadd.f32 %v1367, %v1371
        %v1374 = vperm.slane %v1373, 0
        %v1375 = vmul.f32 %v1374, %v761
        %v1376 = vperm.slane %v1373, 1
        %v1377 = vmul.f32 %v1376, %v761
        %v1379 = vrot.slane %v1377, 4
        %v1381 = vadd.f32 %v1375, %v1379
        %v1382 = vperm.slane %v1373, 2
        %v1383 = vmul.f32 %v1382, %v764
        %v1384 = vadd.f32 %v1381, %v1383
        %v1385 = vperm.slane %v1373, 3
        %v1386 = vmul.f32 %v1385, %v764
        %v1388 = vrot.slane %v1386, 4
        %v1390 = vadd.f32 %v1384, %v1388
        %v1391 = vperm.slane %v1390, 0
        %v1392 = vmul.f32 %v1391, %v767
        %v1393 = vperm.slane %v1390, 1
        %v1394 = vmul.f32 %v1393, %v767
        %v1396 = vrot.slane %v1394, 4
        %v1398 = vadd.f32 %v1392, %v1396
        %v1399 = vperm.slane %v1390, 2
        %v1400 = vmul.f32 %v1399, %v770
        %v1401 = vadd.f32 %v1398, %v1400
        %v1402 = vperm.slane %v1390, 3
        %v1403 = vmul.f32 %v1402, %v770
        %v1405 = vrot.slane %v1403, 4
        %v1407 = vadd.f32 %v1401, %v1405
        %v1408 = vperm.slane %v1407, 0
        %v1409 = vmul.f32 %v1408, %v773
        %v1410 = vperm.slane %v1407, 1
        %v1411 = vmul.f32 %v1410, %v773
        %v1413 = vrot.slane %v1411, 4
        %v1415 = vadd.f32 %v1409, %v1413
        %v1416 = vperm.slane %v1407, 2
        %v1417 = vmul.f32 %v1416, %v776
        %v1418 = vadd.f32 %v1415, %v1417
        %v1419 = vperm.slane %v1407, 3
        %v1420 = vmul.f32 %v1419, %v776
        %v1422 = vrot.slane %v1420, 4
        %v1424 = vadd.f32 %v1418, %v1422
        %v1425 = vperm.slane %v1424, 0
        %v1426 = vmul.f32 %v1425, %v779
        %v1427 = vperm.slane %v1424, 1
        %v1428 = vmul.f32 %v1427, %v779
        %v1430 = vrot.slane %v1428, 4
        %v1432 = vadd.f32 %v1426, %v1430
        %v1433 = vperm.slane %v1424, 2
        %v1434 = vmul.f32 %v1433, %v782
        %v1435 = vadd.f32 %v1432, %v1434
        %v1436 = vperm.slane %v1424, 3
        %v1437 = vmul.f32 %v1436, %v782
        %v1439 = vrot.slane %v1437, 4
        %v1441 = vadd.f32 %v1435, %v1439
        %v1442 = vperm.slane %v1441, 0
        %v1443 = vmul.f32 %v1442, %v785
        %v1444 = vperm.slane %v1441, 1
        %v1445 = vmul.f32 %v1444, %v785
        %v1447 = vrot.slane %v1445, 4
        %v1449 = vadd.f32 %v1443, %v1447
        %v1450 = vperm.slane %v1441, 2
        %v1451 = vmul.f32 %v1450, %v788
        %v1452 = vadd.f32 %v1449, %v1451
        %v1453 = vperm.slane %v1441, 3
        %v1454 = vmul.f32 %v1453, %v788
        %v1456 = vrot.slane %v1454, 4
        %v1458 = vadd.f32 %v1452, %v1456
        %v1459 = vperm.slane %v1458, 0
        %v1460 = vmul.f32 %v1459, %v791
        %v1461 = vperm.slane %v1458, 1
        %v1462 = vmul.f32 %v1461, %v791
        %v1464 = vrot.slane %v1462, 4
        %v1466 = vadd.f32 %v1460, %v1464
        %v1467 = vperm.slane %v1458, 2
        %v1468 = vmul.f32 %v1467, %v794
        %v1469 = vadd.f32 %v1466, %v1468
        %v1470 = vperm.slane %v1458, 3
        %v1471 = vmul.f32 %v1470, %v794
        %v1473 = vrot.slane %v1471, 4
        %v1475 = vadd.f32 %v1469, %v1473
        %v1476 = vperm.slane %v1475, 0
        %v1477 = vmul.f32 %v1476, %v797
        %v1478 = vperm.slane %v1475, 1
        %v1479 = vmul.f32 %v1478, %v797
        %v1481 = vrot.slane %v1479, 4
        %v1483 = vadd.f32 %v1477, %v1481
        %v1484 = vperm.slane %v1475, 2
        %v1485 = vmul.f32 %v1484, %v800
        %v1486 = vadd.f32 %v1483, %v1485
        %v1487 = vperm.slane %v1475, 3
        %v1488 = vmul.f32 %v1487, %v800
        %v1490 = vrot.slane %v1488, 4
        %v1492 = vadd.f32 %v1486, %v1490
        %v1493 = vperm.slane %v1492, 0
        %v1494 = vmul.f32 %v1493, %v803
        %v1495 = vperm.slane %v1492, 1
        %v1496 = vmul.f32 %v1495, %v803
        %v1498 = vrot.slane %v1496, 4
        %v1500 = vadd.f32 %v1494, %v1498
        %v1501 = vperm.slane %v1492, 2
        %v1502 = vmul.f32 %v1501, %v806
        %v1503 = vadd.f32 %v1500, %v1502
        %v1504 = vperm.slane %v1492, 3
        %v1505 = vmul.f32 %v1504, %v806
        %v1507 = vrot.slane %v1505, 4
        %v1509 = vadd.f32 %v1503, %v1507
        %v1510 = vperm.slane %v1509, 0
        %v1511 = vmul.f32 %v1510, %v809
        %v1512 = vperm.slane %v1509, 1
        %v1513 = vmul.f32 %v1512, %v809
        %v1515 = vrot.slane %v1513, 4
        %v1517 = vadd.f32 %v1511, %v1515
        %v1518 = vperm.slane %v1509, 2
        %v1519 = vmul.f32 %v1518, %v812
        %v1520 = vadd.f32 %v1517, %v1519
        %v1521 = vperm.slane %v1509, 3
        %v1522 = vmul.f32 %v1521, %v812
        %v1524 = vrot.slane %v1522, 4
        %v1526 = vadd.f32 %v1520, %v1524
        %v1527 = vperm.slane %v1526, 0
        %v1528 = vmul.f32 %v1527, %v815
        %v1529 = vperm.slane %v1526, 1
        %v1530 = vmul.f32 %v1529, %v815
        %v1532 = vrot.slane %v1530, 4
        %v1534 = vadd.f32 %v1528, %v1532
        %v1535 = vperm.slane %v1526, 2
        %v1536 = vmul.f32 %v1535, %v818
        %v1537 = vadd.f32 %v1534, %v1536
        %v1538 = vperm.slane %v1526, 3
        %v1539 = vmul.f32 %v1538, %v818
        %v1541 = vrot.slane %v1539, 4
        %v1543 = vadd.f32 %v1537, %v1541
        %v1544 = vperm.slane %v1543, 0
        %v1545 = vmul.f32 %v1544, %v821
        %v1546 = vperm.slane %v1543, 1
        %v1547 = vmul.f32 %v1546, %v821
        %v1549 = vrot.slane %v1547, 4
        %v1551 = vadd.f32 %v1545, %v1549
        %v1552 = vperm.slane %v1543, 2
        %v1553 = vmul.f32 %v1552, %v824
        %v1554 = vadd.f32 %v1551, %v1553
        %v1555 = vperm.slane %v1543, 3
        %v1556 = vmul.f32 %v1555, %v824
        %v1558 = vrot.slane %v1556, 4
        %v1560 = vadd.f32 %v1554, %v1558
        %v1561 = vperm.slane %v1560, 0
        %v1562 = vmul.f32 %v1561, %v827
        %v1563 = vperm.slane %v1560, 1
        %v1564 = vmul.f32 %v1563, %v827
        %v1566 = vrot.slane %v1564, 4
        %v1568 = vadd.f32 %v1562, %v1566
        %v1569 = vperm.slane %v1560, 2
        %v1570 = vmul.f32 %v1569, %v830
        %v1571 = vadd.f32 %v1568, %v1570
        %v1572 = vperm.slane %v1560, 3
        %v1573 = vmul.f32 %v1572, %v830
        %v1575 = vrot.slane %v1573, 4
        %v1577 = vadd.f32 %v1571, %v1575
        %v1578 = vperm.slane %v1577, 0
        %v1579 = vmul.f32 %v1578, %v833
        %v1580 = vperm.slane %v1577, 1
        %v1581 = vmul.f32 %v1580, %v833
        %v1583 = vrot.slane %v1581, 4
        %v1585 = vadd.f32 %v1579, %v1583
        %v1586 = vperm.slane %v1577, 2
        %v1587 = vmul.f32 %v1586, %v836
        %v1588 = vadd.f32 %v1585, %v1587
        %v1589 = vperm.slane %v1577, 3
        %v1590 = vmul.f32 %v1589, %v836
        %v1592 = vrot.slane %v1590, 4
        %v1594 = vadd.f32 %v1588, %v1592
        %v1595 = vperm.slane %v1594, 0
        %v1596 = vmul.f32 %v1595, %v839
        %v1597 = vperm.slane %v1594, 1
        %v1598 = vmul.f32 %v1597, %v839
        %v1600 = vrot.slane %v1598, 2
        %v1602 = vadd.f32 %v1596, %v1600
        %v1603 = vperm.slane %v1594, 2
        %v1604 = vmul.f32 %v1603, %v839
        %v1606 = vrot.slane %v1604, 4
        %v1608 = vadd.f32 %v1602, %v1606
        %v1609 = vperm.slane %v1594, 3
        %v1610 = vmul.f32 %v1609, %v839
        %v1612 = vrot.slane %v1610, 6
        %v1614 = vadd.f32 %v1608, %v1612
        %v1616 = vrot.slane %v1356, 6
        %v1619 = vrot.slane %v1614, 4
        %vm1621 = vcmask 1041408
        %v1622 = vsel %vm1621, %v1098, %v1616
        %vm1623 = vcmask 1043456
        %v1624 = vsel %vm1623, %v1622, %v1619
        %1625 = vst [vmem:[%s188] sm:$0x3f] %v1624
        %s1626 = sand.u32 %s71, 1
        %s1627 = scalar_lea.sflag [#allocation4], %s1626
        %s1628 = sand.u32 %s71, 1
        %s1629 = smul.addr %s1628, 8
        %s1630 = scalar_lea.vmem [#allocation3], %s1629
        // Predicated region
        $region67: #{tpu_custom_call.1} parent=61 // pred_check
          %p1631 = pneg %p81
        $region68: #{tpu_custom_call.1} parent=61 // pred_check_branch
          %1633 = sbr.rel (%p1631) target = $region70
        $region69: #{tpu_custom_call.1} parent=61 // pred_region
          %1635 = vsyncadd %s1627, 0
          %s1636 = smul.addr %s16, 8
          %s1637 = scalar_lea.hbm %s2, %s1636
          %s1639 = sshll.u32 %s1630, 4
          %s1640 = int_to_ptr.vmem [resolvable:$true] %s1639
          %s1641 = sshll.u32 %s1637, 4
          %s1642 = int_to_ptr.hbm [resolvable:$true] %s1641
          %1644 = dma.vmem_to_hbm [thread:$0]  %s1640, 128, %s1642, %s1627
        $region70: #{tpu_custom_call.1} parent=61 // pred_fallthru
          _
      $region62: #{tpu_custom_call.1} parent=5 // pred_fallthru
        _
      %p1645 = scmp.le.s32.totalorder 2, %s11
      // Predicated region
      $region71: #{tpu_custom_call.1} parent=5 // pred_check
        %p1646 = pneg %p1645
      $region72: #{tpu_custom_call.1} parent=5 // pred_check_branch
        %1648 = sbr.rel (%p1646) target = $region74
      $region73: #{tpu_custom_call.1} parent=5 // pred_region
        %s1649 = ssub.s32 %s11, 2
        // Predicated region
        $region75: #{tpu_custom_call.1} parent=73 // pred_check
          %p1650 = pneg %p87
        $region76: #{tpu_custom_call.1} parent=73 // pred_check_branch
          %1652 = sbr.rel (%p1650) target = $region78
        $region77: #{tpu_custom_call.1} parent=73 // pred_region
          %s1653 = sand.u32 %s72, 1
          %s1654 = scalar_lea.sflag [#allocation4], %s1653
          %s1655 = sand.u32 %s72, 1
          %s1656 = smul.addr %s1655, 8
          %s1657 = scalar_lea.vmem [#allocation3], %s1656
          %1659 = dma.done %s1654, 128
        $region78: #{tpu_custom_call.1} parent=73 // pred_fallthru
          _
      $region74: #{tpu_custom_call.1} parent=5 // pred_fallthru
        _
    $region6: #{tpu_custom_call.1} parent=1 // loop_footer
      %s15 = sadd.s32 1, %s11
    $region7: #{tpu_custom_call.1} parent=1 // loop_footer_branch
      %10 = sbr.rel target = $region3
    $region8: #{tpu_custom_call.1} parent=1 // loop_exit
      _
    %1660 = vsyncpa [#allocation4], 1
    %s1661 = scalar_lea.sflag [#allocation4], 1
    %1662 = vsyncpa %s1661, 1

</llo_original>
